<compile_context>
chip_gen: v5e
topology: v5e:2x2
jax: 0.10.0
libtpu: 0.0.40
codegen_flags: <defaults>
</compile_context>

<pallas_src>
import functools

import jax
import jax.numpy as jnp
from jax.experimental import pallas as pl
from jax.experimental.pallas import tpu as pltpu

EPS = 1e-5                        # BatchNorm1d default eps
LANE = 128                        # TPU lane width: feature dims padded to this
ROW_TILE = 256                    # node-row tile (i axis)
A_KTILE_MAX = 2048                # max reduction-tile width of the streamed A operand
MSG_RESIDENT_BYTES = 8 * 1024 * 1024   # keep full msg (bf16) VMEM-resident up to this
VMEM_LIMIT = 32 * 1024 * 1024     # scoped VMEM budget for the small kernels
AGG_VMEM_LIMIT = 48 * 1024 * 1024  # agg kernel budget; stays under v7x's 64 MiB physical


def _round_up(x, m):
    return (x + m - 1) // m * m


def _choose_k_plan(n_pad, hp):
    """Pick the A reduction tile and whether msg stays fully resident in VMEM."""
    msg_resident = n_pad * hp * 2 <= MSG_RESIDENT_BYTES
    k_tile = ROW_TILE
    for cand in (A_KTILE_MAX, 1024, 512, 256):
        if cand <= n_pad and n_pad % cand == 0:
            k_tile = cand
            break
    return k_tile, msg_resident


# ---------------------------------------------------------------------------
# Kernels
# ---------------------------------------------------------------------------

def _dense_kernel(xin_ref, scale_ref, shift_ref, wcat_ref, z_ref, stats_ref,
                  *, apply_relu, n_real, tile, mask_rows):
    """x = ReLU?(BN_prev folded into scale/shift)(x_in); z = x @ [W1 | Wr] (bf16 MXU);
    emit per-tile partial (sum, sum_sq) of the W1 half (f32, pre-cast) for BatchNorm1."""
    x = xin_ref[...].astype(jnp.float32) * scale_ref[...] + shift_ref[...]
    if apply_relu:
        x = jnp.maximum(x, 0.0)
    if mask_rows:
        # Only emitted when n_real % tile != 0 (padding exists); zero padded rows so
        # they cannot pollute BatchNorm statistics (and keep z's padded rows 0).
        row = pl.program_id(0) * tile + jax.lax.broadcasted_iota(jnp.int32, (tile, 1), 0)
        x = jnp.where(row < n_real, x, 0.0)
    z = jnp.dot(x.astype(jnp.bfloat16), wcat_ref[...],
                preferred_element_type=jnp.float32)
    z_ref[...] = z.astype(jnp.bfloat16)
    hp = z.shape[1] // 2
    h1 = z[:, :hp]                                     # msg-Linear1 half (f32)
    s = jnp.sum(h1, axis=0, keepdims=True)
    ss = jnp.sum(h1 * h1, axis=0, keepdims=True)
    stats_ref[...] = jnp.concatenate([s, ss], axis=0)[None]


def _msg_kernel(h1_ref, scale_ref, shift_ref, w2_ref, b2_ref, msg_ref):
    """msg = Linear2(ReLU(BN1(h1))); stored bf16 for the aggregation matmul."""
    h = jnp.maximum(h1_ref[...].astype(jnp.float32) * scale_ref[...] + shift_ref[...],
                    0.0)
    m = jnp.dot(h.astype(jnp.bfloat16), w2_ref[...],
                preferred_element_type=jnp.float32) + b2_ref[...]
    msg_ref[...] = m.astype(jnp.bfloat16)


def _agg_kernel(a_ref, msg_ref, zr_ref, y_ref, stats_ref, acc_ref,
                *, k_tile, msg_resident):
    """rec = A @ msg (A streamed in large (row_tile, k_tile) bf16 tiles; msg either
    fully VMEM-resident or k-tiled); y = rec + root_linear(x); emit per-row-tile
    partial stats for BatchNorm2 (padded rows of y are exactly zero by construction)."""
    k = pl.program_id(1)

    @pl.when(k == 0)
    def _init():
        acc_ref[...] = jnp.zeros_like(acc_ref)

    if msg_resident:
        start = pl.multiple_of(k * k_tile, k_tile)
        m = msg_ref[pl.ds(start, k_tile), :]
    else:
        m = msg_ref[...]
    acc_ref[...] += jnp.dot(a_ref[...], m, preferred_element_type=jnp.float32)

    @pl.when(k == pl.num_programs(1) - 1)
    def _finish():
        y = acc_ref[...] + zr_ref[...].astype(jnp.float32)
        y_ref[...] = y.astype(jnp.bfloat16)
        s = jnp.sum(y, axis=0, keepdims=True)
        ss = jnp.sum(y * y, axis=0, keepdims=True)
        stats_ref[...] = jnp.concatenate([s, ss], axis=0)[None]


def _pool_kernel(p_ref, y_ref, scale_ref, shift_ref, part_ref):
    """x = ReLU(BN2(y_last)) per node tile; partial pooled = P_tile @ x (parallel
    over node tiles, so both v7x TensorCores stream the pooling pass)."""
    x = jnp.maximum(y_ref[...].astype(jnp.float32) * scale_ref[...] + shift_ref[...],
                    0.0)
    part_ref[...] = jnp.dot(p_ref[...], x.astype(jnp.bfloat16),
                            preferred_element_type=jnp.float32)[None]


def _cls_kernel(part_ref, wc1_ref, gc_ref, bec_ref, wc2_ref, bc2_ref, out_ref,
                *, num_graphs):
    """Reduce partial pooled blocks, then the graph_cls MLP with batch-stat BN."""
    pooled = jnp.sum(part_ref[...], axis=0)            # (gp, hp); padded graph rows = 0
    h = jnp.dot(pooled.astype(jnp.bfloat16), wc1_ref[...],
                preferred_element_type=jnp.float32)
    inv = 1.0 / float(num_graphs)
    mean = jnp.sum(h, axis=0, keepdims=True) * inv
    var = jnp.maximum(jnp.sum(h * h, axis=0, keepdims=True) * inv - mean * mean, 0.0)
    scale = gc_ref[...] * jax.lax.rsqrt(var + EPS)
    shift = bec_ref[...] - mean * scale
    hn = jnp.maximum(h * scale + shift, 0.0)
    out_ref[...] = (jnp.dot(hn.astype(jnp.bfloat16), wc2_ref[...],
                            preferred_element_type=jnp.float32) + bc2_ref[...])


# ---------------------------------------------------------------------------
# pallas_call wrappers
# ---------------------------------------------------------------------------

def _dense_call(xin, scale, shift, wcat, *, apply_relu, n_real, tile, mask_rows):
    n_pad, dp = xin.shape
    two_hp = wcat.shape[1]
    hp = two_hp // 2
    nt = n_pad // tile
    kern = functools.partial(_dense_kernel, apply_relu=apply_relu, n_real=n_real,
                             tile=tile, mask_rows=mask_rows)
    flops = 2 * n_pad * dp * two_hp
    byt = xin.dtype.itemsize * n_pad * dp + 2 * dp * two_hp + 2 * n_pad * two_hp
    return pl.pallas_call(
        kern,
        out_shape=(jax.ShapeDtypeStruct((n_pad, two_hp), jnp.bfloat16),
                   jax.ShapeDtypeStruct((nt, 2, hp), jnp.float32)),
        grid=(nt,),
        in_specs=[
            pl.BlockSpec((tile, dp), lambda i: (i, 0)),
            pl.BlockSpec((1, dp), lambda i: (0, 0)),
            pl.BlockSpec((1, dp), lambda i: (0, 0)),
            pl.BlockSpec((dp, two_hp), lambda i: (0, 0)),
        ],
        out_specs=(pl.BlockSpec((tile, two_hp), lambda i: (i, 0)),
                   pl.BlockSpec((1, 2, hp), lambda i: (i, 0, 0))),
        compiler_params=pltpu.CompilerParams(
            dimension_semantics=("parallel",), vmem_limit_bytes=VMEM_LIMIT),
        cost_estimate=pl.CostEstimate(flops=int(flops), transcendentals=0,
                                      bytes_accessed=int(byt)),
    )(xin, scale, shift, wcat)


def _msg_call(z, scale1, shift1, w2, b2, *, tile, hp):
    n_pad = z.shape[0]
    nt = n_pad // tile
    flops = 2 * n_pad * hp * hp
    byt = 2 * n_pad * hp + 2 * hp * hp + 2 * n_pad * hp
    return pl.pallas_call(
        _msg_kernel,
        out_shape=jax.ShapeDtypeStruct((n_pad, hp), jnp.bfloat16),
        grid=(nt,),
        in_specs=[
            pl.BlockSpec((tile, hp), lambda i: (i, 0)),   # h1 = z[:, :hp]
            pl.BlockSpec((1, hp), lambda i: (0, 0)),
            pl.BlockSpec((1, hp), lambda i: (0, 0)),
            pl.BlockSpec((hp, hp), lambda i: (0, 0)),
            pl.BlockSpec((1, hp), lambda i: (0, 0)),
        ],
        out_specs=pl.BlockSpec((tile, hp), lambda i: (i, 0)),
        compiler_params=pltpu.CompilerParams(
            dimension_semantics=("parallel",), vmem_limit_bytes=VMEM_LIMIT),
        cost_estimate=pl.CostEstimate(flops=int(flops), transcendentals=0,
                                      bytes_accessed=int(byt)),
    )(z, scale1, shift1, w2, b2)


def _agg_call(adj, msg, z, *, tile, hp, k_tile, msg_resident):
    n_pad = adj.shape[0]
    nt = n_pad // tile
    nk = n_pad // k_tile
    kern = functools.partial(_agg_kernel, k_tile=k_tile, msg_resident=msg_resident)

    if msg_resident:
        # msg is fetched ONCE (block index constant) and stays VMEM-resident.
        msg_spec = pl.BlockSpec((n_pad, hp), lambda i, k: (0, 0))
        msg_bytes = 2 * n_pad * hp
    else:
        msg_spec = pl.BlockSpec((k_tile, hp), lambda i, k: (k, 0))
        msg_bytes = 2 * nt * n_pad * hp

    flops = 2 * n_pad * n_pad * hp
    byt = 2 * n_pad * n_pad + msg_bytes + 2 * 2 * n_pad * hp + 4 * nt * 2 * hp
    return pl.pallas_call(
        kern,
        out_shape=(jax.ShapeDtypeStruct((n_pad, hp), jnp.bfloat16),
                   jax.ShapeDtypeStruct((nt, 2, hp), jnp.float32)),
        grid=(nt, nk),
        in_specs=[
            pl.BlockSpec((tile, k_tile), lambda i, k: (i, k)),   # A tile (bf16)
            msg_spec,                                            # msg (bf16)
            pl.BlockSpec((tile, hp), lambda i, k: (i, 1)),       # zr = z[:, hp:]
        ],
        out_specs=(pl.BlockSpec((tile, hp), lambda i, k: (i, 0)),
                   pl.BlockSpec((1, 2, hp), lambda i, k: (i, 0, 0))),
        scratch_shapes=[pltpu.VMEM((tile, hp), jnp.float32)],
        compiler_params=pltpu.CompilerParams(
            dimension_semantics=("parallel", "arbitrary"),
            vmem_limit_bytes=AGG_VMEM_LIMIT),
        cost_estimate=pl.CostEstimate(flops=int(flops), transcendentals=0,
                                      bytes_accessed=int(byt)),
    )(adj, msg, z)


def _pool_call(pool, y_last, scale, shift, *, tile, hp, gp):
    n_pad = y_last.shape[0]
    nt = n_pad // tile
    flops = 2 * gp * n_pad * hp
    byt = 2 * gp * n_pad + 2 * n_pad * hp + 4 * nt * gp * hp
    return pl.pallas_call(
        _pool_kernel,
        out_shape=jax.ShapeDtypeStruct((nt, gp, hp), jnp.float32),
        grid=(nt,),
        in_specs=[
            pl.BlockSpec((gp, tile), lambda k: (0, k)),    # pooling matrix (bf16)
            pl.BlockSpec((tile, hp), lambda k: (k, 0)),    # y of last layer (bf16)
            pl.BlockSpec((1, hp), lambda k: (0, 0)),       # BN2 scale
            pl.BlockSpec((1, hp), lambda k: (0, 0)),       # BN2 shift
        ],
        out_specs=pl.BlockSpec((1, gp, hp), lambda k: (k, 0, 0)),
        compiler_params=pltpu.CompilerParams(
            dimension_semantics=("parallel",), vmem_limit_bytes=VMEM_LIMIT),
        cost_estimate=pl.CostEstimate(flops=int(flops), transcendentals=0,
                                      bytes_accessed=int(byt)),
    )(pool, y_last, scale, shift)


def _cls_call(parts, cp, num_graphs, *, gp, hp, op):
    nt = parts.shape[0]
    kern = functools.partial(_cls_kernel, num_graphs=num_graphs)
    flops = 2 * gp * hp * hp + 2 * gp * hp * op
    byt = 4 * nt * gp * hp + 2 * (hp * hp + hp * op) + 4 * gp * op
    return pl.pallas_call(
        kern,
        out_shape=jax.ShapeDtypeStruct((gp, op), jnp.float32),
        grid=(1,),
        in_specs=[
            pl.BlockSpec((nt, gp, hp), lambda i: (0, 0, 0)),   # partial pooled blocks
            pl.BlockSpec((hp, hp), lambda i: (0, 0)),          # graph_cls Linear1 W
            pl.BlockSpec((1, hp), lambda i: (0, 0)),           # graph_cls BN gamma
            pl.BlockSpec((1, hp), lambda i: (0, 0)),           # graph_cls BN beta
            pl.BlockSpec((hp, op), lambda i: (0, 0)),          # graph_cls Linear2 W
            pl.BlockSpec((1, op), lambda i: (0, 0)),           # graph_cls Linear2 b
        ],
        out_specs=pl.BlockSpec((gp, op), lambda i: (0, 0)),
        compiler_params=pltpu.CompilerParams(
            dimension_semantics=("arbitrary",), vmem_limit_bytes=VMEM_LIMIT),
        cost_estimate=pl.CostEstimate(flops=int(flops), transcendentals=0,
                                      bytes_accessed=int(byt)),
    )(parts, cp["wc1"], cp["gc"], cp["bec"], cp["wc2"], cp["bc2"])


# ---------------------------------------------------------------------------
# BatchNorm finalization (tiny cross-tile reduction, plain JAX glue)
# ---------------------------------------------------------------------------

def _finalize_bn(stats, count, gamma, beta):
    """Per-tile (sum, sum_sq) partials -> fused BN scale/shift (batch statistics,
    biased variance, eps=1e-5)."""
    s = jnp.sum(stats, axis=0)                        # (2, F)
    mean = s[0:1] / count
    var = jnp.maximum(s[1:2] / count - mean * mean, 0.0)
    scale = gamma * jax.lax.rsqrt(var + EPS)
    shift = beta - mean * scale
    return scale, shift


# ---------------------------------------------------------------------------
# Forward
# ---------------------------------------------------------------------------

def gnn_forward(x, edge_index, batch, pp, num_graphs, *, tile=ROW_TILE):
    n, d0 = x.shape
    hp, op = pp["hp"], pp["op"]
    d0p = _round_up(d0, LANE)
    n_pad = _round_up(n, tile)
    mask_rows = (n % tile) != 0

    # Dense adjacency A[i, j] = #edges j -> i (scatter-add aggregation as matmul),
    # built directly in bf16 (exact while per-pair edge multiplicity <= 256).
    # TODO(synk): for very large sparse graphs a scalar-prefetch CSR/gather
    # aggregation kernel would avoid the O(N^2) dense-A traffic.
    src = edge_index[0].astype(jnp.int32)
    dst = edge_index[1].astype(jnp.int32)
    adj = (jnp.zeros((n_pad, n_pad), jnp.bfloat16)
           .at[dst, src].add(jnp.ones(src.shape, jnp.bfloat16)))

    # Pooling matrix for global_add_pool: P[g, v] = 1 iff batch[v] == g.
    gp = _round_up(max(num_graphs, 1), 16)
    batch_p = jnp.full((n_pad,), -1, jnp.int32).at[:n].set(batch.astype(jnp.int32))
    pool = (batch_p[None, :] == jnp.arange(gp, dtype=jnp.int32)[:, None]
            ).astype(jnp.bfloat16)

    # data.x.view(-1, in_dim), zero-padded to the row tile / lane width.
    cur = jnp.zeros((n_pad, d0p), jnp.float32).at[:n, :d0].set(x.astype(jnp.float32))
    # BN+ReLU of the "previous" layer folded into (scale, shift); identity at layer 0.
    scale = jnp.ones((1, d0p), jnp.float32)
    shift = jnp.zeros((1, d0p), jnp.float32)
    apply_relu = False
    count = float(n)

    k_tile, msg_resident = _choose_k_plan(n_pad, hp)

    for lp in pp["layers"]:
        z, st1 = _dense_call(cur, scale, shift, lp["wcat"], apply_relu=apply_relu,
                             n_real=n, tile=tile, mask_rows=mask_rows)
        s1, sh1 = _finalize_bn(st1, count, lp["g1"], lp["be1"])
        msg = _msg_call(z, s1, sh1, lp["w2"], lp["b2"], tile=tile, hp=hp)
        y, st2 = _agg_call(adj, msg, z, tile=tile, hp=hp,
                           k_tile=k_tile, msg_resident=msg_resident)
        scale, shift = _finalize_bn(st2, count, lp["g2"], lp["be2"])
        cur, apply_relu = y, True

    parts = _pool_call(pool, cur, scale, shift, tile=tile, hp=hp, gp=gp)
    out = _cls_call(parts, pp["graph_cls"], num_graphs, gp=gp, hp=hp, op=op)
    return out[:num_graphs, :pp["out_dim"]]


# ---------------------------------------------------------------------------
# Parameters
# ---------------------------------------------------------------------------

def _linear_init(key, fan_in, fan_out):
    kw, kb = jax.random.split(key)
    bound = 1.0 / jnp.sqrt(float(fan_in))
    w = jax.random.uniform(kw, (fan_in, fan_out), jnp.float32, -bound, bound)
    b = jax.random.uniform(kb, (1, fan_out), jnp.float32, -bound, bound)
    return w, b


def init_params(key, in_dim, hidden_dim, out_dim, num_layers):
    """PyTorch-style params.  b1 / br / graph_cls b1 exist for parity with nn.Linear
    but have no effect on the output: they feed directly into a batch-stat
    BatchNorm1d, where a per-feature constant cancels exactly, so the kernels
    omit them."""
    in_dims = [in_dim] + [hidden_dim] * (num_layers - 1)
    layers = []
    for d_in in in_dims:
        key, k1, k2, k3 = jax.random.split(key, 4)
        w1, b1 = _linear_init(k1, d_in, hidden_dim)
        w2, b2 = _linear_init(k2, hidden_dim, hidden_dim)
        wr, br = _linear_init(k3, d_in, hidden_dim)
        layers.append(dict(
            w1=w1, b1=b1, w2=w2, b2=b2, wr=wr, br=br,
            g1=jnp.ones((1, hidden_dim), jnp.float32),
            be1=jnp.zeros((1, hidden_dim), jnp.float32),
            g2=jnp.ones((1, hidden_dim), jnp.float32),
            be2=jnp.zeros((1, hidden_dim), jnp.float32),
        ))
    key, k1, k2 = jax.random.split(key, 3)
    cw1, cb1 = _linear_init(k1, hidden_dim, hidden_dim)
    cw2, cb2 = _linear_init(k2, hidden_dim, out_dim)
    graph_cls = dict(w1=cw1, b1=cb1, w2=cw2, b2=cb2,
                     g=jnp.ones((1, hidden_dim), jnp.float32),
                     be=jnp.zeros((1, hidden_dim), jnp.float32))
    return dict(layers=layers, graph_cls=graph_cls)


def pad_params(params, hidden, out_dim):
    """Zero-pad all feature dims to the 128-lane width, fuse [W1 | Wr] once and store
    all matmul weights in bf16 (MXU bf16 path); BN gammas/betas and biases stay f32."""
    hp = _round_up(hidden, LANE)
    op = _round_up(out_dim, LANE)
    layers = []
    for lp in params["layers"]:
        d_in = lp["w1"].shape[0]
        dp = _round_up(d_in, LANE)
        w1 = jnp.zeros((dp, hp), jnp.float32).at[:d_in, :hidden].set(lp["w1"])
        wr = jnp.zeros((dp, hp), jnp.float32).at[:d_in, :hidden].set(lp["wr"])
        # b1 / br omitted: a bias feeding straight into batch-stat BN cancels exactly.
        layers.append(dict(
            wcat=jnp.concatenate([w1, wr], axis=1).astype(jnp.bfloat16),
            w2=jnp.zeros((hp, hp), jnp.float32).at[:hidden, :hidden]
                 .set(lp["w2"]).astype(jnp.bfloat16),
            b2=jnp.zeros((1, hp), jnp.float32).at[:, :hidden].set(lp["b2"]),
            g1=jnp.zeros((1, hp), jnp.float32).at[:, :hidden].set(lp["g1"]),
            be1=jnp.zeros((1, hp), jnp.float32).at[:, :hidden].set(lp["be1"]),
            g2=jnp.zeros((1, hp), jnp.float32).at[:, :hidden].set(lp["g2"]),
            be2=jnp.zeros((1, hp), jnp.float32).at[:, :hidden].set(lp["be2"]),
        ))
    cp = params["graph_cls"]
    graph_cls = dict(
        wc1=jnp.zeros((hp, hp), jnp.float32).at[:hidden, :hidden]
              .set(cp["w1"]).astype(jnp.bfloat16),
        gc=jnp.zeros((1, hp), jnp.float32).at[:, :hidden].set(cp["g"]),
        bec=jnp.zeros((1, hp), jnp.float32).at[:, :hidden].set(cp["be"]),
        wc2=jnp.zeros((hp, op), jnp.float32).at[:hidden, :out_dim]
              .set(cp["w2"]).astype(jnp.bfloat16),
        bc2=jnp.zeros((1, op), jnp.float32).at[:, :out_dim].set(cp["b2"]),
    )
    return dict(layers=layers, graph_cls=graph_cls, hp=hp, op=op,
                hidden=hidden, out_dim=out_dim)


# ---------------------------------------------------------------------------
# Main
# ---------------------------------------------------------------------------

if __name__ == "__main__":
    IN_DIM, HIDDEN, OUT_DIM, NUM_LAYERS = 8, 32, 4, 2
    N_NODES, N_EDGES, N_GRAPHS = 16, 32, 2

    key = jax.random.PRNGKey(0)
    k_x, k_e, k_p = jax.random.split(key, 3)

    # data.x.view(-1, in_dim)
    x = jax.random.normal(k_x, (N_NODES, IN_DIM), jnp.float32)
    # data.edge_index : [2, E], row 0 = source, row 1 = target
    edge_index = jax.random.randint(k_e, (2, N_EDGES), 0, N_NODES, jnp.int32)
    # data.batch : graph id per node
    batch = jnp.concatenate([
        jnp.zeros((N_NODES // 2,), jnp.int32),
        jnp.ones((N_NODES - N_NODES // 2,), jnp.int32),
    ])

    params = init_params(k_p, IN_DIM, HIDDEN, OUT_DIM, NUM_LAYERS)
    pp = pad_params(params, HIDDEN, OUT_DIM)

    fwd = jax.jit(lambda xx, ee, bb: gnn_forward(xx, ee, bb, pp, N_GRAPHS))
    y = jax.block_until_ready(fwd(x, edge_index, batch))

    assert y.shape == (N_GRAPHS, OUT_DIM)
    assert bool(jnp.all(jnp.isfinite(y)))
    print("KERNEL_OK")
</pallas_src>

<mosaic_0001>
module attributes {stable_mosaic.version = 11 : i64} {
  func.func @_msg_kernel(%arg0: i32, %arg1: memref<256x128xbf16, #tpu.memory_space<vmem>>, %arg2: memref<1x128xf32, #tpu.memory_space<vmem>>, %arg3: memref<1x128xf32, #tpu.memory_space<vmem>>, %arg4: memref<128x128xbf16, #tpu.memory_space<vmem>>, %arg5: memref<1x128xf32, #tpu.memory_space<vmem>>, %arg6: memref<256x128xbf16, #tpu.memory_space<vmem>>) attributes {dimension_semantics = [#tpu.dimension_semantics<parallel>], iteration_bounds = array<i64: 1>, scalar_prefetch = 0 : i64, scratch_operands = 0 : i64, tpu.core_type = #tpu.core_type<tc>, window_params = [{transform_indices = @transform_0, window_bounds = array<i64: 256, 128>}, {pipeline_mode = #tpu.pipeline_mode<synchronous>, transform_indices = @transform_1, window_bounds = array<i64: 1, 128>}, {pipeline_mode = #tpu.pipeline_mode<synchronous>, transform_indices = @transform_2, window_bounds = array<i64: 1, 128>}, {pipeline_mode = #tpu.pipeline_mode<synchronous>, transform_indices = @transform_3, window_bounds = array<i64: 128, 128>}, {pipeline_mode = #tpu.pipeline_mode<synchronous>, transform_indices = @transform_4, window_bounds = array<i64: 1, 128>}, {transform_indices = @transform_5, window_bounds = array<i64: 256, 128>}]} {
    %c0 = arith.constant 0 : index
    %c0_0 = arith.constant 0 : index
    %0 = vector.load %arg1[%c0, %c0_0] : memref<256x128xbf16, #tpu.memory_space<vmem>>, vector<256x128xbf16>
    %1 = arith.extf %0 : vector<256x128xbf16> to vector<256x128xf32>
    %c0_1 = arith.constant 0 : index
    %c0_2 = arith.constant 0 : index
    %2 = vector.load %arg2[%c0_1, %c0_2] : memref<1x128xf32, #tpu.memory_space<vmem>>, vector<1x128xf32>
    %3 = vector.broadcast %2 : vector<1x128xf32> to vector<256x128xf32>
    %4 = arith.mulf %1, %3 : vector<256x128xf32>
    %c0_3 = arith.constant 0 : index
    %c0_4 = arith.constant 0 : index
    %5 = vector.load %arg3[%c0_3, %c0_4] : memref<1x128xf32, #tpu.memory_space<vmem>>, vector<1x128xf32>
    %6 = vector.broadcast %5 : vector<1x128xf32> to vector<256x128xf32>
    %7 = arith.addf %4, %6 : vector<256x128xf32>
    %cst = arith.constant 0.000000e+00 : f32
    %8 = vector.broadcast %cst : f32 to vector<256x128xf32>
    %9 = arith.maximumf %7, %8 : vector<256x128xf32>
    %10 = arith.truncf %9 : vector<256x128xf32> to vector<256x128xbf16>
    %c0_5 = arith.constant 0 : index
    %c0_6 = arith.constant 0 : index
    %11 = vector.load %arg4[%c0_5, %c0_6] : memref<128x128xbf16, #tpu.memory_space<vmem>>, vector<128x128xbf16>
    %cst_7 = arith.constant dense<0.000000e+00> : vector<256x128xf32>
    %12 = tpu.matmul %10, %11, %cst_7 {dimension_numbers = #tpu.dot_dimension_numbers<[1], [0], [0], [1], [0, 0, 1, 1], [], []>} : vector<256x128xbf16>, vector<128x128xbf16>, vector<256x128xf32> -> vector<256x128xf32>
    %c0_8 = arith.constant 0 : index
    %c0_9 = arith.constant 0 : index
    %13 = vector.load %arg5[%c0_8, %c0_9] : memref<1x128xf32, #tpu.memory_space<vmem>>, vector<1x128xf32>
    %14 = vector.broadcast %13 : vector<1x128xf32> to vector<256x128xf32>
    %15 = arith.addf %12, %14 : vector<256x128xf32>
    %16 = arith.truncf %15 : vector<256x128xf32> to vector<256x128xbf16>
    %c0_10 = arith.constant 0 : index
    %c0_11 = arith.constant 0 : index
    %17 = vector.load %arg6[%c0_10, %c0_11] : memref<256x128xbf16, #tpu.memory_space<vmem>>, vector<256x128xbf16>
    tpu.vector_store %arg6[%c0_10, %c0_11], %16 {strides = array<i32>} : memref<256x128xbf16, #tpu.memory_space<vmem>>, vector<256x128xbf16>,
    return
  }
  func.func @transform_0(%arg0: i32) -> (i32, i32) {
    %c0_i32 = arith.constant 0 : i32
    %c0_i32_0 = arith.constant 0 : i32
    return %arg0, %c0_i32 : i32, i32
  }
  func.func @transform_1(%arg0: i32) -> (i32, i32) {
    %c0_i32 = arith.constant 0 : i32
    %c0_i32_0 = arith.constant 0 : i32
    %c0_i32_1 = arith.constant 0 : i32
    return %c0_i32, %c0_i32_0 : i32, i32
  }
  func.func @transform_2(%arg0: i32) -> (i32, i32) {
    %c0_i32 = arith.constant 0 : i32
    %c0_i32_0 = arith.constant 0 : i32
    %c0_i32_1 = arith.constant 0 : i32
    return %c0_i32, %c0_i32_0 : i32, i32
  }
  func.func @transform_3(%arg0: i32) -> (i32, i32) {
    %c0_i32 = arith.constant 0 : i32
    %c0_i32_0 = arith.constant 0 : i32
    %c0_i32_1 = arith.constant 0 : i32
    return %c0_i32, %c0_i32_0 : i32, i32
  }
  func.func @transform_4(%arg0: i32) -> (i32, i32) {
    %c0_i32 = arith.constant 0 : i32
    %c0_i32_0 = arith.constant 0 : i32
    %c0_i32_1 = arith.constant 0 : i32
    return %c0_i32, %c0_i32_0 : i32, i32
  }
  func.func @transform_5(%arg0: i32) -> (i32, i32) {
    %c0_i32 = arith.constant 0 : i32
    %c0_i32_0 = arith.constant 0 : i32
    return %arg0, %c0_i32 : i32, i32
  }
}

module attributes {stable_mosaic.version = 11 : i64} {
  func.func @_dense_kernel(%arg0: i32, %arg1: memref<256x128xf32, #tpu.memory_space<vmem>>, %arg2: memref<1x128xf32, #tpu.memory_space<vmem>>, %arg3: memref<1x128xf32, #tpu.memory_space<vmem>>, %arg4: memref<128x256xbf16, #tpu.memory_space<vmem>>, %arg5: memref<256x256xbf16, #tpu.memory_space<vmem>>, %arg6: memref<1x2x128xf32, #tpu.memory_space<vmem>>) attributes {dimension_semantics = [#tpu.dimension_semantics<parallel>], iteration_bounds = array<i64: 1>, scalar_prefetch = 0 : i64, scratch_operands = 0 : i64, tpu.core_type = #tpu.core_type<tc>, window_params = [{transform_indices = @transform_0, window_bounds = array<i64: 256, 128>}, {pipeline_mode = #tpu.pipeline_mode<synchronous>, transform_indices = @transform_1, window_bounds = array<i64: 1, 128>}, {pipeline_mode = #tpu.pipeline_mode<synchronous>, transform_indices = @transform_2, window_bounds = array<i64: 1, 128>}, {pipeline_mode = #tpu.pipeline_mode<synchronous>, transform_indices = @transform_3, window_bounds = array<i64: 128, 256>}, {transform_indices = @transform_4, window_bounds = array<i64: 256, 256>}, {transform_indices = @transform_5, window_bounds = array<i64: 1, 2, 128>}]} {
    %c0 = arith.constant 0 : index
    %c0_0 = arith.constant 0 : index
    %0 = vector.load %arg1[%c0, %c0_0] : memref<256x128xf32, #tpu.memory_space<vmem>>, vector<256x128xf32>
    %c0_1 = arith.constant 0 : index
    %c0_2 = arith.constant 0 : index
    %1 = vector.load %arg2[%c0_1, %c0_2] : memref<1x128xf32, #tpu.memory_space<vmem>>, vector<1x128xf32>
    %2 = vector.broadcast %1 : vector<1x128xf32> to vector<256x128xf32>
    %3 = arith.mulf %0, %2 : vector<256x128xf32>
    %c0_3 = arith.constant 0 : index
    %c0_4 = arith.constant 0 : index
    %4 = vector.load %arg3[%c0_3, %c0_4] : memref<1x128xf32, #tpu.memory_space<vmem>>, vector<1x128xf32>
    %5 = vector.broadcast %4 : vector<1x128xf32> to vector<256x128xf32>
    %6 = arith.addf %3, %5 : vector<256x128xf32>
    %c256_i32 = arith.constant 256 : i32
    %7 = arith.muli %arg0, %c256_i32 : i32
    %8 = tpu.iota {dimensions = array<i32: 0>} : vector<256x1xi32>
    %9 = vector.broadcast %7 : i32 to vector<256x1xi32>
    %10 = arith.addi %9, %8 : vector<256x1xi32>
    %c16_i32 = arith.constant 16 : i32
    %11 = vector.broadcast %c16_i32 : i32 to vector<256x1xi32>
    %12 = arith.cmpi slt, %10, %11 : vector<256x1xi32>
    %cst = arith.constant 0.000000e+00 : f32
    %13 = vector.shape_cast %12 : vector<256x1xi1> to vector<256x1xi1>
    %14 = vector.broadcast %13 : vector<256x1xi1> to vector<256x128xi1>
    %15 = vector.broadcast %cst : f32 to vector<256x128xf32>
    %16 = arith.select %14, %6, %15 : vector<256x128xi1>, vector<256x128xf32>
    %17 = arith.truncf %16 : vector<256x128xf32> to vector<256x128xbf16>
    %c0_5 = arith.constant 0 : index
    %c0_6 = arith.constant 0 : index
    %18 = vector.load %arg4[%c0_5, %c0_6] : memref<128x256xbf16, #tpu.memory_space<vmem>>, vector<128x256xbf16>
    %cst_7 = arith.constant dense<0.000000e+00> : vector<256x256xf32>
    %19 = tpu.matmul %17, %18, %cst_7 {dimension_numbers = #tpu.dot_dimension_numbers<[1], [0], [0], [1], [0, 0, 1, 1], [], []>} : vector<256x128xbf16>, vector<128x256xbf16>, vector<256x256xf32> -> vector<256x256xf32>
    %20 = arith.truncf %19 : vector<256x256xf32> to vector<256x256xbf16>
    %c0_8 = arith.constant 0 : index
    %c0_9 = arith.constant 0 : index
    %21 = vector.load %arg5[%c0_8, %c0_9] : memref<256x256xbf16, #tpu.memory_space<vmem>>, vector<256x256xbf16>
    tpu.vector_store %arg5[%c0_8, %c0_9], %20 {strides = array<i32>} : memref<256x256xbf16, #tpu.memory_space<vmem>>, vector<256x256xbf16>,
    %22 = vector.extract_strided_slice %19 {offsets = [0, 0], sizes = [256, 128], strides = [1, 1]} : vector<256x256xf32> to vector<256x128xf32>
    %cst_10 = arith.constant dense<0.000000e+00> : vector<128xf32>
    %23 = vector.multi_reduction <add>, %22, %cst_10 [0] : vector<256x128xf32> to vector<128xf32>
    %24 = vector.shape_cast %23 : vector<128xf32> to vector<1x128xf32>
    %25 = arith.mulf %22, %22 : vector<256x128xf32>
    %cst_11 = arith.constant dense<0.000000e+00> : vector<128xf32>
    %26 = vector.multi_reduction <add>, %25, %cst_11 [0] : vector<256x128xf32> to vector<128xf32>
    %27 = vector.shape_cast %26 : vector<128xf32> to vector<1x128xf32>
    %28 = tpu.concatenate %24, %27 in 0 : vector<1x128xf32>, vector<1x128xf32> -> vector<2x128xf32>
    %29 = vector.shape_cast %28 : vector<2x128xf32> to vector<1x2x128xf32>
    %c0_12 = arith.constant 0 : index
    %c0_13 = arith.constant 0 : index
    %c0_14 = arith.constant 0 : index
    %30 = vector.load %arg6[%c0_12, %c0_13, %c0_14] : memref<1x2x128xf32, #tpu.memory_space<vmem>>, vector<1x2x128xf32>
    tpu.vector_store %arg6[%c0_12, %c0_13, %c0_14], %29 {strides = array<i32>} : memref<1x2x128xf32, #tpu.memory_space<vmem>>, vector<1x2x128xf32>,
    return
  }
  func.func @transform_0(%arg0: i32) -> (i32, i32) {
    %c0_i32 = arith.constant 0 : i32
    %c0_i32_0 = arith.constant 0 : i32
    return %arg0, %c0_i32 : i32, i32
  }
  func.func @transform_1(%arg0: i32) -> (i32, i32) {
    %c0_i32 = arith.constant 0 : i32
    %c0_i32_0 = arith.constant 0 : i32
    %c0_i32_1 = arith.constant 0 : i32
    return %c0_i32, %c0_i32_0 : i32, i32
  }
  func.func @transform_2(%arg0: i32) -> (i32, i32) {
    %c0_i32 = arith.constant 0 : i32
    %c0_i32_0 = arith.constant 0 : i32
    %c0_i32_1 = arith.constant 0 : i32
    return %c0_i32, %c0_i32_0 : i32, i32
  }
  func.func @transform_3(%arg0: i32) -> (i32, i32) {
    %c0_i32 = arith.constant 0 : i32
    %c0_i32_0 = arith.constant 0 : i32
    %c0_i32_1 = arith.constant 0 : i32
    return %c0_i32, %c0_i32_0 : i32, i32
  }
  func.func @transform_4(%arg0: i32) -> (i32, i32) {
    %c0_i32 = arith.constant 0 : i32
    %c0_i32_0 = arith.constant 0 : i32
    return %arg0, %c0_i32 : i32, i32
  }
  func.func @transform_5(%arg0: i32) -> (i32, i32, i32) {
    %c0_i32 = arith.constant 0 : i32
    %c0_i32_0 = arith.constant 0 : i32
    %c0_i32_1 = arith.constant 0 : i32
    return %arg0, %c0_i32, %c0_i32_0 : i32, i32, i32
  }
}

module attributes {stable_mosaic.version = 11 : i64} {
  func.func @_agg_kernel(%arg0: i32, %arg1: i32, %arg2: memref<256x256xbf16, #tpu.memory_space<vmem>>, %arg3: memref<256x128xbf16, #tpu.memory_space<vmem>>, %arg4: memref<256x128xbf16, #tpu.memory_space<vmem>>, %arg5: memref<256x128xbf16, #tpu.memory_space<vmem>>, %arg6: memref<1x2x128xf32, #tpu.memory_space<vmem>>, %arg7: memref<256x128xf32, #tpu.memory_space<vmem>>) attributes {dimension_semantics = [#tpu.dimension_semantics<parallel>, #tpu.dimension_semantics<arbitrary>], iteration_bounds = array<i64: 1, 1>, scalar_prefetch = 0 : i64, scratch_operands = 1 : i64, tpu.core_type = #tpu.core_type<tc>, window_params = [{transform_indices = @transform_0, window_bounds = array<i64: 256, 256>}, {pipeline_mode = #tpu.pipeline_mode<synchronous>, transform_indices = @transform_1, window_bounds = array<i64: 256, 128>}, {transform_indices = @transform_2, window_bounds = array<i64: 256, 128>}, {transform_indices = @transform_3, window_bounds = array<i64: 256, 128>}, {transform_indices = @transform_4, window_bounds = array<i64: 1, 2, 128>}]} {
    %c0_i32 = arith.constant 0 : i32
    %0 = arith.cmpi eq, %arg1, %c0_i32 : i32
    %1 = arith.extui %0 : i1 to i32
    %c0_i32_0 = arith.constant 0 : i32
    %2 = arith.cmpi ne, %1, %c0_i32_0 : i32
    scf.if %2 {
      %cst_9 = arith.constant 0.000000e+00 : f32
      %15 = vector.broadcast %cst_9 : f32 to vector<256x128xf32>
      %c0_10 = arith.constant 0 : index
      %c0_11 = arith.constant 0 : index
      %16 = vector.load %arg7[%c0_10, %c0_11] : memref<256x128xf32, #tpu.memory_space<vmem>>, vector<256x128xf32>
      tpu.vector_store %arg7[%c0_10, %c0_11], %15 {strides = array<i32>} : memref<256x128xf32, #tpu.memory_space<vmem>>, vector<256x128xf32>,
    } else {
    }
    %c256_i32 = arith.constant 256 : i32
    %3 = arith.muli %arg1, %c256_i32 : i32
    %4 = tpu.assume_multiple %3, 256 : i32
    %5 = arith.index_cast %4 : i32 to index
    %c0 = arith.constant 0 : index
    %6 = vector.load %arg3[%5, %c0] : memref<256x128xbf16, #tpu.memory_space<vmem>>, vector<256x128xbf16>
    %c0_1 = arith.constant 0 : index
    %c0_2 = arith.constant 0 : index
    %7 = vector.load %arg7[%c0_1, %c0_2] : memref<256x128xf32, #tpu.memory_space<vmem>>, vector<256x128xf32>
    %c0_3 = arith.constant 0 : index
    %c0_4 = arith.constant 0 : index
    %8 = vector.load %arg2[%c0_3, %c0_4] : memref<256x256xbf16, #tpu.memory_space<vmem>>, vector<256x256xbf16>
    %cst = arith.constant dense<0.000000e+00> : vector<256x128xf32>
    %9 = tpu.matmul %8, %6, %cst {dimension_numbers = #tpu.dot_dimension_numbers<[1], [0], [0], [1], [0, 0, 1, 1], [], []>} : vector<256x256xbf16>, vector<256x128xbf16>, vector<256x128xf32> -> vector<256x128xf32>
    %10 = arith.addf %7, %9 : vector<256x128xf32>
    %c0_5 = arith.constant 0 : index
    %c0_6 = arith.constant 0 : index
    %11 = vector.load %arg7[%c0_5, %c0_6] : memref<256x128xf32, #tpu.memory_space<vmem>>, vector<256x128xf32>
    tpu.vector_store %arg7[%c0_5, %c0_6], %10 {strides = array<i32>} : memref<256x128xf32, #tpu.memory_space<vmem>>, vector<256x128xf32>,
    %c0_i32_7 = arith.constant 0 : i32
    %12 = arith.cmpi eq, %arg1, %c0_i32_7 : i32
    %13 = arith.extui %12 : i1 to i32
    %c0_i32_8 = arith.constant 0 : i32
    %14 = arith.cmpi ne, %13, %c0_i32_8 : i32
    scf.if %14 {
      %c0_9 = arith.constant 0 : index
      %c0_10 = arith.constant 0 : index
      %15 = vector.load %arg7[%c0_9, %c0_10] : memref<256x128xf32, #tpu.memory_space<vmem>>, vector<256x128xf32>
      %c0_11 = arith.constant 0 : index
      %c0_12 = arith.constant 0 : index
      %16 = vector.load %arg4[%c0_11, %c0_12] : memref<256x128xbf16, #tpu.memory_space<vmem>>, vector<256x128xbf16>
      %17 = arith.extf %16 : vector<256x128xbf16> to vector<256x128xf32>
      %18 = arith.addf %15, %17 : vector<256x128xf32>
      %19 = arith.truncf %18 : vector<256x128xf32> to vector<256x128xbf16>
      %c0_13 = arith.constant 0 : index
      %c0_14 = arith.constant 0 : index
      %20 = vector.load %arg5[%c0_13, %c0_14] : memref<256x128xbf16, #tpu.memory_space<vmem>>, vector<256x128xbf16>
      tpu.vector_store %arg5[%c0_13, %c0_14], %19 {strides = array<i32>} : memref<256x128xbf16, #tpu.memory_space<vmem>>, vector<256x128xbf16>,
      %cst_15 = arith.constant dense<0.000000e+00> : vector<128xf32>
      %21 = vector.multi_reduction <add>, %18, %cst_15 [0] : vector<256x128xf32> to vector<128xf32>
      %22 = vector.shape_cast %21 : vector<128xf32> to vector<1x128xf32>
      %23 = arith.mulf %18, %18 : vector<256x128xf32>
      %cst_16 = arith.constant dense<0.000000e+00> : vector<128xf32>
      %24 = vector.multi_reduction <add>, %23, %cst_16 [0] : vector<256x128xf32> to vector<128xf32>
      %25 = vector.shape_cast %24 : vector<128xf32> to vector<1x128xf32>
      %26 = tpu.concatenate %22, %25 in 0 : vector<1x128xf32>, vector<1x128xf32> -> vector<2x128xf32>
      %27 = vector.shape_cast %26 : vector<2x128xf32> to vector<1x2x128xf32>
      %c0_17 = arith.constant 0 : index
      %c0_18 = arith.constant 0 : index
      %c0_19 = arith.constant 0 : index
      %28 = vector.load %arg6[%c0_17, %c0_18, %c0_19] : memref<1x2x128xf32, #tpu.memory_space<vmem>>, vector<1x2x128xf32>
      tpu.vector_store %arg6[%c0_17, %c0_18, %c0_19], %27 {strides = array<i32>} : memref<1x2x128xf32, #tpu.memory_space<vmem>>, vector<1x2x128xf32>,
    } else {
    }
    return
  }
  func.func @transform_0(%arg0: i32, %arg1: i32) -> (i32, i32) {
    %c0_i32 = arith.constant 0 : i32
    return %arg0, %arg1 : i32, i32
  }
  func.func @transform_1(%arg0: i32, %arg1: i32) -> (i32, i32) {
    %c0_i32 = arith.constant 0 : i32
    %c0_i32_0 = arith.constant 0 : i32
    %c0_i32_1 = arith.constant 0 : i32
    return %c0_i32, %c0_i32_0 : i32, i32
  }
  func.func @transform_2(%arg0: i32, %arg1: i32) -> (i32, i32) {
    %c1_i32 = arith.constant 1 : i32
    %c0_i32 = arith.constant 0 : i32
    return %arg0, %c1_i32 : i32, i32
  }
  func.func @transform_3(%arg0: i32, %arg1: i32) -> (i32, i32) {
    %c0_i32 = arith.constant 0 : i32
    %c0_i32_0 = arith.constant 0 : i32
    return %arg0, %c0_i32 : i32, i32
  }
  func.func @transform_4(%arg0: i32, %arg1: i32) -> (i32, i32, i32) {
    %c0_i32 = arith.constant 0 : i32
    %c0_i32_0 = arith.constant 0 : i32
    %c0_i32_1 = arith.constant 0 : i32
    return %arg0, %c0_i32, %c0_i32_0 : i32, i32, i32
  }
}

module attributes {stable_mosaic.version = 11 : i64} {
  func.func @_dense_kernel(%arg0: i32, %arg1: memref<256x128xbf16, #tpu.memory_space<vmem>>, %arg2: memref<1x128xf32, #tpu.memory_space<vmem>>, %arg3: memref<1x128xf32, #tpu.memory_space<vmem>>, %arg4: memref<128x256xbf16, #tpu.memory_space<vmem>>, %arg5: memref<256x256xbf16, #tpu.memory_space<vmem>>, %arg6: memref<1x2x128xf32, #tpu.memory_space<vmem>>) attributes {dimension_semantics = [#tpu.dimension_semantics<parallel>], iteration_bounds = array<i64: 1>, scalar_prefetch = 0 : i64, scratch_operands = 0 : i64, tpu.core_type = #tpu.core_type<tc>, window_params = [{transform_indices = @transform_0, window_bounds = array<i64: 256, 128>}, {pipeline_mode = #tpu.pipeline_mode<synchronous>, transform_indices = @transform_1, window_bounds = array<i64: 1, 128>}, {pipeline_mode = #tpu.pipeline_mode<synchronous>, transform_indices = @transform_2, window_bounds = array<i64: 1, 128>}, {pipeline_mode = #tpu.pipeline_mode<synchronous>, transform_indices = @transform_3, window_bounds = array<i64: 128, 256>}, {transform_indices = @transform_4, window_bounds = array<i64: 256, 256>}, {transform_indices = @transform_5, window_bounds = array<i64: 1, 2, 128>}]} {
    %c0 = arith.constant 0 : index
    %c0_0 = arith.constant 0 : index
    %0 = vector.load %arg1[%c0, %c0_0] : memref<256x128xbf16, #tpu.memory_space<vmem>>, vector<256x128xbf16>
    %1 = arith.extf %0 : vector<256x128xbf16> to vector<256x128xf32>
    %c0_1 = arith.constant 0 : index
    %c0_2 = arith.constant 0 : index
    %2 = vector.load %arg2[%c0_1, %c0_2] : memref<1x128xf32, #tpu.memory_space<vmem>>, vector<1x128xf32>
    %3 = vector.broadcast %2 : vector<1x128xf32> to vector<256x128xf32>
    %4 = arith.mulf %1, %3 : vector<256x128xf32>
    %c0_3 = arith.constant 0 : index
    %c0_4 = arith.constant 0 : index
    %5 = vector.load %arg3[%c0_3, %c0_4] : memref<1x128xf32, #tpu.memory_space<vmem>>, vector<1x128xf32>
    %6 = vector.broadcast %5 : vector<1x128xf32> to vector<256x128xf32>
    %7 = arith.addf %4, %6 : vector<256x128xf32>
    %cst = arith.constant 0.000000e+00 : f32
    %8 = vector.broadcast %cst : f32 to vector<256x128xf32>
    %9 = arith.maximumf %7, %8 : vector<256x128xf32>
    %c256_i32 = arith.constant 256 : i32
    %10 = arith.muli %arg0, %c256_i32 : i32
    %11 = tpu.iota {dimensions = array<i32: 0>} : vector<256x1xi32>
    %12 = vector.broadcast %10 : i32 to vector<256x1xi32>
    %13 = arith.addi %12, %11 : vector<256x1xi32>
    %c16_i32 = arith.constant 16 : i32
    %14 = vector.broadcast %c16_i32 : i32 to vector<256x1xi32>
    %15 = arith.cmpi slt, %13, %14 : vector<256x1xi32>
    %cst_5 = arith.constant 0.000000e+00 : f32
    %16 = vector.shape_cast %15 : vector<256x1xi1> to vector<256x1xi1>
    %17 = vector.broadcast %16 : vector<256x1xi1> to vector<256x128xi1>
    %18 = vector.broadcast %cst_5 : f32 to vector<256x128xf32>
    %19 = arith.select %17, %9, %18 : vector<256x128xi1>, vector<256x128xf32>
    %20 = arith.truncf %19 : vector<256x128xf32> to vector<256x128xbf16>
    %c0_6 = arith.constant 0 : index
    %c0_7 = arith.constant 0 : index
    %21 = vector.load %arg4[%c0_6, %c0_7] : memref<128x256xbf16, #tpu.memory_space<vmem>>, vector<128x256xbf16>
    %cst_8 = arith.constant dense<0.000000e+00> : vector<256x256xf32>
    %22 = tpu.matmul %20, %21, %cst_8 {dimension_numbers = #tpu.dot_dimension_numbers<[1], [0], [0], [1], [0, 0, 1, 1], [], []>} : vector<256x128xbf16>, vector<128x256xbf16>, vector<256x256xf32> -> vector<256x256xf32>
    %23 = arith.truncf %22 : vector<256x256xf32> to vector<256x256xbf16>
    %c0_9 = arith.constant 0 : index
    %c0_10 = arith.constant 0 : index
    %24 = vector.load %arg5[%c0_9, %c0_10] : memref<256x256xbf16, #tpu.memory_space<vmem>>, vector<256x256xbf16>
    tpu.vector_store %arg5[%c0_9, %c0_10], %23 {strides = array<i32>} : memref<256x256xbf16, #tpu.memory_space<vmem>>, vector<256x256xbf16>,
    %25 = vector.extract_strided_slice %22 {offsets = [0, 0], sizes = [256, 128], strides = [1, 1]} : vector<256x256xf32> to vector<256x128xf32>
    %cst_11 = arith.constant dense<0.000000e+00> : vector<128xf32>
    %26 = vector.multi_reduction <add>, %25, %cst_11 [0] : vector<256x128xf32> to vector<128xf32>
    %27 = vector.shape_cast %26 : vector<128xf32> to vector<1x128xf32>
    %28 = arith.mulf %25, %25 : vector<256x128xf32>
    %cst_12 = arith.constant dense<0.000000e+00> : vector<128xf32>
    %29 = vector.multi_reduction <add>, %28, %cst_12 [0] : vector<256x128xf32> to vector<128xf32>
    %30 = vector.shape_cast %29 : vector<128xf32> to vector<1x128xf32>
    %31 = tpu.concatenate %27, %30 in 0 : vector<1x128xf32>, vector<1x128xf32> -> vector<2x128xf32>
    %32 = vector.shape_cast %31 : vector<2x128xf32> to vector<1x2x128xf32>
    %c0_13 = arith.constant 0 : index
    %c0_14 = arith.constant 0 : index
    %c0_15 = arith.constant 0 : index
    %33 = vector.load %arg6[%c0_13, %c0_14, %c0_15] : memref<1x2x128xf32, #tpu.memory_space<vmem>>, vector<1x2x128xf32>
    tpu.vector_store %arg6[%c0_13, %c0_14, %c0_15], %32 {strides = array<i32>} : memref<1x2x128xf32, #tpu.memory_space<vmem>>, vector<1x2x128xf32>,
    return
  }
  func.func @transform_0(%arg0: i32) -> (i32, i32) {
    %c0_i32 = arith.constant 0 : i32
    %c0_i32_0 = arith.constant 0 : i32
    return %arg0, %c0_i32 : i32, i32
  }
  func.func @transform_1(%arg0: i32) -> (i32, i32) {
    %c0_i32 = arith.constant 0 : i32
    %c0_i32_0 = arith.constant 0 : i32
    %c0_i32_1 = arith.constant 0 : i32
    return %c0_i32, %c0_i32_0 : i32, i32
  }
  func.func @transform_2(%arg0: i32) -> (i32, i32) {
    %c0_i32 = arith.constant 0 : i32
    %c0_i32_0 = arith.constant 0 : i32
    %c0_i32_1 = arith.constant 0 : i32
    return %c0_i32, %c0_i32_0 : i32, i32
  }
  func.func @transform_3(%arg0: i32) -> (i32, i32) {
    %c0_i32 = arith.constant 0 : i32
    %c0_i32_0 = arith.constant 0 : i32
    %c0_i32_1 = arith.constant 0 : i32
    return %c0_i32, %c0_i32_0 : i32, i32
  }
  func.func @transform_4(%arg0: i32) -> (i32, i32) {
    %c0_i32 = arith.constant 0 : i32
    %c0_i32_0 = arith.constant 0 : i32
    return %arg0, %c0_i32 : i32, i32
  }
  func.func @transform_5(%arg0: i32) -> (i32, i32, i32) {
    %c0_i32 = arith.constant 0 : i32
    %c0_i32_0 = arith.constant 0 : i32
    %c0_i32_1 = arith.constant 0 : i32
    return %arg0, %c0_i32, %c0_i32_0 : i32, i32, i32
  }
}

module attributes {stable_mosaic.version = 11 : i64} {
  func.func @_cls_kernel(%arg0: i32, %arg1: memref<1x16x128xf32, #tpu.memory_space<vmem>>, %arg2: memref<128x128xbf16, #tpu.memory_space<vmem>>, %arg3: memref<1x128xf32, #tpu.memory_space<vmem>>, %arg4: memref<1x128xf32, #tpu.memory_space<vmem>>, %arg5: memref<128x128xbf16, #tpu.memory_space<vmem>>, %arg6: memref<1x128xf32, #tpu.memory_space<vmem>>, %arg7: memref<16x128xf32, #tpu.memory_space<vmem>>) attributes {dimension_semantics = [#tpu.dimension_semantics<arbitrary>], iteration_bounds = array<i64: 1>, scalar_prefetch = 0 : i64, scratch_operands = 0 : i64, tpu.core_type = #tpu.core_type<tc>, window_params = [{pipeline_mode = #tpu.pipeline_mode<synchronous>, transform_indices = @transform_0, window_bounds = array<i64: 1, 16, 128>}, {pipeline_mode = #tpu.pipeline_mode<synchronous>, transform_indices = @transform_1, window_bounds = array<i64: 128, 128>}, {pipeline_mode = #tpu.pipeline_mode<synchronous>, transform_indices = @transform_2, window_bounds = array<i64: 1, 128>}, {pipeline_mode = #tpu.pipeline_mode<synchronous>, transform_indices = @transform_3, window_bounds = array<i64: 1, 128>}, {pipeline_mode = #tpu.pipeline_mode<synchronous>, transform_indices = @transform_4, window_bounds = array<i64: 128, 128>}, {pipeline_mode = #tpu.pipeline_mode<synchronous>, transform_indices = @transform_5, window_bounds = array<i64: 1, 128>}, {pipeline_mode = #tpu.pipeline_mode<synchronous>, transform_indices = @transform_6, window_bounds = array<i64: 16, 128>}]} {
    %c0 = arith.constant 0 : index
    %c0_0 = arith.constant 0 : index
    %c0_1 = arith.constant 0 : index
    %0 = vector.load %arg1[%c0, %c0_0, %c0_1] : memref<1x16x128xf32, #tpu.memory_space<vmem>>, vector<1x16x128xf32>
    %cst = arith.constant dense<0.000000e+00> : vector<16x128xf32>
    %1 = vector.multi_reduction <add>, %0, %cst [0] : vector<1x16x128xf32> to vector<16x128xf32>
    %2 = arith.truncf %1 : vector<16x128xf32> to vector<16x128xbf16>
    %c0_2 = arith.constant 0 : index
    %c0_3 = arith.constant 0 : index
    %3 = vector.load %arg2[%c0_2, %c0_3] : memref<128x128xbf16, #tpu.memory_space<vmem>>, vector<128x128xbf16>
    %cst_4 = arith.constant dense<0.000000e+00> : vector<16x128xf32>
    %4 = tpu.matmul %2, %3, %cst_4 {dimension_numbers = #tpu.dot_dimension_numbers<[1], [0], [0], [1], [0, 0, 1, 1], [], []>} : vector<16x128xbf16>, vector<128x128xbf16>, vector<16x128xf32> -> vector<16x128xf32>
    %cst_5 = arith.constant dense<0.000000e+00> : vector<128xf32>
    %5 = vector.multi_reduction <add>, %4, %cst_5 [0] : vector<16x128xf32> to vector<128xf32>
    %6 = vector.shape_cast %5 : vector<128xf32> to vector<1x128xf32>
    %cst_6 = arith.constant 5.000000e-01 : f32
    %7 = vector.broadcast %cst_6 : f32 to vector<1x128xf32>
    %8 = arith.mulf %6, %7 : vector<1x128xf32>
    %9 = arith.mulf %4, %4 : vector<16x128xf32>
    %cst_7 = arith.constant dense<0.000000e+00> : vector<128xf32>
    %10 = vector.multi_reduction <add>, %9, %cst_7 [0] : vector<16x128xf32> to vector<128xf32>
    %11 = vector.shape_cast %10 : vector<128xf32> to vector<1x128xf32>
    %cst_8 = arith.constant 5.000000e-01 : f32
    %12 = vector.broadcast %cst_8 : f32 to vector<1x128xf32>
    %13 = arith.mulf %11, %12 : vector<1x128xf32>
    %14 = arith.mulf %8, %8 : vector<1x128xf32>
    %15 = arith.subf %13, %14 : vector<1x128xf32>
    %cst_9 = arith.constant 0.000000e+00 : f32
    %16 = vector.broadcast %cst_9 : f32 to vector<1x128xf32>
    %17 = arith.maximumf %15, %16 : vector<1x128xf32>
    %c0_10 = arith.constant 0 : index
    %c0_11 = arith.constant 0 : index
    %18 = vector.load %arg3[%c0_10, %c0_11] : memref<1x128xf32, #tpu.memory_space<vmem>>, vector<1x128xf32>
    %cst_12 = arith.constant 9.99999974E-6 : f32
    %19 = vector.broadcast %cst_12 : f32 to vector<1x128xf32>
    %20 = arith.addf %17, %19 : vector<1x128xf32>
    %21 = math.rsqrt %20 : vector<1x128xf32>
    %22 = arith.mulf %18, %21 : vector<1x128xf32>
    %c0_13 = arith.constant 0 : index
    %c0_14 = arith.constant 0 : index
    %23 = vector.load %arg4[%c0_13, %c0_14] : memref<1x128xf32, #tpu.memory_space<vmem>>, vector<1x128xf32>
    %24 = arith.mulf %8, %22 : vector<1x128xf32>
    %25 = arith.subf %23, %24 : vector<1x128xf32>
    %26 = vector.broadcast %22 : vector<1x128xf32> to vector<16x128xf32>
    %27 = arith.mulf %4, %26 : vector<16x128xf32>
    %28 = vector.broadcast %25 : vector<1x128xf32> to vector<16x128xf32>
    %29 = arith.addf %27, %28 : vector<16x128xf32>
    %cst_15 = arith.constant 0.000000e+00 : f32
    %30 = vector.broadcast %cst_15 : f32 to vector<16x128xf32>
    %31 = arith.maximumf %29, %30 : vector<16x128xf32>
    %32 = arith.truncf %31 : vector<16x128xf32> to vector<16x128xbf16>
    %c0_16 = arith.constant 0 : index
    %c0_17 = arith.constant 0 : index
    %33 = vector.load %arg5[%c0_16, %c0_17] : memref<128x128xbf16, #tpu.memory_space<vmem>>, vector<128x128xbf16>
    %cst_18 = arith.constant dense<0.000000e+00> : vector<16x128xf32>
    %34 = tpu.matmul %32, %33, %cst_18 {dimension_numbers = #tpu.dot_dimension_numbers<[1], [0], [0], [1], [0, 0, 1, 1], [], []>} : vector<16x128xbf16>, vector<128x128xbf16>, vector<16x128xf32> -> vector<16x128xf32>
    %c0_19 = arith.constant 0 : index
    %c0_20 = arith.constant 0 : index
    %35 = vector.load %arg6[%c0_19, %c0_20] : memref<1x128xf32, #tpu.memory_space<vmem>>, vector<1x128xf32>
    %36 = vector.broadcast %35 : vector<1x128xf32> to vector<16x128xf32>
    %37 = arith.addf %34, %36 : vector<16x128xf32>
    %c0_21 = arith.constant 0 : index
    %c0_22 = arith.constant 0 : index
    %38 = vector.load %arg7[%c0_21, %c0_22] : memref<16x128xf32, #tpu.memory_space<vmem>>, vector<16x128xf32>
    tpu.vector_store %arg7[%c0_21, %c0_22], %37 {strides = array<i32>} : memref<16x128xf32, #tpu.memory_space<vmem>>, vector<16x128xf32>,
    return
  }
  func.func @transform_0(%arg0: i32) -> (i32, i32, i32) {
    %c0_i32 = arith.constant 0 : i32
    %c0_i32_0 = arith.constant 0 : i32
    %c0_i32_1 = arith.constant 0 : i32
    %c0_i32_2 = arith.constant 0 : i32
    return %c0_i32, %c0_i32_0, %c0_i32_1 : i32, i32, i32
  }
  func.func @transform_1(%arg0: i32) -> (i32, i32) {
    %c0_i32 = arith.constant 0 : i32
    %c0_i32_0 = arith.constant 0 : i32
    %c0_i32_1 = arith.constant 0 : i32
    return %c0_i32, %c0_i32_0 : i32, i32
  }
  func.func @transform_2(%arg0: i32) -> (i32, i32) {
    %c0_i32 = arith.constant 0 : i32
    %c0_i32_0 = arith.constant 0 : i32
    %c0_i32_1 = arith.constant 0 : i32
    return %c0_i32, %c0_i32_0 : i32, i32
  }
  func.func @transform_3(%arg0: i32) -> (i32, i32) {
    %c0_i32 = arith.constant 0 : i32
    %c0_i32_0 = arith.constant 0 : i32
    %c0_i32_1 = arith.constant 0 : i32
    return %c0_i32, %c0_i32_0 : i32, i32
  }
  func.func @transform_4(%arg0: i32) -> (i32, i32) {
    %c0_i32 = arith.constant 0 : i32
    %c0_i32_0 = arith.constant 0 : i32
    %c0_i32_1 = arith.constant 0 : i32
    return %c0_i32, %c0_i32_0 : i32, i32
  }
  func.func @transform_5(%arg0: i32) -> (i32, i32) {
    %c0_i32 = arith.constant 0 : i32
    %c0_i32_0 = arith.constant 0 : i32
    %c0_i32_1 = arith.constant 0 : i32
    return %c0_i32, %c0_i32_0 : i32, i32
  }
  func.func @transform_6(%arg0: i32) -> (i32, i32) {
    %c0_i32 = arith.constant 0 : i32
    %c0_i32_0 = arith.constant 0 : i32
    %c0_i32_1 = arith.constant 0 : i32
    return %c0_i32, %c0_i32_0 : i32, i32
  }
}

module attributes {stable_mosaic.version = 11 : i64} {
  func.func @_pool_kernel(%arg0: i32, %arg1: memref<16x256xbf16, #tpu.memory_space<vmem>>, %arg2: memref<256x128xbf16, #tpu.memory_space<vmem>>, %arg3: memref<1x128xf32, #tpu.memory_space<vmem>>, %arg4: memref<1x128xf32, #tpu.memory_space<vmem>>, %arg5: memref<1x16x128xf32, #tpu.memory_space<vmem>>) attributes {dimension_semantics = [#tpu.dimension_semantics<parallel>], iteration_bounds = array<i64: 1>, scalar_prefetch = 0 : i64, scratch_operands = 0 : i64, tpu.core_type = #tpu.core_type<tc>, window_params = [{transform_indices = @transform_0, window_bounds = array<i64: 16, 256>}, {transform_indices = @transform_1, window_bounds = array<i64: 256, 128>}, {pipeline_mode = #tpu.pipeline_mode<synchronous>, transform_indices = @transform_2, window_bounds = array<i64: 1, 128>}, {pipeline_mode = #tpu.pipeline_mode<synchronous>, transform_indices = @transform_3, window_bounds = array<i64: 1, 128>}, {transform_indices = @transform_4, window_bounds = array<i64: 1, 16, 128>}]} {
    %c0 = arith.constant 0 : index
    %c0_0 = arith.constant 0 : index
    %0 = vector.load %arg2[%c0, %c0_0] : memref<256x128xbf16, #tpu.memory_space<vmem>>, vector<256x128xbf16>
    %1 = arith.extf %0 : vector<256x128xbf16> to vector<256x128xf32>
    %c0_1 = arith.constant 0 : index
    %c0_2 = arith.constant 0 : index
    %2 = vector.load %arg3[%c0_1, %c0_2] : memref<1x128xf32, #tpu.memory_space<vmem>>, vector<1x128xf32>
    %3 = vector.broadcast %2 : vector<1x128xf32> to vector<256x128xf32>
    %4 = arith.mulf %1, %3 : vector<256x128xf32>
    %c0_3 = arith.constant 0 : index
    %c0_4 = arith.constant 0 : index
    %5 = vector.load %arg4[%c0_3, %c0_4] : memref<1x128xf32, #tpu.memory_space<vmem>>, vector<1x128xf32>
    %6 = vector.broadcast %5 : vector<1x128xf32> to vector<256x128xf32>
    %7 = arith.addf %4, %6 : vector<256x128xf32>
    %cst = arith.constant 0.000000e+00 : f32
    %8 = vector.broadcast %cst : f32 to vector<256x128xf32>
    %9 = arith.maximumf %7, %8 : vector<256x128xf32>
    %c0_5 = arith.constant 0 : index
    %c0_6 = arith.constant 0 : index
    %10 = vector.load %arg1[%c0_5, %c0_6] : memref<16x256xbf16, #tpu.memory_space<vmem>>, vector<16x256xbf16>
    %11 = arith.truncf %9 : vector<256x128xf32> to vector<256x128xbf16>
    %cst_7 = arith.constant dense<0.000000e+00> : vector<16x128xf32>
    %12 = tpu.matmul %10, %11, %cst_7 {dimension_numbers = #tpu.dot_dimension_numbers<[1], [0], [0], [1], [0, 0, 1, 1], [], []>} : vector<16x256xbf16>, vector<256x128xbf16>, vector<16x128xf32> -> vector<16x128xf32>
    %13 = vector.shape_cast %12 : vector<16x128xf32> to vector<1x16x128xf32>
    %c0_8 = arith.constant 0 : index
    %c0_9 = arith.constant 0 : index
    %c0_10 = arith.constant 0 : index
    %14 = vector.load %arg5[%c0_8, %c0_9, %c0_10] : memref<1x16x128xf32, #tpu.memory_space<vmem>>, vector<1x16x128xf32>
    tpu.vector_store %arg5[%c0_8, %c0_9, %c0_10], %13 {strides = array<i32>} : memref<1x16x128xf32, #tpu.memory_space<vmem>>, vector<1x16x128xf32>,
    return
  }
  func.func @transform_0(%arg0: i32) -> (i32, i32) {
    %c0_i32 = arith.constant 0 : i32
    %c0_i32_0 = arith.constant 0 : i32
    return %c0_i32, %arg0 : i32, i32
  }
  func.func @transform_1(%arg0: i32) -> (i32, i32) {
    %c0_i32 = arith.constant 0 : i32
    %c0_i32_0 = arith.constant 0 : i32
    return %arg0, %c0_i32 : i32, i32
  }
  func.func @transform_2(%arg0: i32) -> (i32, i32) {
    %c0_i32 = arith.constant 0 : i32
    %c0_i32_0 = arith.constant 0 : i32
    %c0_i32_1 = arith.constant 0 : i32
    return %c0_i32, %c0_i32_0 : i32, i32
  }
  func.func @transform_3(%arg0: i32) -> (i32, i32) {
    %c0_i32 = arith.constant 0 : i32
    %c0_i32_0 = arith.constant 0 : i32
    %c0_i32_1 = arith.constant 0 : i32
    return %c0_i32, %c0_i32_0 : i32, i32
  }
  func.func @transform_4(%arg0: i32) -> (i32, i32, i32) {
    %c0_i32 = arith.constant 0 : i32
    %c0_i32_0 = arith.constant 0 : i32
    %c0_i32_1 = arith.constant 0 : i32
    return %arg0, %c0_i32, %c0_i32_0 : i32, i32, i32
  }
}

</mosaic_0001>

<llo_original>
// kernel: _lambda_.9
$region0: #{_lambda_.9}
  #allocation0 [shape = 'u32[]', space=smem, size = 0x4, offset = 0x4, fixed_abs, tag = 'smem constant byte address 0x4 - core index']
  #allocation1 [shape = 'u32[72,128]{1,0:T(1,128)}', space=vmem, size = 0x9000, scoped, tag = 'internal scratch']
  %s0 = inlined_call_operand.vmem [shape: bf16[256,256], index: 0, kind: input, shape index: {}]
  %s1 = inlined_call_operand.vmem [shape: f32[1,128], index: 1, kind: input, shape index: {}]
  %s2 = inlined_call_operand.vmem [shape: f32[1,128], index: 2, kind: input, shape index: {}]
  %s3 = inlined_call_operand.vmem [shape: bf16[128,128], index: 3, kind: input, shape index: {}]
  %s4 = inlined_call_operand.vmem [shape: f32[1,128], index: 4, kind: input, shape index: {}]
  %s5 = inlined_call_operand.vmem [shape: bf16[256,128], index: 5, kind: output, shape index: {}]
  %s6 = sld [smem:[#allocation0]]
  $region71: #{_lambda_.9} parent=0
    _
  %s8 = ssub.s32 1, %s6
  %s9 = scalar_select 0, %s8, %s6
  $region1: #{_lambda_.9} parent=0
    #allocation2 [shape = 'u8[65536]{0}', space=vmem, size = 0x10000, scoped, tag = 'input window, operand 0, single buffered']
    // Predicated region
    $region2: #{_lambda_.9} parent=1 // pred_check
      _
    $region3: #{_lambda_.9} parent=1 // pred_check_branch
      %11 = sbr.rel (0) target = $region5
    $region4: #{_lambda_.9} parent=1 // pred_region
      // Predicated region
      $region6: #{_lambda_.9} parent=4 // pred_check
        _
      $region7: #{_lambda_.9} parent=4 // pred_check_branch
        %13 = sbr.rel (0) target = $region9
      $region8: #{_lambda_.9} parent=4 // pred_region
        // Predicated region
        $region10: #{_lambda_.9} parent=8 // pred_check
          _
        $region11: #{_lambda_.9} parent=8 // pred_check_branch
          %15 = sbr.rel target = $region13
        $region12: #{_lambda_.9} parent=8 // pred_region
          // Predicated region
          $region25: #{_lambda_.9} parent=12 // pred_check
            _
          $region26: #{_lambda_.9} parent=12 // pred_check_branch
            %93 = sbr.rel (0) target = $region28
          $region27: #{_lambda_.9} parent=12 // pred_region
            loop: start=0, step=1, limit=1
            $region29: #{_lambda_.9} parent=27 // loop_pre_header
              _
            $region30: #{_lambda_.9} parent=27 // loop_header
              %s95 = sphi 0, %s99
              %p96 = scmp.ge.s32.totalorder %s95, 1
              %s100 = sphi %s0, %s0
              %s101 = sphi [#allocation2], [#allocation2]
            $region31: #{_lambda_.9} parent=27 // loop_header_branch
              %98 = sbr.rel (%p96) target = $region35
            $region32: #{_lambda_.9} parent=27 // loop_body
              _
            $region33: #{_lambda_.9} parent=27 // loop_footer
              %s99 = sadd.s32 1, %s95
            $region34: #{_lambda_.9} parent=27 // loop_footer_branch
              %94 = sbr.rel target = $region30
            $region35: #{_lambda_.9} parent=27 // loop_exit
              _
            %s103 = ssub.s32 16, 1
            loop: start=0, step=1, limit=1
            $region36: #{_lambda_.9} parent=27 // loop_pre_header
              _
            $region37: #{_lambda_.9} parent=27 // loop_header
              %s105 = sphi 0, %s109
              %p106 = scmp.ge.s32.totalorder %s105, 1
              %s110 = sphi %s0, %s0
              %s111 = sphi [#allocation2], [#allocation2]
            $region38: #{_lambda_.9} parent=27 // loop_header_branch
              %108 = sbr.rel (%p106) target = $region42
            $region39: #{_lambda_.9} parent=27 // loop_body
              %v112 = vld [vmem:[%s110] sm:%s103]
              %113 = vst [vmem:[%s111] sm:%s103] %v112
              %v114 = vld [vmem:[%s110 + $0x8] sm:%s103]
              %115 = vst [vmem:[%s111 + $0x4] sm:%s103] %v114
              %v116 = vld [vmem:[%s110 + $0x10] sm:%s103]
              %117 = vst [vmem:[%s111 + $0x8] sm:%s103] %v116
              %v118 = vld [vmem:[%s110 + $0x18] sm:%s103]
              %119 = vst [vmem:[%s111 + $0xc] sm:%s103] %v118
              %v120 = vld [vmem:[%s110 + $0x20] sm:%s103]
              %121 = vst [vmem:[%s111 + $0x10] sm:%s103] %v120
              %v122 = vld [vmem:[%s110 + $0x28] sm:%s103]
              %123 = vst [vmem:[%s111 + $0x14] sm:%s103] %v122
              %v124 = vld [vmem:[%s110 + $0x30] sm:%s103]
              %125 = vst [vmem:[%s111 + $0x18] sm:%s103] %v124
              %v126 = vld [vmem:[%s110 + $0x38] sm:%s103]
              %127 = vst [vmem:[%s111 + $0x1c] sm:%s103] %v126
              %v128 = vld [vmem:[%s110 + $0x40] sm:%s103]
              %129 = vst [vmem:[%s111 + $0x20] sm:%s103] %v128
              %v130 = vld [vmem:[%s110 + $0x48] sm:%s103]
              %131 = vst [vmem:[%s111 + $0x24] sm:%s103] %v130
              %v132 = vld [vmem:[%s110 + $0x50] sm:%s103]
              %133 = vst [vmem:[%s111 + $0x28] sm:%s103] %v132
              %v134 = vld [vmem:[%s110 + $0x58] sm:%s103]
              %135 = vst [vmem:[%s111 + $0x2c] sm:%s103] %v134
              %v136 = vld [vmem:[%s110 + $0x60] sm:%s103]
              %137 = vst [vmem:[%s111 + $0x30] sm:%s103] %v136
              %v138 = vld [vmem:[%s110 + $0x68] sm:%s103]
              %139 = vst [vmem:[%s111 + $0x34] sm:%s103] %v138
              %v140 = vld [vmem:[%s110 + $0x70] sm:%s103]
              %141 = vst [vmem:[%s111 + $0x38] sm:%s103] %v140
              %v142 = vld [vmem:[%s110 + $0x78] sm:%s103]
              %143 = vst [vmem:[%s111 + $0x3c] sm:%s103] %v142
              %v144 = vld [vmem:[%s110 + $0x80] sm:%s103]
              %145 = vst [vmem:[%s111 + $0x40] sm:%s103] %v144
              %v146 = vld [vmem:[%s110 + $0x88] sm:%s103]
              %147 = vst [vmem:[%s111 + $0x44] sm:%s103] %v146
              %v148 = vld [vmem:[%s110 + $0x90] sm:%s103]
              %149 = vst [vmem:[%s111 + $0x48] sm:%s103] %v148
              %v150 = vld [vmem:[%s110 + $0x98] sm:%s103]
              %151 = vst [vmem:[%s111 + $0x4c] sm:%s103] %v150
              %v152 = vld [vmem:[%s110 + $0xa0] sm:%s103]
              %153 = vst [vmem:[%s111 + $0x50] sm:%s103] %v152
              %v154 = vld [vmem:[%s110 + $0xa8] sm:%s103]
              %155 = vst [vmem:[%s111 + $0x54] sm:%s103] %v154
              %v156 = vld [vmem:[%s110 + $0xb0] sm:%s103]
              %157 = vst [vmem:[%s111 + $0x58] sm:%s103] %v156
              %v158 = vld [vmem:[%s110 + $0xb8] sm:%s103]
              %159 = vst [vmem:[%s111 + $0x5c] sm:%s103] %v158
              %v160 = vld [vmem:[%s110 + $0xc0] sm:%s103]
              %161 = vst [vmem:[%s111 + $0x60] sm:%s103] %v160
              %v162 = vld [vmem:[%s110 + $0xc8] sm:%s103]
              %163 = vst [vmem:[%s111 + $0x64] sm:%s103] %v162
              %v164 = vld [vmem:[%s110 + $0xd0] sm:%s103]
              %165 = vst [vmem:[%s111 + $0x68] sm:%s103] %v164
              %v166 = vld [vmem:[%s110 + $0xd8] sm:%s103]
              %167 = vst [vmem:[%s111 + $0x6c] sm:%s103] %v166
              %v168 = vld [vmem:[%s110 + $0xe0] sm:%s103]
              %169 = vst [vmem:[%s111 + $0x70] sm:%s103] %v168
              %v170 = vld [vmem:[%s110 + $0xe8] sm:%s103]
              %171 = vst [vmem:[%s111 + $0x74] sm:%s103] %v170
              %v172 = vld [vmem:[%s110 + $0xf0] sm:%s103]
              %173 = vst [vmem:[%s111 + $0x78] sm:%s103] %v172
              %v174 = vld [vmem:[%s110 + $0xf8] sm:%s103]
              %175 = vst [vmem:[%s111 + $0x7c] sm:%s103] %v174
            $region40: #{_lambda_.9} parent=27 // loop_footer
              %s109 = sadd.s32 1, %s105
            $region41: #{_lambda_.9} parent=27 // loop_footer_branch
              %104 = sbr.rel target = $region37
            $region42: #{_lambda_.9} parent=27 // loop_exit
              _
          $region28: #{_lambda_.9} parent=12 // pred_fallthru
            _
        $region13: #{_lambda_.9} parent=8 // pred_fallthru
          _
        // Predicated region
        $region14: #{_lambda_.9} parent=8 // pred_check
          _
        $region15: #{_lambda_.9} parent=8 // pred_check_branch
          %17 = sbr.rel (0) target = $region17
        $region16: #{_lambda_.9} parent=8 // pred_region
          %s19 = ssub.s32 16, 1
          loop: start=0, step=1, limit=1
          $region18: #{_lambda_.9} parent=16 // loop_pre_header
            _
          $region19: #{_lambda_.9} parent=16 // loop_header
            %s21 = sphi 0, %s25
            %p22 = scmp.ge.s32.totalorder %s21, 1
            %s26 = sphi %s0, %s0
            %s27 = sphi [#allocation2], [#allocation2]
          $region20: #{_lambda_.9} parent=16 // loop_header_branch
            %24 = sbr.rel (%p22) target = $region24
          $region21: #{_lambda_.9} parent=16 // loop_body
            %v28 = vld [vmem:[%s26] sm:%s19]
            %29 = vst [vmem:[%s27] sm:%s19] %v28
            %v30 = vld [vmem:[%s26 + $0x8] sm:%s19]
            %31 = vst [vmem:[%s27 + $0x4] sm:%s19] %v30
            %v32 = vld [vmem:[%s26 + $0x10] sm:%s19]
            %33 = vst [vmem:[%s27 + $0x8] sm:%s19] %v32
            %v34 = vld [vmem:[%s26 + $0x18] sm:%s19]
            %35 = vst [vmem:[%s27 + $0xc] sm:%s19] %v34
            %v36 = vld [vmem:[%s26 + $0x20] sm:%s19]
            %37 = vst [vmem:[%s27 + $0x10] sm:%s19] %v36
            %v38 = vld [vmem:[%s26 + $0x28] sm:%s19]
            %39 = vst [vmem:[%s27 + $0x14] sm:%s19] %v38
            %v40 = vld [vmem:[%s26 + $0x30] sm:%s19]
            %41 = vst [vmem:[%s27 + $0x18] sm:%s19] %v40
            %v42 = vld [vmem:[%s26 + $0x38] sm:%s19]
            %43 = vst [vmem:[%s27 + $0x1c] sm:%s19] %v42
            %v44 = vld [vmem:[%s26 + $0x40] sm:%s19]
            %45 = vst [vmem:[%s27 + $0x20] sm:%s19] %v44
            %v46 = vld [vmem:[%s26 + $0x48] sm:%s19]
            %47 = vst [vmem:[%s27 + $0x24] sm:%s19] %v46
            %v48 = vld [vmem:[%s26 + $0x50] sm:%s19]
            %49 = vst [vmem:[%s27 + $0x28] sm:%s19] %v48
            %v50 = vld [vmem:[%s26 + $0x58] sm:%s19]
            %51 = vst [vmem:[%s27 + $0x2c] sm:%s19] %v50
            %v52 = vld [vmem:[%s26 + $0x60] sm:%s19]
            %53 = vst [vmem:[%s27 + $0x30] sm:%s19] %v52
            %v54 = vld [vmem:[%s26 + $0x68] sm:%s19]
            %55 = vst [vmem:[%s27 + $0x34] sm:%s19] %v54
            %v56 = vld [vmem:[%s26 + $0x70] sm:%s19]
            %57 = vst [vmem:[%s27 + $0x38] sm:%s19] %v56
            %v58 = vld [vmem:[%s26 + $0x78] sm:%s19]
            %59 = vst [vmem:[%s27 + $0x3c] sm:%s19] %v58
            %v60 = vld [vmem:[%s26 + $0x80] sm:%s19]
            %61 = vst [vmem:[%s27 + $0x40] sm:%s19] %v60
            %v62 = vld [vmem:[%s26 + $0x88] sm:%s19]
            %63 = vst [vmem:[%s27 + $0x44] sm:%s19] %v62
            %v64 = vld [vmem:[%s26 + $0x90] sm:%s19]
            %65 = vst [vmem:[%s27 + $0x48] sm:%s19] %v64
            %v66 = vld [vmem:[%s26 + $0x98] sm:%s19]
            %67 = vst [vmem:[%s27 + $0x4c] sm:%s19] %v66
            %v68 = vld [vmem:[%s26 + $0xa0] sm:%s19]
            %69 = vst [vmem:[%s27 + $0x50] sm:%s19] %v68
            %v70 = vld [vmem:[%s26 + $0xa8] sm:%s19]
            %71 = vst [vmem:[%s27 + $0x54] sm:%s19] %v70
            %v72 = vld [vmem:[%s26 + $0xb0] sm:%s19]
            %73 = vst [vmem:[%s27 + $0x58] sm:%s19] %v72
            %v74 = vld [vmem:[%s26 + $0xb8] sm:%s19]
            %75 = vst [vmem:[%s27 + $0x5c] sm:%s19] %v74
            %v76 = vld [vmem:[%s26 + $0xc0] sm:%s19]
            %77 = vst [vmem:[%s27 + $0x60] sm:%s19] %v76
            %v78 = vld [vmem:[%s26 + $0xc8] sm:%s19]
            %79 = vst [vmem:[%s27 + $0x64] sm:%s19] %v78
            %v80 = vld [vmem:[%s26 + $0xd0] sm:%s19]
            %81 = vst [vmem:[%s27 + $0x68] sm:%s19] %v80
            %v82 = vld [vmem:[%s26 + $0xd8] sm:%s19]
            %83 = vst [vmem:[%s27 + $0x6c] sm:%s19] %v82
            %v84 = vld [vmem:[%s26 + $0xe0] sm:%s19]
            %85 = vst [vmem:[%s27 + $0x70] sm:%s19] %v84
            %v86 = vld [vmem:[%s26 + $0xe8] sm:%s19]
            %87 = vst [vmem:[%s27 + $0x74] sm:%s19] %v86
            %v88 = vld [vmem:[%s26 + $0xf0] sm:%s19]
            %89 = vst [vmem:[%s27 + $0x78] sm:%s19] %v88
            %v90 = vld [vmem:[%s26 + $0xf8] sm:%s19]
            %91 = vst [vmem:[%s27 + $0x7c] sm:%s19] %v90
          $region22: #{_lambda_.9} parent=16 // loop_footer
            %s25 = sadd.s32 1, %s21
          $region23: #{_lambda_.9} parent=16 // loop_footer_branch
            %20 = sbr.rel target = $region19
          $region24: #{_lambda_.9} parent=16 // loop_exit
            _
        $region17: #{_lambda_.9} parent=8 // pred_fallthru
          _
      $region9: #{_lambda_.9} parent=4 // pred_fallthru
        _
      %176 = vnop
    $region5: #{_lambda_.9} parent=1 // pred_fallthru
      _
    // Predicated region
    $region43: #{_lambda_.9} parent=1 // pred_check
      _
    $region44: #{_lambda_.9} parent=1 // pred_check_branch
      %178 = sbr.rel (0) target = $region46
    $region45: #{_lambda_.9} parent=1 // pred_region
      _
    $region46: #{_lambda_.9} parent=1 // pred_fallthru
      _
    // Predicated region
    $region47: #{_lambda_.9} parent=1 // pred_check
      _
    $region48: #{_lambda_.9} parent=1 // pred_check_branch
      %180 = sbr.rel (0) target = $region50
    $region49: #{_lambda_.9} parent=1 // pred_region
      _
    $region50: #{_lambda_.9} parent=1 // pred_fallthru
      _
    // Predicated region
    $region51: #{_lambda_.9} parent=1 // pred_check
      _
    $region52: #{_lambda_.9} parent=1 // pred_check_branch
      %182 = sbr.rel (0) target = $region54
    $region53: #{_lambda_.9} parent=1 // pred_region
      _
    $region54: #{_lambda_.9} parent=1 // pred_fallthru
      _
    // Predicated region
    $region55: #{_lambda_.9} parent=1 // pred_check
      _
    $region56: #{_lambda_.9} parent=1 // pred_check_branch
      %184 = sbr.rel (0) target = $region58
    $region57: #{_lambda_.9} parent=1 // pred_region
      _
    $region58: #{_lambda_.9} parent=1 // pred_fallthru
      _
    // Predicated region
    $region59: #{_lambda_.9} parent=1 // pred_check
      _
    $region60: #{_lambda_.9} parent=1 // pred_check_branch
      %186 = sbr.rel (0) target = $region62
    $region61: #{_lambda_.9} parent=1 // pred_region
      _
    $region62: #{_lambda_.9} parent=1 // pred_fallthru
      _
    %v187 = vld [vmem:[#allocation2] sm:$0xf]
    %v188 = vld [vmem:[#allocation2 + $0x4] sm:$0xf]
    %v189 = vld [vmem:[#allocation2 + $0x8] sm:$0xf]
    %v190 = vld [vmem:[#allocation2 + $0xc] sm:$0xf]
    %v191 = vld [vmem:[#allocation2 + $0x10] sm:$0xf]
    %v192 = vld [vmem:[#allocation2 + $0x14] sm:$0xf]
    %v193 = vld [vmem:[#allocation2 + $0x18] sm:$0xf]
    %v194 = vld [vmem:[#allocation2 + $0x1c] sm:$0xf]
    %v195 = vld [vmem:[#allocation2 + $0x20] sm:$0xf]
    %v196 = vld [vmem:[#allocation2 + $0x24] sm:$0xf]
    %v197 = vld [vmem:[#allocation2 + $0x28] sm:$0xf]
    %v198 = vld [vmem:[#allocation2 + $0x2c] sm:$0xf]
    %v199 = vld [vmem:[#allocation2 + $0x30] sm:$0xf]
    %v200 = vld [vmem:[#allocation2 + $0x34] sm:$0xf]
    %v201 = vld [vmem:[#allocation2 + $0x38] sm:$0xf]
    %v202 = vld [vmem:[#allocation2 + $0x3c] sm:$0xf]
    %v203 = vld [vmem:[#allocation2 + $0x40] sm:$0xf]
    %v204 = vld [vmem:[#allocation2 + $0x44] sm:$0xf]
    %v205 = vld [vmem:[#allocation2 + $0x48] sm:$0xf]
    %v206 = vld [vmem:[#allocation2 + $0x4c] sm:$0xf]
    %v207 = vld [vmem:[#allocation2 + $0x50] sm:$0xf]
    %v208 = vld [vmem:[#allocation2 + $0x54] sm:$0xf]
    %v209 = vld [vmem:[#allocation2 + $0x58] sm:$0xf]
    %v210 = vld [vmem:[#allocation2 + $0x5c] sm:$0xf]
    %v211 = vld [vmem:[#allocation2 + $0x60] sm:$0xf]
    %v212 = vld [vmem:[#allocation2 + $0x64] sm:$0xf]
    %v213 = vld [vmem:[#allocation2 + $0x68] sm:$0xf]
    %v214 = vld [vmem:[#allocation2 + $0x6c] sm:$0xf]
    %v215 = vld [vmem:[#allocation2 + $0x70] sm:$0xf]
    %v216 = vld [vmem:[#allocation2 + $0x74] sm:$0xf]
    %v217 = vld [vmem:[#allocation2 + $0x78] sm:$0xf]
    %v218 = vld [vmem:[#allocation2 + $0x7c] sm:$0xf]
    %v219 = vunpack.c.l.bf16 %v187
    %v220 = vunpack.c.l.bf16 %v188
    %v221 = vunpack.c.l.bf16 %v189
    %v222 = vunpack.c.l.bf16 %v190
    %v223 = vunpack.c.l.bf16 %v191
    %v224 = vunpack.c.l.bf16 %v192
    %v225 = vunpack.c.l.bf16 %v193
    %v226 = vunpack.c.l.bf16 %v194
    %v227 = vunpack.c.l.bf16 %v195
    %v228 = vunpack.c.l.bf16 %v196
    %v229 = vunpack.c.l.bf16 %v197
    %v230 = vunpack.c.l.bf16 %v198
    %v231 = vunpack.c.l.bf16 %v199
    %v232 = vunpack.c.l.bf16 %v200
    %v233 = vunpack.c.l.bf16 %v201
    %v234 = vunpack.c.l.bf16 %v202
    %v235 = vunpack.c.l.bf16 %v203
    %v236 = vunpack.c.l.bf16 %v204
    %v237 = vunpack.c.l.bf16 %v205
    %v238 = vunpack.c.l.bf16 %v206
    %v239 = vunpack.c.l.bf16 %v207
    %v240 = vunpack.c.l.bf16 %v208
    %v241 = vunpack.c.l.bf16 %v209
    %v242 = vunpack.c.l.bf16 %v210
    %v243 = vunpack.c.l.bf16 %v211
    %v244 = vunpack.c.l.bf16 %v212
    %v245 = vunpack.c.l.bf16 %v213
    %v246 = vunpack.c.l.bf16 %v214
    %v247 = vunpack.c.l.bf16 %v215
    %v248 = vunpack.c.l.bf16 %v216
    %v249 = vunpack.c.l.bf16 %v217
    %v250 = vunpack.c.l.bf16 %v218
    %v251 = vld [vmem:[%s1] sm:$0x1]
    %v253 = vperm.slane %v251, 0
    %v255 = vmul.f32 %v219, %v253
    %v256 = vmul.f32 %v220, %v253
    %v257 = vmul.f32 %v221, %v253
    %v258 = vmul.f32 %v222, %v253
    %v259 = vmul.f32 %v223, %v253
    %v260 = vmul.f32 %v224, %v253
    %v261 = vmul.f32 %v225, %v253
    %v262 = vmul.f32 %v226, %v253
    %v263 = vmul.f32 %v227, %v253
    %v264 = vmul.f32 %v228, %v253
    %v265 = vmul.f32 %v229, %v253
    %v266 = vmul.f32 %v230, %v253
    %v267 = vmul.f32 %v231, %v253
    %v268 = vmul.f32 %v232, %v253
    %v269 = vmul.f32 %v233, %v253
    %v270 = vmul.f32 %v234, %v253
    %v271 = vmul.f32 %v235, %v253
    %v272 = vmul.f32 %v236, %v253
    %v273 = vmul.f32 %v237, %v253
    %v274 = vmul.f32 %v238, %v253
    %v275 = vmul.f32 %v239, %v253
    %v276 = vmul.f32 %v240, %v253
    %v277 = vmul.f32 %v241, %v253
    %v278 = vmul.f32 %v242, %v253
    %v279 = vmul.f32 %v243, %v253
    %v280 = vmul.f32 %v244, %v253
    %v281 = vmul.f32 %v245, %v253
    %v282 = vmul.f32 %v246, %v253
    %v283 = vmul.f32 %v247, %v253
    %v284 = vmul.f32 %v248, %v253
    %v285 = vmul.f32 %v249, %v253
    %v286 = vmul.f32 %v250, %v253
    %v287 = vld [vmem:[%s2] sm:$0x1]
    %v289 = vperm.slane %v287, 0
    %v291 = vadd.f32 %v255, %v289
    %v292 = vadd.f32 %v256, %v289
    %v293 = vadd.f32 %v257, %v289
    %v294 = vadd.f32 %v258, %v289
    %v295 = vadd.f32 %v259, %v289
    %v296 = vadd.f32 %v260, %v289
    %v297 = vadd.f32 %v261, %v289
    %v298 = vadd.f32 %v262, %v289
    %v299 = vadd.f32 %v263, %v289
    %v300 = vadd.f32 %v264, %v289
    %v301 = vadd.f32 %v265, %v289
    %v302 = vadd.f32 %v266, %v289
    %v303 = vadd.f32 %v267, %v289
    %v304 = vadd.f32 %v268, %v289
    %v305 = vadd.f32 %v269, %v289
    %v306 = vadd.f32 %v270, %v289
    %v307 = vadd.f32 %v271, %v289
    %v308 = vadd.f32 %v272, %v289
    %v309 = vadd.f32 %v273, %v289
    %v310 = vadd.f32 %v274, %v289
    %v311 = vadd.f32 %v275, %v289
    %v312 = vadd.f32 %v276, %v289
    %v313 = vadd.f32 %v277, %v289
    %v314 = vadd.f32 %v278, %v289
    %v315 = vadd.f32 %v279, %v289
    %v316 = vadd.f32 %v280, %v289
    %v317 = vadd.f32 %v281, %v289
    %v318 = vadd.f32 %v282, %v289
    %v319 = vadd.f32 %v283, %v289
    %v320 = vadd.f32 %v284, %v289
    %v321 = vadd.f32 %v285, %v289
    %v322 = vadd.f32 %v286, %v289
    %v323 = vmax.f32 %v291, 0.0
    %v324 = vmax.f32 %v292, 0.0
    %v325 = vmax.f32 %v293, 0.0
    %v326 = vmax.f32 %v294, 0.0
    %v327 = vmax.f32 %v295, 0.0
    %v328 = vmax.f32 %v296, 0.0
    %v329 = vmax.f32 %v297, 0.0
    %v330 = vmax.f32 %v298, 0.0
    %v331 = vmax.f32 %v299, 0.0
    %v332 = vmax.f32 %v300, 0.0
    %v333 = vmax.f32 %v301, 0.0
    %v334 = vmax.f32 %v302, 0.0
    %v335 = vmax.f32 %v303, 0.0
    %v336 = vmax.f32 %v304, 0.0
    %v337 = vmax.f32 %v305, 0.0
    %v338 = vmax.f32 %v306, 0.0
    %v339 = vmax.f32 %v307, 0.0
    %v340 = vmax.f32 %v308, 0.0
    %v341 = vmax.f32 %v309, 0.0
    %v342 = vmax.f32 %v310, 0.0
    %v343 = vmax.f32 %v311, 0.0
    %v344 = vmax.f32 %v312, 0.0
    %v345 = vmax.f32 %v313, 0.0
    %v346 = vmax.f32 %v314, 0.0
    %v347 = vmax.f32 %v315, 0.0
    %v348 = vmax.f32 %v316, 0.0
    %v349 = vmax.f32 %v317, 0.0
    %v350 = vmax.f32 %v318, 0.0
    %v351 = vmax.f32 %v319, 0.0
    %v352 = vmax.f32 %v320, 0.0
    %v353 = vmax.f32 %v321, 0.0
    %v354 = vmax.f32 %v322, 0.0
    %v355 = vpack.c.bf16 %v324, %v323
    %v356 = vpack.c.bf16 %v326, %v325
    %v357 = vpack.c.bf16 %v328, %v327
    %v358 = vpack.c.bf16 %v330, %v329
    %v359 = vpack.c.bf16 %v332, %v331
    %v360 = vpack.c.bf16 %v334, %v333
    %v361 = vpack.c.bf16 %v336, %v335
    %v362 = vpack.c.bf16 %v338, %v337
    %v363 = vpack.c.bf16 %v340, %v339
    %v364 = vpack.c.bf16 %v342, %v341
    %v365 = vpack.c.bf16 %v344, %v343
    %v366 = vpack.c.bf16 %v346, %v345
    %v367 = vpack.c.bf16 %v348, %v347
    %v368 = vpack.c.bf16 %v350, %v349
    %v369 = vpack.c.bf16 %v352, %v351
    %v370 = vpack.c.bf16 %v354, %v353
    %v371 = vld [vmem:[%s3] sm:$0xf]
    %v372 = vld [vmem:[%s3 + $0x4] sm:$0xf]
    %v373 = vld [vmem:[%s3 + $0x8] sm:$0xf]
    %v374 = vld [vmem:[%s3 + $0xc] sm:$0xf]
    %v375 = vld [vmem:[%s3 + $0x10] sm:$0xf]
    %v376 = vld [vmem:[%s3 + $0x14] sm:$0xf]
    %v377 = vld [vmem:[%s3 + $0x18] sm:$0xf]
    %v378 = vld [vmem:[%s3 + $0x1c] sm:$0xf]
    %v379 = vld [vmem:[%s3 + $0x20] sm:$0xf]
    %v380 = vld [vmem:[%s3 + $0x24] sm:$0xf]
    %v381 = vld [vmem:[%s3 + $0x28] sm:$0xf]
    %v382 = vld [vmem:[%s3 + $0x2c] sm:$0xf]
    %v383 = vld [vmem:[%s3 + $0x30] sm:$0xf]
    %v384 = vld [vmem:[%s3 + $0x34] sm:$0xf]
    %v385 = vld [vmem:[%s3 + $0x38] sm:$0xf]
    %v386 = vld [vmem:[%s3 + $0x3c] sm:$0xf]
    %v387 = vld [vmem:[%s4] sm:$0x1]
    %v389 = vperm.slane %v387, 0
    %v407 = vunpack.c.l.b16 %v371
    %v408 = vunpack.c.l.b16 %v372
    %v409 = vunpack.c.l.b16 %v373
    %v410 = vunpack.c.l.b16 %v374
    %v411 = vunpack.c.l.b16 %v375
    %v412 = vunpack.c.l.b16 %v376
    %v413 = vunpack.c.l.b16 %v377
    %v414 = vunpack.c.l.b16 %v378
    %v415 = vunpack.c.l.b16 %v379
    %v416 = vunpack.c.l.b16 %v380
    %v417 = vunpack.c.l.b16 %v381
    %v418 = vunpack.c.l.b16 %v382
    %v419 = vunpack.c.l.b16 %v383
    %v420 = vunpack.c.l.b16 %v384
    %v421 = vunpack.c.l.b16 %v385
    %v422 = vunpack.c.l.b16 %v386
    %v423 = vpack.c.b16 %v408, %v407
    %v424 = vpack.c.b16 %v410, %v409
    %v425 = vpack.c.b16 %v412, %v411
    %v426 = vpack.c.b16 %v414, %v413
    %v427 = vpack.c.b16 %v416, %v415
    %v428 = vpack.c.b16 %v418, %v417
    %v429 = vpack.c.b16 %v420, %v419
    %v430 = vpack.c.b16 %v422, %v421
    %439 = vmatpush.bf16.msra.mxu0 %v430
    %440 = vmatpush.bf16.msra.mxu0 %v429
    %441 = vmatpush.bf16.msra.mxu0 %v428
    %442 = vmatpush.bf16.msra.mxu0 %v427
    %443 = vmatpush.bf16.msra.mxu0 %v426
    %444 = vmatpush.bf16.msra.mxu0 %v425
    %445 = vmatpush.bf16.msra.mxu0 %v424
    %446 = vmatpush.bf16.msra.mxu0 %v423
    %447 = vmatmul.bf16.gmra.mxu0 %v355
    %v448 = vpop.f32.mrf.mxu0
    %v449 = vadd.f32 %v389, %v448
    %v450 = vpop.f32.mrf.mxu0
    %v451 = vadd.f32 %v389, %v450
    %452 = vmatmul.bf16.gmra.mxu0 %v356
    %v453 = vpop.f32.mrf.mxu0
    %v454 = vadd.f32 %v389, %v453
    %v455 = vpop.f32.mrf.mxu0
    %v456 = vadd.f32 %v389, %v455
    %457 = vmatmul.bf16.gmra.mxu0 %v357
    %v458 = vpop.f32.mrf.mxu0
    %v459 = vadd.f32 %v389, %v458
    %v460 = vpop.f32.mrf.mxu0
    %v461 = vadd.f32 %v389, %v460
    %462 = vmatmul.bf16.gmra.mxu0 %v358
    %v463 = vpop.f32.mrf.mxu0
    %v464 = vadd.f32 %v389, %v463
    %v465 = vpop.f32.mrf.mxu0
    %v466 = vadd.f32 %v389, %v465
    %467 = vmatmul.bf16.gmra.mxu0 %v359
    %v468 = vpop.f32.mrf.mxu0
    %v469 = vadd.f32 %v389, %v468
    %v470 = vpop.f32.mrf.mxu0
    %v471 = vadd.f32 %v389, %v470
    %472 = vmatmul.bf16.gmra.mxu0 %v360
    %v473 = vpop.f32.mrf.mxu0
    %v474 = vadd.f32 %v389, %v473
    %v475 = vpop.f32.mrf.mxu0
    %v476 = vadd.f32 %v389, %v475
    %477 = vmatmul.bf16.gmra.mxu0 %v361
    %v478 = vpop.f32.mrf.mxu0
    %v479 = vadd.f32 %v389, %v478
    %v480 = vpop.f32.mrf.mxu0
    %v481 = vadd.f32 %v389, %v480
    %482 = vmatmul.bf16.gmra.mxu0 %v362
    %v483 = vpop.f32.mrf.mxu0
    %v484 = vadd.f32 %v389, %v483
    %v485 = vpop.f32.mrf.mxu0
    %v486 = vadd.f32 %v389, %v485
    %487 = vmatmul.bf16.gmra.mxu0 %v363
    %v488 = vpop.f32.mrf.mxu0
    %v489 = vadd.f32 %v389, %v488
    %v490 = vpop.f32.mrf.mxu0
    %v491 = vadd.f32 %v389, %v490
    %492 = vmatmul.bf16.gmra.mxu0 %v364
    %v493 = vpop.f32.mrf.mxu0
    %v494 = vadd.f32 %v389, %v493
    %v495 = vpop.f32.mrf.mxu0
    %v496 = vadd.f32 %v389, %v495
    %497 = vmatmul.bf16.gmra.mxu0 %v365
    %v498 = vpop.f32.mrf.mxu0
    %v499 = vadd.f32 %v389, %v498
    %v500 = vpop.f32.mrf.mxu0
    %v501 = vadd.f32 %v389, %v500
    %502 = vmatmul.bf16.gmra.mxu0 %v366
    %v503 = vpop.f32.mrf.mxu0
    %v504 = vadd.f32 %v389, %v503
    %v505 = vpop.f32.mrf.mxu0
    %v506 = vadd.f32 %v389, %v505
    %507 = vmatmul.bf16.gmra.mxu0 %v367
    %v508 = vpop.f32.mrf.mxu0
    %v509 = vadd.f32 %v389, %v508
    %v510 = vpop.f32.mrf.mxu0
    %v511 = vadd.f32 %v389, %v510
    %512 = vmatmul.bf16.gmra.mxu0 %v368
    %v513 = vpop.f32.mrf.mxu0
    %v514 = vadd.f32 %v389, %v513
    %v515 = vpop.f32.mrf.mxu0
    %v516 = vadd.f32 %v389, %v515
    %517 = vmatmul.bf16.gmra.mxu0 %v369
    %v518 = vpop.f32.mrf.mxu0
    %v519 = vadd.f32 %v389, %v518
    %v520 = vpop.f32.mrf.mxu0
    %v521 = vadd.f32 %v389, %v520
    %522 = vmatmul.bf16.gmra.mxu0 %v370
    %v523 = vpop.f32.mrf.mxu0
    %v524 = vadd.f32 %v389, %v523
    %v525 = vpop.f32.mrf.mxu0
    %v526 = vadd.f32 %v389, %v525
    %527 = vdwg.mxu0
    %v528 = vpack.c.bf16 %v449, %v449
    %v529 = vpack.c.bf16 %v451, %v451
    %v530 = vpack.c.bf16 %v454, %v454
    %v531 = vpack.c.bf16 %v456, %v456
    %v532 = vpack.c.bf16 %v459, %v459
    %v533 = vpack.c.bf16 %v461, %v461
    %v534 = vpack.c.bf16 %v464, %v464
    %v535 = vpack.c.bf16 %v466, %v466
    %v536 = vpack.c.bf16 %v469, %v469
    %v537 = vpack.c.bf16 %v471, %v471
    %v538 = vpack.c.bf16 %v474, %v474
    %v539 = vpack.c.bf16 %v476, %v476
    %v540 = vpack.c.bf16 %v479, %v479
    %v541 = vpack.c.bf16 %v481, %v481
    %v542 = vpack.c.bf16 %v484, %v484
    %v543 = vpack.c.bf16 %v486, %v486
    %v544 = vpack.c.bf16 %v489, %v489
    %v545 = vpack.c.bf16 %v491, %v491
    %v546 = vpack.c.bf16 %v494, %v494
    %v547 = vpack.c.bf16 %v496, %v496
    %v548 = vpack.c.bf16 %v499, %v499
    %v549 = vpack.c.bf16 %v501, %v501
    %v550 = vpack.c.bf16 %v504, %v504
    %v551 = vpack.c.bf16 %v506, %v506
    %v552 = vpack.c.bf16 %v509, %v509
    %v553 = vpack.c.bf16 %v511, %v511
    %v554 = vpack.c.bf16 %v514, %v514
    %v555 = vpack.c.bf16 %v516, %v516
    %v556 = vpack.c.bf16 %v519, %v519
    %v557 = vpack.c.bf16 %v521, %v521
    %v558 = vpack.c.bf16 %v524, %v524
    %v559 = vpack.c.bf16 %v526, %v526
    %560 = vst [vmem:[%s5] sm:$0xf] %v528
    %561 = vst [vmem:[%s5 + $0x4] sm:$0xf] %v529
    %562 = vst [vmem:[%s5 + $0x8] sm:$0xf] %v530
    %563 = vst [vmem:[%s5 + $0xc] sm:$0xf] %v531
    %564 = vst [vmem:[%s5 + $0x10] sm:$0xf] %v532
    %565 = vst [vmem:[%s5 + $0x14] sm:$0xf] %v533
    %566 = vst [vmem:[%s5 + $0x18] sm:$0xf] %v534
    %567 = vst [vmem:[%s5 + $0x1c] sm:$0xf] %v535
    %568 = vst [vmem:[%s5 + $0x20] sm:$0xf] %v536
    %569 = vst [vmem:[%s5 + $0x24] sm:$0xf] %v537
    %570 = vst [vmem:[%s5 + $0x28] sm:$0xf] %v538
    %571 = vst [vmem:[%s5 + $0x2c] sm:$0xf] %v539
    %572 = vst [vmem:[%s5 + $0x30] sm:$0xf] %v540
    %573 = vst [vmem:[%s5 + $0x34] sm:$0xf] %v541
    %574 = vst [vmem:[%s5 + $0x38] sm:$0xf] %v542
    %575 = vst [vmem:[%s5 + $0x3c] sm:$0xf] %v543
    %576 = vst [vmem:[%s5 + $0x40] sm:$0xf] %v544
    %577 = vst [vmem:[%s5 + $0x44] sm:$0xf] %v545
    %578 = vst [vmem:[%s5 + $0x48] sm:$0xf] %v546
    %579 = vst [vmem:[%s5 + $0x4c] sm:$0xf] %v547
    %580 = vst [vmem:[%s5 + $0x50] sm:$0xf] %v548
    %581 = vst [vmem:[%s5 + $0x54] sm:$0xf] %v549
    %582 = vst [vmem:[%s5 + $0x58] sm:$0xf] %v550
    %583 = vst [vmem:[%s5 + $0x5c] sm:$0xf] %v551
    %584 = vst [vmem:[%s5 + $0x60] sm:$0xf] %v552
    %585 = vst [vmem:[%s5 + $0x64] sm:$0xf] %v553
    %586 = vst [vmem:[%s5 + $0x68] sm:$0xf] %v554
    %587 = vst [vmem:[%s5 + $0x6c] sm:$0xf] %v555
    %588 = vst [vmem:[%s5 + $0x70] sm:$0xf] %v556
    %589 = vst [vmem:[%s5 + $0x74] sm:$0xf] %v557
    %590 = vst [vmem:[%s5 + $0x78] sm:$0xf] %v558
    %591 = vst [vmem:[%s5 + $0x7c] sm:$0xf] %v559
    // Predicated region
    $region63: #{_lambda_.9} parent=1 // pred_check
      _
    $region64: #{_lambda_.9} parent=1 // pred_check_branch
      %593 = sbr.rel (0) target = $region66
    $region65: #{_lambda_.9} parent=1 // pred_region
      _
    $region66: #{_lambda_.9} parent=1 // pred_fallthru
      _
    // Predicated region
    $region67: #{_lambda_.9} parent=1 // pred_check
      _
    $region68: #{_lambda_.9} parent=1 // pred_check_branch
      %595 = sbr.rel (0) target = $region70
    $region69: #{_lambda_.9} parent=1 // pred_region
      _
    $region70: #{_lambda_.9} parent=1 // pred_fallthru
      _

// kernel: _lambda_.8
$region0: #{_lambda_.8}
  #allocation0 [shape = 'u32[]', space=smem, size = 0x4, offset = 0x4, fixed_abs, tag = 'smem constant byte address 0x4 - core index']
  #allocation1 [shape = 'u32[72,128]{1,0:T(1,128)}', space=vmem, size = 0x9000, scoped, tag = 'internal scratch']
  %s0 = inlined_call_operand.vmem [shape: f32[256,128], index: 0, kind: input, shape index: {}]
  %s1 = inlined_call_operand.vmem [shape: f32[1,128], index: 1, kind: input, shape index: {}]
  %s2 = inlined_call_operand.vmem [shape: f32[1,128], index: 2, kind: input, shape index: {}]
  %s3 = inlined_call_operand.vmem [shape: bf16[128,256], index: 3, kind: input, shape index: {}]
  %s4 = inlined_call_operand.vmem [shape: bf16[256,256], index: 4, kind: output, shape index: {0}]
  %s5 = inlined_call_operand.vmem [shape: f32[1,2,128], index: 5, kind: output, shape index: {1}]
  %6 = xla_tuple %s4, %s5
  %s7 = sld [smem:[#allocation0]]
  $region34: #{_lambda_.8} parent=0
    _
  %s9 = ssub.s32 1, %s7
  %s10 = scalar_select 0, %s9, %s7
  // Predicated region
  $region2: #{_lambda_.8} parent=0 // pred_check
    _
  $region3: #{_lambda_.8} parent=0 // pred_check_branch
    %12 = sbr.rel (0) target = $region5
  $region4: #{_lambda_.8} parent=0 // pred_region
    _
  $region5: #{_lambda_.8} parent=0 // pred_fallthru
    _
  // Predicated region
  $region6: #{_lambda_.8} parent=0 // pred_check
    _
  $region7: #{_lambda_.8} parent=0 // pred_check_branch
    %14 = sbr.rel (0) target = $region9
  $region8: #{_lambda_.8} parent=0 // pred_region
    _
  $region9: #{_lambda_.8} parent=0 // pred_fallthru
    _
  // Predicated region
  $region10: #{_lambda_.8} parent=0 // pred_check
    _
  $region11: #{_lambda_.8} parent=0 // pred_check_branch
    %16 = sbr.rel (0) target = $region13
  $region12: #{_lambda_.8} parent=0 // pred_region
    _
  $region13: #{_lambda_.8} parent=0 // pred_fallthru
    _
  // Predicated region
  $region14: #{_lambda_.8} parent=0 // pred_check
    _
  $region15: #{_lambda_.8} parent=0 // pred_check_branch
    %18 = sbr.rel (0) target = $region17
  $region16: #{_lambda_.8} parent=0 // pred_region
    _
  $region17: #{_lambda_.8} parent=0 // pred_fallthru
    _
  %v19 = vld [vmem:[%s0] sm:$0xff]
  %v20 = vld [vmem:[%s0 + $0x8] sm:$0xff]
  %v21 = vld [vmem:[%s0 + $0x10] sm:$0xff]
  %v22 = vld [vmem:[%s0 + $0x18] sm:$0xff]
  %v23 = vld [vmem:[%s0 + $0x20] sm:$0xff]
  %v24 = vld [vmem:[%s0 + $0x28] sm:$0xff]
  %v25 = vld [vmem:[%s0 + $0x30] sm:$0xff]
  %v26 = vld [vmem:[%s0 + $0x38] sm:$0xff]
  %v27 = vld [vmem:[%s0 + $0x40] sm:$0xff]
  %v28 = vld [vmem:[%s0 + $0x48] sm:$0xff]
  %v29 = vld [vmem:[%s0 + $0x50] sm:$0xff]
  %v30 = vld [vmem:[%s0 + $0x58] sm:$0xff]
  %v31 = vld [vmem:[%s0 + $0x60] sm:$0xff]
  %v32 = vld [vmem:[%s0 + $0x68] sm:$0xff]
  %v33 = vld [vmem:[%s0 + $0x70] sm:$0xff]
  %v34 = vld [vmem:[%s0 + $0x78] sm:$0xff]
  %v35 = vld [vmem:[%s0 + $0x80] sm:$0xff]
  %v36 = vld [vmem:[%s0 + $0x88] sm:$0xff]
  %v37 = vld [vmem:[%s0 + $0x90] sm:$0xff]
  %v38 = vld [vmem:[%s0 + $0x98] sm:$0xff]
  %v39 = vld [vmem:[%s0 + $0xa0] sm:$0xff]
  %v40 = vld [vmem:[%s0 + $0xa8] sm:$0xff]
  %v41 = vld [vmem:[%s0 + $0xb0] sm:$0xff]
  %v42 = vld [vmem:[%s0 + $0xb8] sm:$0xff]
  %v43 = vld [vmem:[%s0 + $0xc0] sm:$0xff]
  %v44 = vld [vmem:[%s0 + $0xc8] sm:$0xff]
  %v45 = vld [vmem:[%s0 + $0xd0] sm:$0xff]
  %v46 = vld [vmem:[%s0 + $0xd8] sm:$0xff]
  %v47 = vld [vmem:[%s0 + $0xe0] sm:$0xff]
  %v48 = vld [vmem:[%s0 + $0xe8] sm:$0xff]
  %v49 = vld [vmem:[%s0 + $0xf0] sm:$0xff]
  %v50 = vld [vmem:[%s0 + $0xf8] sm:$0xff]
  %v51 = vld [vmem:[%s1] sm:$0x1]
  %v53 = vperm.slane %v51, 0
  %v55 = vmul.f32 %v19, %v53
  %v56 = vmul.f32 %v20, %v53
  %v57 = vmul.f32 %v21, %v53
  %v58 = vmul.f32 %v22, %v53
  %v59 = vmul.f32 %v23, %v53
  %v60 = vmul.f32 %v24, %v53
  %v61 = vmul.f32 %v25, %v53
  %v62 = vmul.f32 %v26, %v53
  %v63 = vmul.f32 %v27, %v53
  %v64 = vmul.f32 %v28, %v53
  %v65 = vmul.f32 %v29, %v53
  %v66 = vmul.f32 %v30, %v53
  %v67 = vmul.f32 %v31, %v53
  %v68 = vmul.f32 %v32, %v53
  %v69 = vmul.f32 %v33, %v53
  %v70 = vmul.f32 %v34, %v53
  %v71 = vmul.f32 %v35, %v53
  %v72 = vmul.f32 %v36, %v53
  %v73 = vmul.f32 %v37, %v53
  %v74 = vmul.f32 %v38, %v53
  %v75 = vmul.f32 %v39, %v53
  %v76 = vmul.f32 %v40, %v53
  %v77 = vmul.f32 %v41, %v53
  %v78 = vmul.f32 %v42, %v53
  %v79 = vmul.f32 %v43, %v53
  %v80 = vmul.f32 %v44, %v53
  %v81 = vmul.f32 %v45, %v53
  %v82 = vmul.f32 %v46, %v53
  %v83 = vmul.f32 %v47, %v53
  %v84 = vmul.f32 %v48, %v53
  %v85 = vmul.f32 %v49, %v53
  %v86 = vmul.f32 %v50, %v53
  %v87 = vld [vmem:[%s2] sm:$0x1]
  %v89 = vperm.slane %v87, 0
  %v91 = vadd.f32 %v55, %v89
  %v92 = vadd.f32 %v56, %v89
  %v93 = vadd.f32 %v57, %v89
  %v94 = vadd.f32 %v58, %v89
  %v95 = vadd.f32 %v59, %v89
  %v96 = vadd.f32 %v60, %v89
  %v97 = vadd.f32 %v61, %v89
  %v98 = vadd.f32 %v62, %v89
  %v99 = vadd.f32 %v63, %v89
  %v100 = vadd.f32 %v64, %v89
  %v101 = vadd.f32 %v65, %v89
  %v102 = vadd.f32 %v66, %v89
  %v103 = vadd.f32 %v67, %v89
  %v104 = vadd.f32 %v68, %v89
  %v105 = vadd.f32 %v69, %v89
  %v106 = vadd.f32 %v70, %v89
  %v107 = vadd.f32 %v71, %v89
  %v108 = vadd.f32 %v72, %v89
  %v109 = vadd.f32 %v73, %v89
  %v110 = vadd.f32 %v74, %v89
  %v111 = vadd.f32 %v75, %v89
  %v112 = vadd.f32 %v76, %v89
  %v113 = vadd.f32 %v77, %v89
  %v114 = vadd.f32 %v78, %v89
  %v115 = vadd.f32 %v79, %v89
  %v116 = vadd.f32 %v80, %v89
  %v117 = vadd.f32 %v81, %v89
  %v118 = vadd.f32 %v82, %v89
  %v119 = vadd.f32 %v83, %v89
  %v120 = vadd.f32 %v84, %v89
  %v121 = vadd.f32 %v85, %v89
  %v122 = vadd.f32 %v86, %v89
  %s123 = smul.u32 0, 256
  %v124 = vlaneseq
  %v125 = vshrl.u32 %v124, 7
  %v126 = vadd.s32 %v125, 8
  %v127 = vadd.s32 %v125, 16
  %v128 = vadd.s32 %v125, 24
  %v129 = vadd.s32 %v125, 32
  %v130 = vadd.s32 %v125, 40
  %v131 = vadd.s32 %v125, 48
  %v132 = vadd.s32 %v125, 56
  %v133 = vadd.s32 %v125, 64
  %v134 = vadd.s32 %v125, 72
  %v135 = vadd.s32 %v125, 80
  %v136 = vadd.s32 %v125, 88
  %v137 = vadd.s32 %v125, 96
  %v138 = vadd.s32 %v125, 104
  %v139 = vadd.s32 %v125, 112
  %v140 = vadd.s32 %v125, 120
  %v141 = vadd.s32 %v125, 128
  %v142 = vadd.s32 %v125, 136
  %v143 = vadd.s32 %v125, 144
  %v144 = vadd.s32 %v125, 152
  %v145 = vadd.s32 %v125, 160
  %v146 = vadd.s32 %v125, 168
  %v147 = vadd.s32 %v125, 176
  %v148 = vadd.s32 %v125, 184
  %v149 = vadd.s32 %v125, 192
  %v150 = vadd.s32 %v125, 200
  %v151 = vadd.s32 %v125, 208
  %v152 = vadd.s32 %v125, 216
  %v153 = vadd.s32 %v125, 224
  %v154 = vadd.s32 %v125, 232
  %v155 = vadd.s32 %v125, 240
  %v156 = vadd.s32 %v125, 248
  %v157 = vstv %s123
  %v158 = vadd.s32 %v157, %v125
  %v159 = vadd.s32 %v157, %v126
  %v160 = vadd.s32 %v157, %v127
  %v161 = vadd.s32 %v157, %v128
  %v162 = vadd.s32 %v157, %v129
  %v163 = vadd.s32 %v157, %v130
  %v164 = vadd.s32 %v157, %v131
  %v165 = vadd.s32 %v157, %v132
  %v166 = vadd.s32 %v157, %v133
  %v167 = vadd.s32 %v157, %v134
  %v168 = vadd.s32 %v157, %v135
  %v169 = vadd.s32 %v157, %v136
  %v170 = vadd.s32 %v157, %v137
  %v171 = vadd.s32 %v157, %v138
  %v172 = vadd.s32 %v157, %v139
  %v173 = vadd.s32 %v157, %v140
  %v174 = vadd.s32 %v157, %v141
  %v175 = vadd.s32 %v157, %v142
  %v176 = vadd.s32 %v157, %v143
  %v177 = vadd.s32 %v157, %v144
  %v178 = vadd.s32 %v157, %v145
  %v179 = vadd.s32 %v157, %v146
  %v180 = vadd.s32 %v157, %v147
  %v181 = vadd.s32 %v157, %v148
  %v182 = vadd.s32 %v157, %v149
  %v183 = vadd.s32 %v157, %v150
  %v184 = vadd.s32 %v157, %v151
  %v185 = vadd.s32 %v157, %v152
  %v186 = vadd.s32 %v157, %v153
  %v187 = vadd.s32 %v157, %v154
  %v188 = vadd.s32 %v157, %v155
  %v189 = vadd.s32 %v157, %v156
  %vm190 = vcmp.lt.s32.totalorder %v158, 16
  %vm191 = vcmp.lt.s32.totalorder %v159, 16
  %vm192 = vcmp.lt.s32.totalorder %v160, 16
  %vm193 = vcmp.lt.s32.totalorder %v161, 16
  %vm194 = vcmp.lt.s32.totalorder %v162, 16
  %vm195 = vcmp.lt.s32.totalorder %v163, 16
  %vm196 = vcmp.lt.s32.totalorder %v164, 16
  %vm197 = vcmp.lt.s32.totalorder %v165, 16
  %vm198 = vcmp.lt.s32.totalorder %v166, 16
  %vm199 = vcmp.lt.s32.totalorder %v167, 16
  %vm200 = vcmp.lt.s32.totalorder %v168, 16
  %vm201 = vcmp.lt.s32.totalorder %v169, 16
  %vm202 = vcmp.lt.s32.totalorder %v170, 16
  %vm203 = vcmp.lt.s32.totalorder %v171, 16
  %vm204 = vcmp.lt.s32.totalorder %v172, 16
  %vm205 = vcmp.lt.s32.totalorder %v173, 16
  %vm206 = vcmp.lt.s32.totalorder %v174, 16
  %vm207 = vcmp.lt.s32.totalorder %v175, 16
  %vm208 = vcmp.lt.s32.totalorder %v176, 16
  %vm209 = vcmp.lt.s32.totalorder %v177, 16
  %vm210 = vcmp.lt.s32.totalorder %v178, 16
  %vm211 = vcmp.lt.s32.totalorder %v179, 16
  %vm212 = vcmp.lt.s32.totalorder %v180, 16
  %vm213 = vcmp.lt.s32.totalorder %v181, 16
  %vm214 = vcmp.lt.s32.totalorder %v182, 16
  %vm215 = vcmp.lt.s32.totalorder %v183, 16
  %vm216 = vcmp.lt.s32.totalorder %v184, 16
  %vm217 = vcmp.lt.s32.totalorder %v185, 16
  %vm218 = vcmp.lt.s32.totalorder %v186, 16
  %vm219 = vcmp.lt.s32.totalorder %v187, 16
  %vm220 = vcmp.lt.s32.totalorder %v188, 16
  %vm221 = vcmp.lt.s32.totalorder %v189, 16
  %v222 = vsel %vm190, 1, 0
  %v223 = vsel %vm191, 1, 0
  %v224 = vsel %vm192, 1, 0
  %v225 = vsel %vm193, 1, 0
  %v226 = vsel %vm194, 1, 0
  %v227 = vsel %vm195, 1, 0
  %v228 = vsel %vm196, 1, 0
  %v229 = vsel %vm197, 1, 0
  %v230 = vsel %vm198, 1, 0
  %v231 = vsel %vm199, 1, 0
  %v232 = vsel %vm200, 1, 0
  %v233 = vsel %vm201, 1, 0
  %v234 = vsel %vm202, 1, 0
  %v235 = vsel %vm203, 1, 0
  %v236 = vsel %vm204, 1, 0
  %v237 = vsel %vm205, 1, 0
  %v238 = vsel %vm206, 1, 0
  %v239 = vsel %vm207, 1, 0
  %v240 = vsel %vm208, 1, 0
  %v241 = vsel %vm209, 1, 0
  %v242 = vsel %vm210, 1, 0
  %v243 = vsel %vm211, 1, 0
  %v244 = vsel %vm212, 1, 0
  %v245 = vsel %vm213, 1, 0
  %v246 = vsel %vm214, 1, 0
  %v247 = vsel %vm215, 1, 0
  %v248 = vsel %vm216, 1, 0
  %v249 = vsel %vm217, 1, 0
  %v250 = vsel %vm218, 1, 0
  %v251 = vsel %vm219, 1, 0
  %v252 = vsel %vm220, 1, 0
  %v253 = vsel %vm221, 1, 0
  %vm254 = vcmp.eq.s32.totalorder %v222, 1
  %vm255 = vcmp.eq.s32.totalorder %v223, 1
  %vm256 = vcmp.eq.s32.totalorder %v224, 1
  %vm257 = vcmp.eq.s32.totalorder %v225, 1
  %vm258 = vcmp.eq.s32.totalorder %v226, 1
  %vm259 = vcmp.eq.s32.totalorder %v227, 1
  %vm260 = vcmp.eq.s32.totalorder %v228, 1
  %vm261 = vcmp.eq.s32.totalorder %v229, 1
  %vm262 = vcmp.eq.s32.totalorder %v230, 1
  %vm263 = vcmp.eq.s32.totalorder %v231, 1
  %vm264 = vcmp.eq.s32.totalorder %v232, 1
  %vm265 = vcmp.eq.s32.totalorder %v233, 1
  %vm266 = vcmp.eq.s32.totalorder %v234, 1
  %vm267 = vcmp.eq.s32.totalorder %v235, 1
  %vm268 = vcmp.eq.s32.totalorder %v236, 1
  %vm269 = vcmp.eq.s32.totalorder %v237, 1
  %vm270 = vcmp.eq.s32.totalorder %v238, 1
  %vm271 = vcmp.eq.s32.totalorder %v239, 1
  %vm272 = vcmp.eq.s32.totalorder %v240, 1
  %vm273 = vcmp.eq.s32.totalorder %v241, 1
  %vm274 = vcmp.eq.s32.totalorder %v242, 1
  %vm275 = vcmp.eq.s32.totalorder %v243, 1
  %vm276 = vcmp.eq.s32.totalorder %v244, 1
  %vm277 = vcmp.eq.s32.totalorder %v245, 1
  %vm278 = vcmp.eq.s32.totalorder %v246, 1
  %vm279 = vcmp.eq.s32.totalorder %v247, 1
  %vm280 = vcmp.eq.s32.totalorder %v248, 1
  %vm281 = vcmp.eq.s32.totalorder %v249, 1
  %vm282 = vcmp.eq.s32.totalorder %v250, 1
  %vm283 = vcmp.eq.s32.totalorder %v251, 1
  %vm284 = vcmp.eq.s32.totalorder %v252, 1
  %vm285 = vcmp.eq.s32.totalorder %v253, 1
  %v286 = vsel %vm254, %v91, 0.0
  %v287 = vsel %vm255, %v92, 0.0
  %v288 = vsel %vm256, %v93, 0.0
  %v289 = vsel %vm257, %v94, 0.0
  %v290 = vsel %vm258, %v95, 0.0
  %v291 = vsel %vm259, %v96, 0.0
  %v292 = vsel %vm260, %v97, 0.0
  %v293 = vsel %vm261, %v98, 0.0
  %v294 = vsel %vm262, %v99, 0.0
  %v295 = vsel %vm263, %v100, 0.0
  %v296 = vsel %vm264, %v101, 0.0
  %v297 = vsel %vm265, %v102, 0.0
  %v298 = vsel %vm266, %v103, 0.0
  %v299 = vsel %vm267, %v104, 0.0
  %v300 = vsel %vm268, %v105, 0.0
  %v301 = vsel %vm269, %v106, 0.0
  %v302 = vsel %vm270, %v107, 0.0
  %v303 = vsel %vm271, %v108, 0.0
  %v304 = vsel %vm272, %v109, 0.0
  %v305 = vsel %vm273, %v110, 0.0
  %v306 = vsel %vm274, %v111, 0.0
  %v307 = vsel %vm275, %v112, 0.0
  %v308 = vsel %vm276, %v113, 0.0
  %v309 = vsel %vm277, %v114, 0.0
  %v310 = vsel %vm278, %v115, 0.0
  %v311 = vsel %vm279, %v116, 0.0
  %v312 = vsel %vm280, %v117, 0.0
  %v313 = vsel %vm281, %v118, 0.0
  %v314 = vsel %vm282, %v119, 0.0
  %v315 = vsel %vm283, %v120, 0.0
  %v316 = vsel %vm284, %v121, 0.0
  %v317 = vsel %vm285, %v122, 0.0
  %v318 = vpack.c.bf16 %v287, %v286
  %v319 = vpack.c.bf16 %v289, %v288
  %v320 = vpack.c.bf16 %v291, %v290
  %v321 = vpack.c.bf16 %v293, %v292
  %v322 = vpack.c.bf16 %v295, %v294
  %v323 = vpack.c.bf16 %v297, %v296
  %v324 = vpack.c.bf16 %v299, %v298
  %v325 = vpack.c.bf16 %v301, %v300
  %v326 = vpack.c.bf16 %v303, %v302
  %v327 = vpack.c.bf16 %v305, %v304
  %v328 = vpack.c.bf16 %v307, %v306
  %v329 = vpack.c.bf16 %v309, %v308
  %v330 = vpack.c.bf16 %v311, %v310
  %v331 = vpack.c.bf16 %v313, %v312
  %v332 = vpack.c.bf16 %v315, %v314
  %v333 = vpack.c.bf16 %v317, %v316
  %v334 = vld [vmem:[%s3] sm:$0xff]
  %v335 = vld [vmem:[%s3 + $0x8] sm:$0xff]
  %v336 = vld [vmem:[%s3 + $0x10] sm:$0xff]
  %v337 = vld [vmem:[%s3 + $0x18] sm:$0xff]
  %v338 = vld [vmem:[%s3 + $0x20] sm:$0xff]
  %v339 = vld [vmem:[%s3 + $0x28] sm:$0xff]
  %v340 = vld [vmem:[%s3 + $0x30] sm:$0xff]
  %v341 = vld [vmem:[%s3 + $0x38] sm:$0xff]
  %v342 = vld [vmem:[%s3 + $0x40] sm:$0xff]
  %v343 = vld [vmem:[%s3 + $0x48] sm:$0xff]
  %v344 = vld [vmem:[%s3 + $0x50] sm:$0xff]
  %v345 = vld [vmem:[%s3 + $0x58] sm:$0xff]
  %v346 = vld [vmem:[%s3 + $0x60] sm:$0xff]
  %v347 = vld [vmem:[%s3 + $0x68] sm:$0xff]
  %v348 = vld [vmem:[%s3 + $0x70] sm:$0xff]
  %v349 = vld [vmem:[%s3 + $0x78] sm:$0xff]
  %v366 = vunpack.c.l.b16 %v334
  %v367 = vunpack.c.h.b16 %v334
  %v368 = vunpack.c.l.b16 %v335
  %v369 = vunpack.c.h.b16 %v335
  %v370 = vunpack.c.l.b16 %v336
  %v371 = vunpack.c.h.b16 %v336
  %v372 = vunpack.c.l.b16 %v337
  %v373 = vunpack.c.h.b16 %v337
  %v374 = vunpack.c.l.b16 %v338
  %v375 = vunpack.c.h.b16 %v338
  %v376 = vunpack.c.l.b16 %v339
  %v377 = vunpack.c.h.b16 %v339
  %v378 = vunpack.c.l.b16 %v340
  %v379 = vunpack.c.h.b16 %v340
  %v380 = vunpack.c.l.b16 %v341
  %v381 = vunpack.c.h.b16 %v341
  %v382 = vunpack.c.l.b16 %v342
  %v383 = vunpack.c.h.b16 %v342
  %v384 = vunpack.c.l.b16 %v343
  %v385 = vunpack.c.h.b16 %v343
  %v386 = vunpack.c.l.b16 %v344
  %v387 = vunpack.c.h.b16 %v344
  %v388 = vunpack.c.l.b16 %v345
  %v389 = vunpack.c.h.b16 %v345
  %v390 = vunpack.c.l.b16 %v346
  %v391 = vunpack.c.h.b16 %v346
  %v392 = vunpack.c.l.b16 %v347
  %v393 = vunpack.c.h.b16 %v347
  %v394 = vunpack.c.l.b16 %v348
  %v395 = vunpack.c.h.b16 %v348
  %v396 = vunpack.c.l.b16 %v349
  %v397 = vunpack.c.h.b16 %v349
  %v398 = vpack.c.b16 %v368, %v366
  %v399 = vpack.c.b16 %v369, %v367
  %v400 = vpack.c.b16 %v372, %v370
  %v401 = vpack.c.b16 %v373, %v371
  %v402 = vpack.c.b16 %v376, %v374
  %v403 = vpack.c.b16 %v377, %v375
  %v404 = vpack.c.b16 %v380, %v378
  %v405 = vpack.c.b16 %v381, %v379
  %v406 = vpack.c.b16 %v384, %v382
  %v407 = vpack.c.b16 %v385, %v383
  %v408 = vpack.c.b16 %v388, %v386
  %v409 = vpack.c.b16 %v389, %v387
  %v410 = vpack.c.b16 %v392, %v390
  %v411 = vpack.c.b16 %v393, %v391
  %v412 = vpack.c.b16 %v396, %v394
  %v413 = vpack.c.b16 %v397, %v395
  %430 = vmatpush.bf16.msra.mxu0 %v412
  %431 = vmatpush.bf16.msra.mxu0 %v410
  %432 = vmatpush.bf16.msra.mxu0 %v408
  %433 = vmatpush.bf16.msra.mxu0 %v406
  %434 = vmatpush.bf16.msra.mxu0 %v404
  %435 = vmatpush.bf16.msra.mxu0 %v402
  %436 = vmatpush.bf16.msra.mxu0 %v400
  %437 = vmatpush.bf16.msra.mxu0 %v398
  %438 = vmatmul.bf16.gmra.mxu0 %v318
  %v439 = vpop.f32.mrf.mxu0
  %v440 = vadd.f32 0.0, %v439
  %v441 = vpop.f32.mrf.mxu0
  %v442 = vadd.f32 0.0, %v441
  %443 = vmatmul.bf16.gmra.mxu0 %v319
  %v444 = vpop.f32.mrf.mxu0
  %v445 = vadd.f32 0.0, %v444
  %v446 = vpop.f32.mrf.mxu0
  %v447 = vadd.f32 0.0, %v446
  %448 = vmatmul.bf16.gmra.mxu0 %v320
  %v449 = vpop.f32.mrf.mxu0
  %v450 = vadd.f32 0.0, %v449
  %v451 = vpop.f32.mrf.mxu0
  %v452 = vadd.f32 0.0, %v451
  %453 = vmatmul.bf16.gmra.mxu0 %v321
  %v454 = vpop.f32.mrf.mxu0
  %v455 = vadd.f32 0.0, %v454
  %v456 = vpop.f32.mrf.mxu0
  %v457 = vadd.f32 0.0, %v456
  %458 = vmatmul.bf16.gmra.mxu0 %v322
  %v459 = vpop.f32.mrf.mxu0
  %v460 = vadd.f32 0.0, %v459
  %v461 = vpop.f32.mrf.mxu0
  %v462 = vadd.f32 0.0, %v461
  %463 = vmatmul.bf16.gmra.mxu0 %v323
  %v464 = vpop.f32.mrf.mxu0
  %v465 = vadd.f32 0.0, %v464
  %v466 = vpop.f32.mrf.mxu0
  %v467 = vadd.f32 0.0, %v466
  %468 = vmatmul.bf16.gmra.mxu0 %v324
  %v469 = vpop.f32.mrf.mxu0
  %v470 = vadd.f32 0.0, %v469
  %v471 = vpop.f32.mrf.mxu0
  %v472 = vadd.f32 0.0, %v471
  %473 = vmatmul.bf16.gmra.mxu0 %v325
  %v474 = vpop.f32.mrf.mxu0
  %v475 = vadd.f32 0.0, %v474
  %v476 = vpop.f32.mrf.mxu0
  %v477 = vadd.f32 0.0, %v476
  %478 = vmatmul.bf16.gmra.mxu0 %v326
  %v479 = vpop.f32.mrf.mxu0
  %v480 = vadd.f32 0.0, %v479
  %v481 = vpop.f32.mrf.mxu0
  %v482 = vadd.f32 0.0, %v481
  %483 = vmatmul.bf16.gmra.mxu0 %v327
  %v484 = vpop.f32.mrf.mxu0
  %v485 = vadd.f32 0.0, %v484
  %v486 = vpop.f32.mrf.mxu0
  %v487 = vadd.f32 0.0, %v486
  %488 = vmatmul.bf16.gmra.mxu0 %v328
  %v489 = vpop.f32.mrf.mxu0
  %v490 = vadd.f32 0.0, %v489
  %v491 = vpop.f32.mrf.mxu0
  %v492 = vadd.f32 0.0, %v491
  %493 = vmatmul.bf16.gmra.mxu0 %v329
  %v494 = vpop.f32.mrf.mxu0
  %v495 = vadd.f32 0.0, %v494
  %v496 = vpop.f32.mrf.mxu0
  %v497 = vadd.f32 0.0, %v496
  %498 = vmatmul.bf16.gmra.mxu0 %v330
  %v499 = vpop.f32.mrf.mxu0
  %v500 = vadd.f32 0.0, %v499
  %v501 = vpop.f32.mrf.mxu0
  %v502 = vadd.f32 0.0, %v501
  %503 = vmatmul.bf16.gmra.mxu0 %v331
  %v504 = vpop.f32.mrf.mxu0
  %v505 = vadd.f32 0.0, %v504
  %v506 = vpop.f32.mrf.mxu0
  %v507 = vadd.f32 0.0, %v506
  %508 = vmatmul.bf16.gmra.mxu0 %v332
  %v509 = vpop.f32.mrf.mxu0
  %v510 = vadd.f32 0.0, %v509
  %v511 = vpop.f32.mrf.mxu0
  %v512 = vadd.f32 0.0, %v511
  %513 = vmatmul.bf16.gmra.mxu0 %v333
  %v514 = vpop.f32.mrf.mxu0
  %v515 = vadd.f32 0.0, %v514
  %v516 = vpop.f32.mrf.mxu0
  %v517 = vadd.f32 0.0, %v516
  %518 = vdwg.mxu0
  %519 = vmatpush.bf16.msra.mxu0 %v413
  %520 = vmatpush.bf16.msra.mxu0 %v411
  %521 = vmatpush.bf16.msra.mxu0 %v409
  %522 = vmatpush.bf16.msra.mxu0 %v407
  %523 = vmatpush.bf16.msra.mxu0 %v405
  %524 = vmatpush.bf16.msra.mxu0 %v403
  %525 = vmatpush.bf16.msra.mxu0 %v401
  %526 = vmatpush.bf16.msra.mxu0 %v399
  %527 = vmatmul.bf16.gmra.mxu0 %v318
  %v528 = vpop.f32.mrf.mxu0
  %v529 = vadd.f32 0.0, %v528
  %v530 = vpop.f32.mrf.mxu0
  %v531 = vadd.f32 0.0, %v530
  %532 = vmatmul.bf16.gmra.mxu0 %v319
  %v533 = vpop.f32.mrf.mxu0
  %v534 = vadd.f32 0.0, %v533
  %v535 = vpop.f32.mrf.mxu0
  %v536 = vadd.f32 0.0, %v535
  %537 = vmatmul.bf16.gmra.mxu0 %v320
  %v538 = vpop.f32.mrf.mxu0
  %v539 = vadd.f32 0.0, %v538
  %v540 = vpop.f32.mrf.mxu0
  %v541 = vadd.f32 0.0, %v540
  %542 = vmatmul.bf16.gmra.mxu0 %v321
  %v543 = vpop.f32.mrf.mxu0
  %v544 = vadd.f32 0.0, %v543
  %v545 = vpop.f32.mrf.mxu0
  %v546 = vadd.f32 0.0, %v545
  %547 = vmatmul.bf16.gmra.mxu0 %v322
  %v548 = vpop.f32.mrf.mxu0
  %v549 = vadd.f32 0.0, %v548
  %v550 = vpop.f32.mrf.mxu0
  %v551 = vadd.f32 0.0, %v550
  %552 = vmatmul.bf16.gmra.mxu0 %v323
  %v553 = vpop.f32.mrf.mxu0
  %v554 = vadd.f32 0.0, %v553
  %v555 = vpop.f32.mrf.mxu0
  %v556 = vadd.f32 0.0, %v555
  %557 = vmatmul.bf16.gmra.mxu0 %v324
  %v558 = vpop.f32.mrf.mxu0
  %v559 = vadd.f32 0.0, %v558
  %v560 = vpop.f32.mrf.mxu0
  %v561 = vadd.f32 0.0, %v560
  %562 = vmatmul.bf16.gmra.mxu0 %v325
  %v563 = vpop.f32.mrf.mxu0
  %v564 = vadd.f32 0.0, %v563
  %v565 = vpop.f32.mrf.mxu0
  %v566 = vadd.f32 0.0, %v565
  %567 = vmatmul.bf16.gmra.mxu0 %v326
  %v568 = vpop.f32.mrf.mxu0
  %v569 = vadd.f32 0.0, %v568
  %v570 = vpop.f32.mrf.mxu0
  %v571 = vadd.f32 0.0, %v570
  %572 = vmatmul.bf16.gmra.mxu0 %v327
  %v573 = vpop.f32.mrf.mxu0
  %v574 = vadd.f32 0.0, %v573
  %v575 = vpop.f32.mrf.mxu0
  %v576 = vadd.f32 0.0, %v575
  %577 = vmatmul.bf16.gmra.mxu0 %v328
  %v578 = vpop.f32.mrf.mxu0
  %v579 = vadd.f32 0.0, %v578
  %v580 = vpop.f32.mrf.mxu0
  %v581 = vadd.f32 0.0, %v580
  %582 = vmatmul.bf16.gmra.mxu0 %v329
  %v583 = vpop.f32.mrf.mxu0
  %v584 = vadd.f32 0.0, %v583
  %v585 = vpop.f32.mrf.mxu0
  %v586 = vadd.f32 0.0, %v585
  %587 = vmatmul.bf16.gmra.mxu0 %v330
  %v588 = vpop.f32.mrf.mxu0
  %v589 = vadd.f32 0.0, %v588
  %v590 = vpop.f32.mrf.mxu0
  %v591 = vadd.f32 0.0, %v590
  %592 = vmatmul.bf16.gmra.mxu0 %v331
  %v593 = vpop.f32.mrf.mxu0
  %v594 = vadd.f32 0.0, %v593
  %v595 = vpop.f32.mrf.mxu0
  %v596 = vadd.f32 0.0, %v595
  %597 = vmatmul.bf16.gmra.mxu0 %v332
  %v598 = vpop.f32.mrf.mxu0
  %v599 = vadd.f32 0.0, %v598
  %v600 = vpop.f32.mrf.mxu0
  %v601 = vadd.f32 0.0, %v600
  %602 = vmatmul.bf16.gmra.mxu0 %v333
  %v603 = vpop.f32.mrf.mxu0
  %v604 = vadd.f32 0.0, %v603
  %v605 = vpop.f32.mrf.mxu0
  %v606 = vadd.f32 0.0, %v605
  %607 = vdwg.mxu0
  %v608 = vpack.c.bf16 %v529, %v440
  %v609 = vpack.c.bf16 %v531, %v442
  %v610 = vpack.c.bf16 %v534, %v445
  %v611 = vpack.c.bf16 %v536, %v447
  %v612 = vpack.c.bf16 %v539, %v450
  %v613 = vpack.c.bf16 %v541, %v452
  %v614 = vpack.c.bf16 %v544, %v455
  %v615 = vpack.c.bf16 %v546, %v457
  %v616 = vpack.c.bf16 %v549, %v460
  %v617 = vpack.c.bf16 %v551, %v462
  %v618 = vpack.c.bf16 %v554, %v465
  %v619 = vpack.c.bf16 %v556, %v467
  %v620 = vpack.c.bf16 %v559, %v470
  %v621 = vpack.c.bf16 %v561, %v472
  %v622 = vpack.c.bf16 %v564, %v475
  %v623 = vpack.c.bf16 %v566, %v477
  %v624 = vpack.c.bf16 %v569, %v480
  %v625 = vpack.c.bf16 %v571, %v482
  %v626 = vpack.c.bf16 %v574, %v485
  %v627 = vpack.c.bf16 %v576, %v487
  %v628 = vpack.c.bf16 %v579, %v490
  %v629 = vpack.c.bf16 %v581, %v492
  %v630 = vpack.c.bf16 %v584, %v495
  %v631 = vpack.c.bf16 %v586, %v497
  %v632 = vpack.c.bf16 %v589, %v500
  %v633 = vpack.c.bf16 %v591, %v502
  %v634 = vpack.c.bf16 %v594, %v505
  %v635 = vpack.c.bf16 %v596, %v507
  %v636 = vpack.c.bf16 %v599, %v510
  %v637 = vpack.c.bf16 %v601, %v512
  %v638 = vpack.c.bf16 %v604, %v515
  %v639 = vpack.c.bf16 %v606, %v517
  %640 = vst [vmem:[%s4] sm:$0xff] %v608
  %641 = vst [vmem:[%s4 + $0x8] sm:$0xff] %v609
  %642 = vst [vmem:[%s4 + $0x10] sm:$0xff] %v610
  %643 = vst [vmem:[%s4 + $0x18] sm:$0xff] %v611
  %644 = vst [vmem:[%s4 + $0x20] sm:$0xff] %v612
  %645 = vst [vmem:[%s4 + $0x28] sm:$0xff] %v613
  %646 = vst [vmem:[%s4 + $0x30] sm:$0xff] %v614
  %647 = vst [vmem:[%s4 + $0x38] sm:$0xff] %v615
  %648 = vst [vmem:[%s4 + $0x40] sm:$0xff] %v616
  %649 = vst [vmem:[%s4 + $0x48] sm:$0xff] %v617
  %650 = vst [vmem:[%s4 + $0x50] sm:$0xff] %v618
  %651 = vst [vmem:[%s4 + $0x58] sm:$0xff] %v619
  %652 = vst [vmem:[%s4 + $0x60] sm:$0xff] %v620
  %653 = vst [vmem:[%s4 + $0x68] sm:$0xff] %v621
  %654 = vst [vmem:[%s4 + $0x70] sm:$0xff] %v622
  %655 = vst [vmem:[%s4 + $0x78] sm:$0xff] %v623
  %656 = vst [vmem:[%s4 + $0x80] sm:$0xff] %v624
  %657 = vst [vmem:[%s4 + $0x88] sm:$0xff] %v625
  %658 = vst [vmem:[%s4 + $0x90] sm:$0xff] %v626
  %659 = vst [vmem:[%s4 + $0x98] sm:$0xff] %v627
  %660 = vst [vmem:[%s4 + $0xa0] sm:$0xff] %v628
  %661 = vst [vmem:[%s4 + $0xa8] sm:$0xff] %v629
  %662 = vst [vmem:[%s4 + $0xb0] sm:$0xff] %v630
  %663 = vst [vmem:[%s4 + $0xb8] sm:$0xff] %v631
  %664 = vst [vmem:[%s4 + $0xc0] sm:$0xff] %v632
  %665 = vst [vmem:[%s4 + $0xc8] sm:$0xff] %v633
  %666 = vst [vmem:[%s4 + $0xd0] sm:$0xff] %v634
  %667 = vst [vmem:[%s4 + $0xd8] sm:$0xff] %v635
  %668 = vst [vmem:[%s4 + $0xe0] sm:$0xff] %v636
  %669 = vst [vmem:[%s4 + $0xe8] sm:$0xff] %v637
  %670 = vst [vmem:[%s4 + $0xf0] sm:$0xff] %v638
  %671 = vst [vmem:[%s4 + $0xf8] sm:$0xff] %v639
  %v672 = vadd.f32 %v440, %v442
  %v673 = vadd.f32 %v672, %v445
  %v674 = vadd.f32 %v673, %v447
  %v675 = vadd.f32 %v674, %v450
  %v676 = vadd.f32 %v675, %v452
  %v677 = vadd.f32 %v676, %v455
  %v678 = vadd.f32 %v677, %v457
  %v679 = vadd.f32 %v678, %v460
  %v680 = vadd.f32 %v679, %v462
  %v681 = vadd.f32 %v680, %v465
  %v682 = vadd.f32 %v681, %v467
  %v683 = vadd.f32 %v682, %v470
  %v684 = vadd.f32 %v683, %v472
  %v685 = vadd.f32 %v684, %v475
  %v686 = vadd.f32 %v685, %v477
  %v687 = vadd.f32 %v686, %v480
  %v688 = vadd.f32 %v687, %v482
  %v689 = vadd.f32 %v688, %v485
  %v690 = vadd.f32 %v689, %v487
  %v691 = vadd.f32 %v690, %v490
  %v692 = vadd.f32 %v691, %v492
  %v693 = vadd.f32 %v692, %v495
  %v694 = vadd.f32 %v693, %v497
  %v695 = vadd.f32 %v694, %v500
  %v696 = vadd.f32 %v695, %v502
  %v697 = vadd.f32 %v696, %v505
  %v698 = vadd.f32 %v697, %v507
  %v699 = vadd.f32 %v698, %v510
  %v700 = vadd.f32 %v699, %v512
  %v701 = vadd.f32 %v700, %v515
  %v702 = vadd.f32 %v701, %v517
  %v703 = vrot.slane %v702, 4
  %v704 = vadd.f32 %v702, %v703
  %v705 = vrot.slane %v704, 2
  %v706 = vadd.f32 %v704, %v705
  %v707 = vrot.slane %v706, 1
  %v708 = vadd.f32 %v706, %v707
  %v709 = vmul.f32 %v440, %v440
  %v710 = vmul.f32 %v442, %v442
  %v711 = vmul.f32 %v445, %v445
  %v712 = vmul.f32 %v447, %v447
  %v713 = vmul.f32 %v450, %v450
  %v714 = vmul.f32 %v452, %v452
  %v715 = vmul.f32 %v455, %v455
  %v716 = vmul.f32 %v457, %v457
  %v717 = vmul.f32 %v460, %v460
  %v718 = vmul.f32 %v462, %v462
  %v719 = vmul.f32 %v465, %v465
  %v720 = vmul.f32 %v467, %v467
  %v721 = vmul.f32 %v470, %v470
  %v722 = vmul.f32 %v472, %v472
  %v723 = vmul.f32 %v475, %v475
  %v724 = vmul.f32 %v477, %v477
  %v725 = vmul.f32 %v480, %v480
  %v726 = vmul.f32 %v482, %v482
  %v727 = vmul.f32 %v485, %v485
  %v728 = vmul.f32 %v487, %v487
  %v729 = vmul.f32 %v490, %v490
  %v730 = vmul.f32 %v492, %v492
  %v731 = vmul.f32 %v495, %v495
  %v732 = vmul.f32 %v497, %v497
  %v733 = vmul.f32 %v500, %v500
  %v734 = vmul.f32 %v502, %v502
  %v735 = vmul.f32 %v505, %v505
  %v736 = vmul.f32 %v507, %v507
  %v737 = vmul.f32 %v510, %v510
  %v738 = vmul.f32 %v512, %v512
  %v739 = vmul.f32 %v515, %v515
  %v740 = vmul.f32 %v517, %v517
  %v741 = vadd.f32 %v709, %v710
  %v742 = vadd.f32 %v741, %v711
  %v743 = vadd.f32 %v742, %v712
  %v744 = vadd.f32 %v743, %v713
  %v745 = vadd.f32 %v744, %v714
  %v746 = vadd.f32 %v745, %v715
  %v747 = vadd.f32 %v746, %v716
  %v748 = vadd.f32 %v747, %v717
  %v749 = vadd.f32 %v748, %v718
  %v750 = vadd.f32 %v749, %v719
  %v751 = vadd.f32 %v750, %v720
  %v752 = vadd.f32 %v751, %v721
  %v753 = vadd.f32 %v752, %v722
  %v754 = vadd.f32 %v753, %v723
  %v755 = vadd.f32 %v754, %v724
  %v756 = vadd.f32 %v755, %v725
  %v757 = vadd.f32 %v756, %v726
  %v758 = vadd.f32 %v757, %v727
  %v759 = vadd.f32 %v758, %v728
  %v760 = vadd.f32 %v759, %v729
  %v761 = vadd.f32 %v760, %v730
  %v762 = vadd.f32 %v761, %v731
  %v763 = vadd.f32 %v762, %v732
  %v764 = vadd.f32 %v763, %v733
  %v765 = vadd.f32 %v764, %v734
  %v766 = vadd.f32 %v765, %v735
  %v767 = vadd.f32 %v766, %v736
  %v768 = vadd.f32 %v767, %v737
  %v769 = vadd.f32 %v768, %v738
  %v770 = vadd.f32 %v769, %v739
  %v771 = vadd.f32 %v770, %v740
  %v772 = vrot.slane %v771, 4
  %v773 = vadd.f32 %v771, %v772
  %v774 = vrot.slane %v773, 2
  %v775 = vadd.f32 %v773, %v774
  %v776 = vrot.slane %v775, 1
  %v777 = vadd.f32 %v775, %v776
  %vm778 = vcmask 1040384
  %v779 = vsel %vm778, %v708, %v777
  %780 = vst [vmem:[%s5] sm:$0x3] %v779
  // Predicated region
  $region18: #{_lambda_.8} parent=0 // pred_check
    _
  $region19: #{_lambda_.8} parent=0 // pred_check_branch
    %782 = sbr.rel (0) target = $region21
  $region20: #{_lambda_.8} parent=0 // pred_region
    _
  $region21: #{_lambda_.8} parent=0 // pred_fallthru
    _
  // Predicated region
  $region22: #{_lambda_.8} parent=0 // pred_check
    _
  $region23: #{_lambda_.8} parent=0 // pred_check_branch
    %784 = sbr.rel (0) target = $region25
  $region24: #{_lambda_.8} parent=0 // pred_region
    _
  $region25: #{_lambda_.8} parent=0 // pred_fallthru
    _
  // Predicated region
  $region26: #{_lambda_.8} parent=0 // pred_check
    _
  $region27: #{_lambda_.8} parent=0 // pred_check_branch
    %786 = sbr.rel (0) target = $region29
  $region28: #{_lambda_.8} parent=0 // pred_region
    _
  $region29: #{_lambda_.8} parent=0 // pred_fallthru
    _
  // Predicated region
  $region30: #{_lambda_.8} parent=0 // pred_check
    _
  $region31: #{_lambda_.8} parent=0 // pred_check_branch
    %788 = sbr.rel (0) target = $region33
  $region32: #{_lambda_.8} parent=0 // pred_region
    _
  $region33: #{_lambda_.8} parent=0 // pred_fallthru
    _

// kernel: _lambda_.10
$region0: #{_lambda_.10}
  #allocation0 [shape = 'u32[]', space=smem, size = 0x4, offset = 0x4, fixed_abs, tag = 'smem constant byte address 0x4 - core index']
  #allocation1 [shape = 'u32[72,128]{1,0:T(1,128)}', space=vmem, size = 0x9000, scoped, tag = 'internal scratch']
  #allocation2 [shape = 'f32[256,128]{1,0:T(8,128)}', space=vmem, size = 0x20000, scoped, tag = 'scratch operand']
  %s0 = inlined_call_operand.vmem [shape: bf16[256,256], index: 0, kind: input, shape index: {}]
  %s1 = inlined_call_operand.vmem [shape: bf16[256,128], index: 1, kind: input, shape index: {}]
  %s2 = inlined_call_operand.vmem [shape: bf16[256,256], index: 2, kind: input, shape index: {}]
  %s3 = inlined_call_operand.vmem [shape: bf16[256,128], index: 3, kind: output, shape index: {0}]
  %s4 = inlined_call_operand.vmem [shape: f32[1,2,128], index: 4, kind: output, shape index: {1}]
  %5 = xla_tuple %s3, %s4
  %s6 = sld [smem:[#allocation0]]
  $region79: #{_lambda_.10} parent=0
    _
  %s8 = ssub.s32 1, %s6
  %s9 = scalar_select 0, %s8, %s6
  $region1: #{_lambda_.10} parent=0
    #allocation3 [shape = 'u8[65536]{0}', space=vmem, size = 0x10000, scoped, tag = 'input window, operand 2, single buffered']
    // Predicated region
    $region2: #{_lambda_.10} parent=1 // pred_check
      _
    $region3: #{_lambda_.10} parent=1 // pred_check_branch
      %11 = sbr.rel (0) target = $region5
    $region4: #{_lambda_.10} parent=1 // pred_region
      _
    $region5: #{_lambda_.10} parent=1 // pred_fallthru
      _
    // Predicated region
    $region6: #{_lambda_.10} parent=1 // pred_check
      _
    $region7: #{_lambda_.10} parent=1 // pred_check_branch
      %13 = sbr.rel (0) target = $region9
    $region8: #{_lambda_.10} parent=1 // pred_region
      _
    $region9: #{_lambda_.10} parent=1 // pred_fallthru
      _
    // Predicated region
    $region10: #{_lambda_.10} parent=1 // pred_check
      _
    $region11: #{_lambda_.10} parent=1 // pred_check_branch
      %15 = sbr.rel (0) target = $region13
    $region12: #{_lambda_.10} parent=1 // pred_region
      %s16 = scalar_lea.vmem %s2, 4
      // Predicated region
      $region14: #{_lambda_.10} parent=12 // pred_check
        _
      $region15: #{_lambda_.10} parent=12 // pred_check_branch
        %18 = sbr.rel (0) target = $region17
      $region16: #{_lambda_.10} parent=12 // pred_region
        // Predicated region
        $region18: #{_lambda_.10} parent=16 // pred_check
          _
        $region19: #{_lambda_.10} parent=16 // pred_check_branch
          %20 = sbr.rel target = $region21
        $region20: #{_lambda_.10} parent=16 // pred_region
          // Predicated region
          $region33: #{_lambda_.10} parent=20 // pred_check
            _
          $region34: #{_lambda_.10} parent=20 // pred_check_branch
            %98 = sbr.rel (0) target = $region36
          $region35: #{_lambda_.10} parent=20 // pred_region
            loop: start=0, step=1, limit=1
            $region37: #{_lambda_.10} parent=35 // loop_pre_header
              _
            $region38: #{_lambda_.10} parent=35 // loop_header
              %s100 = sphi 0, %s104
              %p101 = scmp.ge.s32.totalorder %s100, 1
              %s105 = sphi %s16, %s16
              %s106 = sphi [#allocation3], [#allocation3]
            $region39: #{_lambda_.10} parent=35 // loop_header_branch
              %103 = sbr.rel (%p101) target = $region43
            $region40: #{_lambda_.10} parent=35 // loop_body
              _
            $region41: #{_lambda_.10} parent=35 // loop_footer
              %s104 = sadd.s32 1, %s100
            $region42: #{_lambda_.10} parent=35 // loop_footer_branch
              %99 = sbr.rel target = $region38
            $region43: #{_lambda_.10} parent=35 // loop_exit
              _
            %s108 = ssub.s32 16, 1
            loop: start=0, step=1, limit=1
            $region44: #{_lambda_.10} parent=35 // loop_pre_header
              _
            $region45: #{_lambda_.10} parent=35 // loop_header
              %s110 = sphi 0, %s114
              %p111 = scmp.ge.s32.totalorder %s110, 1
              %s115 = sphi %s16, %s16
              %s116 = sphi [#allocation3], [#allocation3]
            $region46: #{_lambda_.10} parent=35 // loop_header_branch
              %113 = sbr.rel (%p111) target = $region50
            $region47: #{_lambda_.10} parent=35 // loop_body
              %v117 = vld [vmem:[%s115] sm:%s108]
              %118 = vst [vmem:[%s116] sm:%s108] %v117
              %v119 = vld [vmem:[%s115 + $0x8] sm:%s108]
              %120 = vst [vmem:[%s116 + $0x4] sm:%s108] %v119
              %v121 = vld [vmem:[%s115 + $0x10] sm:%s108]
              %122 = vst [vmem:[%s116 + $0x8] sm:%s108] %v121
              %v123 = vld [vmem:[%s115 + $0x18] sm:%s108]
              %124 = vst [vmem:[%s116 + $0xc] sm:%s108] %v123
              %v125 = vld [vmem:[%s115 + $0x20] sm:%s108]
              %126 = vst [vmem:[%s116 + $0x10] sm:%s108] %v125
              %v127 = vld [vmem:[%s115 + $0x28] sm:%s108]
              %128 = vst [vmem:[%s116 + $0x14] sm:%s108] %v127
              %v129 = vld [vmem:[%s115 + $0x30] sm:%s108]
              %130 = vst [vmem:[%s116 + $0x18] sm:%s108] %v129
              %v131 = vld [vmem:[%s115 + $0x38] sm:%s108]
              %132 = vst [vmem:[%s116 + $0x1c] sm:%s108] %v131
              %v133 = vld [vmem:[%s115 + $0x40] sm:%s108]
              %134 = vst [vmem:[%s116 + $0x20] sm:%s108] %v133
              %v135 = vld [vmem:[%s115 + $0x48] sm:%s108]
              %136 = vst [vmem:[%s116 + $0x24] sm:%s108] %v135
              %v137 = vld [vmem:[%s115 + $0x50] sm:%s108]
              %138 = vst [vmem:[%s116 + $0x28] sm:%s108] %v137
              %v139 = vld [vmem:[%s115 + $0x58] sm:%s108]
              %140 = vst [vmem:[%s116 + $0x2c] sm:%s108] %v139
              %v141 = vld [vmem:[%s115 + $0x60] sm:%s108]
              %142 = vst [vmem:[%s116 + $0x30] sm:%s108] %v141
              %v143 = vld [vmem:[%s115 + $0x68] sm:%s108]
              %144 = vst [vmem:[%s116 + $0x34] sm:%s108] %v143
              %v145 = vld [vmem:[%s115 + $0x70] sm:%s108]
              %146 = vst [vmem:[%s116 + $0x38] sm:%s108] %v145
              %v147 = vld [vmem:[%s115 + $0x78] sm:%s108]
              %148 = vst [vmem:[%s116 + $0x3c] sm:%s108] %v147
              %v149 = vld [vmem:[%s115 + $0x80] sm:%s108]
              %150 = vst [vmem:[%s116 + $0x40] sm:%s108] %v149
              %v151 = vld [vmem:[%s115 + $0x88] sm:%s108]
              %152 = vst [vmem:[%s116 + $0x44] sm:%s108] %v151
              %v153 = vld [vmem:[%s115 + $0x90] sm:%s108]
              %154 = vst [vmem:[%s116 + $0x48] sm:%s108] %v153
              %v155 = vld [vmem:[%s115 + $0x98] sm:%s108]
              %156 = vst [vmem:[%s116 + $0x4c] sm:%s108] %v155
              %v157 = vld [vmem:[%s115 + $0xa0] sm:%s108]
              %158 = vst [vmem:[%s116 + $0x50] sm:%s108] %v157
              %v159 = vld [vmem:[%s115 + $0xa8] sm:%s108]
              %160 = vst [vmem:[%s116 + $0x54] sm:%s108] %v159
              %v161 = vld [vmem:[%s115 + $0xb0] sm:%s108]
              %162 = vst [vmem:[%s116 + $0x58] sm:%s108] %v161
              %v163 = vld [vmem:[%s115 + $0xb8] sm:%s108]
              %164 = vst [vmem:[%s116 + $0x5c] sm:%s108] %v163
              %v165 = vld [vmem:[%s115 + $0xc0] sm:%s108]
              %166 = vst [vmem:[%s116 + $0x60] sm:%s108] %v165
              %v167 = vld [vmem:[%s115 + $0xc8] sm:%s108]
              %168 = vst [vmem:[%s116 + $0x64] sm:%s108] %v167
              %v169 = vld [vmem:[%s115 + $0xd0] sm:%s108]
              %170 = vst [vmem:[%s116 + $0x68] sm:%s108] %v169
              %v171 = vld [vmem:[%s115 + $0xd8] sm:%s108]
              %172 = vst [vmem:[%s116 + $0x6c] sm:%s108] %v171
              %v173 = vld [vmem:[%s115 + $0xe0] sm:%s108]
              %174 = vst [vmem:[%s116 + $0x70] sm:%s108] %v173
              %v175 = vld [vmem:[%s115 + $0xe8] sm:%s108]
              %176 = vst [vmem:[%s116 + $0x74] sm:%s108] %v175
              %v177 = vld [vmem:[%s115 + $0xf0] sm:%s108]
              %178 = vst [vmem:[%s116 + $0x78] sm:%s108] %v177
              %v179 = vld [vmem:[%s115 + $0xf8] sm:%s108]
              %180 = vst [vmem:[%s116 + $0x7c] sm:%s108] %v179
            $region48: #{_lambda_.10} parent=35 // loop_footer
              %s114 = sadd.s32 1, %s110
            $region49: #{_lambda_.10} parent=35 // loop_footer_branch
              %109 = sbr.rel target = $region45
            $region50: #{_lambda_.10} parent=35 // loop_exit
              _
          $region36: #{_lambda_.10} parent=20 // pred_fallthru
            _
        $region21: #{_lambda_.10} parent=16 // pred_fallthru
          _
        // Predicated region
        $region22: #{_lambda_.10} parent=16 // pred_check
          _
        $region23: #{_lambda_.10} parent=16 // pred_check_branch
          %22 = sbr.rel (0) target = $region25
        $region24: #{_lambda_.10} parent=16 // pred_region
          %s24 = ssub.s32 16, 1
          loop: start=0, step=1, limit=1
          $region26: #{_lambda_.10} parent=24 // loop_pre_header
            _
          $region27: #{_lambda_.10} parent=24 // loop_header
            %s26 = sphi 0, %s30
            %p27 = scmp.ge.s32.totalorder %s26, 1
            %s31 = sphi %s16, %s16
            %s32 = sphi [#allocation3], [#allocation3]
          $region28: #{_lambda_.10} parent=24 // loop_header_branch
            %29 = sbr.rel (%p27) target = $region32
          $region29: #{_lambda_.10} parent=24 // loop_body
            %v33 = vld [vmem:[%s31] sm:%s24]
            %34 = vst [vmem:[%s32] sm:%s24] %v33
            %v35 = vld [vmem:[%s31 + $0x8] sm:%s24]
            %36 = vst [vmem:[%s32 + $0x4] sm:%s24] %v35
            %v37 = vld [vmem:[%s31 + $0x10] sm:%s24]
            %38 = vst [vmem:[%s32 + $0x8] sm:%s24] %v37
            %v39 = vld [vmem:[%s31 + $0x18] sm:%s24]
            %40 = vst [vmem:[%s32 + $0xc] sm:%s24] %v39
            %v41 = vld [vmem:[%s31 + $0x20] sm:%s24]
            %42 = vst [vmem:[%s32 + $0x10] sm:%s24] %v41
            %v43 = vld [vmem:[%s31 + $0x28] sm:%s24]
            %44 = vst [vmem:[%s32 + $0x14] sm:%s24] %v43
            %v45 = vld [vmem:[%s31 + $0x30] sm:%s24]
            %46 = vst [vmem:[%s32 + $0x18] sm:%s24] %v45
            %v47 = vld [vmem:[%s31 + $0x38] sm:%s24]
            %48 = vst [vmem:[%s32 + $0x1c] sm:%s24] %v47
            %v49 = vld [vmem:[%s31 + $0x40] sm:%s24]
            %50 = vst [vmem:[%s32 + $0x20] sm:%s24] %v49
            %v51 = vld [vmem:[%s31 + $0x48] sm:%s24]
            %52 = vst [vmem:[%s32 + $0x24] sm:%s24] %v51
            %v53 = vld [vmem:[%s31 + $0x50] sm:%s24]
            %54 = vst [vmem:[%s32 + $0x28] sm:%s24] %v53
            %v55 = vld [vmem:[%s31 + $0x58] sm:%s24]
            %56 = vst [vmem:[%s32 + $0x2c] sm:%s24] %v55
            %v57 = vld [vmem:[%s31 + $0x60] sm:%s24]
            %58 = vst [vmem:[%s32 + $0x30] sm:%s24] %v57
            %v59 = vld [vmem:[%s31 + $0x68] sm:%s24]
            %60 = vst [vmem:[%s32 + $0x34] sm:%s24] %v59
            %v61 = vld [vmem:[%s31 + $0x70] sm:%s24]
            %62 = vst [vmem:[%s32 + $0x38] sm:%s24] %v61
            %v63 = vld [vmem:[%s31 + $0x78] sm:%s24]
            %64 = vst [vmem:[%s32 + $0x3c] sm:%s24] %v63
            %v65 = vld [vmem:[%s31 + $0x80] sm:%s24]
            %66 = vst [vmem:[%s32 + $0x40] sm:%s24] %v65
            %v67 = vld [vmem:[%s31 + $0x88] sm:%s24]
            %68 = vst [vmem:[%s32 + $0x44] sm:%s24] %v67
            %v69 = vld [vmem:[%s31 + $0x90] sm:%s24]
            %70 = vst [vmem:[%s32 + $0x48] sm:%s24] %v69
            %v71 = vld [vmem:[%s31 + $0x98] sm:%s24]
            %72 = vst [vmem:[%s32 + $0x4c] sm:%s24] %v71
            %v73 = vld [vmem:[%s31 + $0xa0] sm:%s24]
            %74 = vst [vmem:[%s32 + $0x50] sm:%s24] %v73
            %v75 = vld [vmem:[%s31 + $0xa8] sm:%s24]
            %76 = vst [vmem:[%s32 + $0x54] sm:%s24] %v75
            %v77 = vld [vmem:[%s31 + $0xb0] sm:%s24]
            %78 = vst [vmem:[%s32 + $0x58] sm:%s24] %v77
            %v79 = vld [vmem:[%s31 + $0xb8] sm:%s24]
            %80 = vst [vmem:[%s32 + $0x5c] sm:%s24] %v79
            %v81 = vld [vmem:[%s31 + $0xc0] sm:%s24]
            %82 = vst [vmem:[%s32 + $0x60] sm:%s24] %v81
            %v83 = vld [vmem:[%s31 + $0xc8] sm:%s24]
            %84 = vst [vmem:[%s32 + $0x64] sm:%s24] %v83
            %v85 = vld [vmem:[%s31 + $0xd0] sm:%s24]
            %86 = vst [vmem:[%s32 + $0x68] sm:%s24] %v85
            %v87 = vld [vmem:[%s31 + $0xd8] sm:%s24]
            %88 = vst [vmem:[%s32 + $0x6c] sm:%s24] %v87
            %v89 = vld [vmem:[%s31 + $0xe0] sm:%s24]
            %90 = vst [vmem:[%s32 + $0x70] sm:%s24] %v89
            %v91 = vld [vmem:[%s31 + $0xe8] sm:%s24]
            %92 = vst [vmem:[%s32 + $0x74] sm:%s24] %v91
            %v93 = vld [vmem:[%s31 + $0xf0] sm:%s24]
            %94 = vst [vmem:[%s32 + $0x78] sm:%s24] %v93
            %v95 = vld [vmem:[%s31 + $0xf8] sm:%s24]
            %96 = vst [vmem:[%s32 + $0x7c] sm:%s24] %v95
          $region30: #{_lambda_.10} parent=24 // loop_footer
            %s30 = sadd.s32 1, %s26
          $region31: #{_lambda_.10} parent=24 // loop_footer_branch
            %25 = sbr.rel target = $region27
          $region32: #{_lambda_.10} parent=24 // loop_exit
            _
        $region25: #{_lambda_.10} parent=16 // pred_fallthru
          _
      $region17: #{_lambda_.10} parent=12 // pred_fallthru
        _
      %181 = vnop
    $region13: #{_lambda_.10} parent=1 // pred_fallthru
      _
    // Predicated region
    $region51: #{_lambda_.10} parent=1 // pred_check
      _
    $region52: #{_lambda_.10} parent=1 // pred_check_branch
      %183 = sbr.rel (0) target = $region54
    $region53: #{_lambda_.10} parent=1 // pred_region
      _
    $region54: #{_lambda_.10} parent=1 // pred_fallthru
      _
    %p184 = scmp.eq.s32.totalorder 0, 0
    // Predicated region
    $region55: #{_lambda_.10} parent=1 // pred_check
      %p185 = pneg %p184
    $region56: #{_lambda_.10} parent=1 // pred_check_branch
      %187 = sbr.rel (%p185) target = $region58
    $region57: #{_lambda_.10} parent=1 // pred_region
      %188 = vst [vmem:[#allocation2] sm:$0xff] 0.0
      %189 = vst [vmem:[#allocation2 + $0x8] sm:$0xff] 0.0
      %190 = vst [vmem:[#allocation2 + $0x10] sm:$0xff] 0.0
      %191 = vst [vmem:[#allocation2 + $0x18] sm:$0xff] 0.0
      %192 = vst [vmem:[#allocation2 + $0x20] sm:$0xff] 0.0
      %193 = vst [vmem:[#allocation2 + $0x28] sm:$0xff] 0.0
      %194 = vst [vmem:[#allocation2 + $0x30] sm:$0xff] 0.0
      %195 = vst [vmem:[#allocation2 + $0x38] sm:$0xff] 0.0
      %196 = vst [vmem:[#allocation2 + $0x40] sm:$0xff] 0.0
      %197 = vst [vmem:[#allocation2 + $0x48] sm:$0xff] 0.0
      %198 = vst [vmem:[#allocation2 + $0x50] sm:$0xff] 0.0
      %199 = vst [vmem:[#allocation2 + $0x58] sm:$0xff] 0.0
      %200 = vst [vmem:[#allocation2 + $0x60] sm:$0xff] 0.0
      %201 = vst [vmem:[#allocation2 + $0x68] sm:$0xff] 0.0
      %202 = vst [vmem:[#allocation2 + $0x70] sm:$0xff] 0.0
      %203 = vst [vmem:[#allocation2 + $0x78] sm:$0xff] 0.0
      %204 = vst [vmem:[#allocation2 + $0x80] sm:$0xff] 0.0
      %205 = vst [vmem:[#allocation2 + $0x88] sm:$0xff] 0.0
      %206 = vst [vmem:[#allocation2 + $0x90] sm:$0xff] 0.0
      %207 = vst [vmem:[#allocation2 + $0x98] sm:$0xff] 0.0
      %208 = vst [vmem:[#allocation2 + $0xa0] sm:$0xff] 0.0
      %209 = vst [vmem:[#allocation2 + $0xa8] sm:$0xff] 0.0
      %210 = vst [vmem:[#allocation2 + $0xb0] sm:$0xff] 0.0
      %211 = vst [vmem:[#allocation2 + $0xb8] sm:$0xff] 0.0
      %212 = vst [vmem:[#allocation2 + $0xc0] sm:$0xff] 0.0
      %213 = vst [vmem:[#allocation2 + $0xc8] sm:$0xff] 0.0
      %214 = vst [vmem:[#allocation2 + $0xd0] sm:$0xff] 0.0
      %215 = vst [vmem:[#allocation2 + $0xd8] sm:$0xff] 0.0
      %216 = vst [vmem:[#allocation2 + $0xe0] sm:$0xff] 0.0
      %217 = vst [vmem:[#allocation2 + $0xe8] sm:$0xff] 0.0
      %218 = vst [vmem:[#allocation2 + $0xf0] sm:$0xff] 0.0
      %219 = vst [vmem:[#allocation2 + $0xf8] sm:$0xff] 0.0
    $region58: #{_lambda_.10} parent=1 // pred_fallthru
      _
    %s220 = smul.u32 0, 256
    %s221 = sshra.s32 %s220, 3
    %s222 = sand.u32 %s220, 7
    %s223 = smul.addr %s221, 4
    %s224 = scalar_lea.vmem %s1, %s223
    %v225 = vld [vmem:[%s224] sm:$0xf]
    %v226 = vld [vmem:[%s224 + $0x4] sm:$0xf]
    %v227 = vld [vmem:[%s224 + $0x8] sm:$0xf]
    %v228 = vld [vmem:[%s224 + $0xc] sm:$0xf]
    %v229 = vld [vmem:[%s224 + $0x10] sm:$0xf]
    %v230 = vld [vmem:[%s224 + $0x14] sm:$0xf]
    %v231 = vld [vmem:[%s224 + $0x18] sm:$0xf]
    %v232 = vld [vmem:[%s224 + $0x1c] sm:$0xf]
    %v233 = vld [vmem:[%s224 + $0x20] sm:$0xf]
    %v234 = vld [vmem:[%s224 + $0x24] sm:$0xf]
    %v235 = vld [vmem:[%s224 + $0x28] sm:$0xf]
    %v236 = vld [vmem:[%s224 + $0x2c] sm:$0xf]
    %v237 = vld [vmem:[%s224 + $0x30] sm:$0xf]
    %v238 = vld [vmem:[%s224 + $0x34] sm:$0xf]
    %v239 = vld [vmem:[%s224 + $0x38] sm:$0xf]
    %v240 = vld [vmem:[%s224 + $0x3c] sm:$0xf]
    %v241 = vld [vmem:[%s224 + $0x40] sm:$0xf]
    %v242 = vld [vmem:[%s224 + $0x44] sm:$0xf]
    %v243 = vld [vmem:[%s224 + $0x48] sm:$0xf]
    %v244 = vld [vmem:[%s224 + $0x4c] sm:$0xf]
    %v245 = vld [vmem:[%s224 + $0x50] sm:$0xf]
    %v246 = vld [vmem:[%s224 + $0x54] sm:$0xf]
    %v247 = vld [vmem:[%s224 + $0x58] sm:$0xf]
    %v248 = vld [vmem:[%s224 + $0x5c] sm:$0xf]
    %v249 = vld [vmem:[%s224 + $0x60] sm:$0xf]
    %v250 = vld [vmem:[%s224 + $0x64] sm:$0xf]
    %v251 = vld [vmem:[%s224 + $0x68] sm:$0xf]
    %v252 = vld [vmem:[%s224 + $0x6c] sm:$0xf]
    %v253 = vld [vmem:[%s224 + $0x70] sm:$0xf]
    %v254 = vld [vmem:[%s224 + $0x74] sm:$0xf]
    %v255 = vld [vmem:[%s224 + $0x78] sm:$0xf]
    %v256 = vld [vmem:[%s224 + $0x7c] sm:$0xf]
    %v257 = vld [vmem:[#allocation2] sm:$0xff]
    %v258 = vld [vmem:[#allocation2 + $0x8] sm:$0xff]
    %v259 = vld [vmem:[#allocation2 + $0x10] sm:$0xff]
    %v260 = vld [vmem:[#allocation2 + $0x18] sm:$0xff]
    %v261 = vld [vmem:[#allocation2 + $0x20] sm:$0xff]
    %v262 = vld [vmem:[#allocation2 + $0x28] sm:$0xff]
    %v263 = vld [vmem:[#allocation2 + $0x30] sm:$0xff]
    %v264 = vld [vmem:[#allocation2 + $0x38] sm:$0xff]
    %v265 = vld [vmem:[#allocation2 + $0x40] sm:$0xff]
    %v266 = vld [vmem:[#allocation2 + $0x48] sm:$0xff]
    %v267 = vld [vmem:[#allocation2 + $0x50] sm:$0xff]
    %v268 = vld [vmem:[#allocation2 + $0x58] sm:$0xff]
    %v269 = vld [vmem:[#allocation2 + $0x60] sm:$0xff]
    %v270 = vld [vmem:[#allocation2 + $0x68] sm:$0xff]
    %v271 = vld [vmem:[#allocation2 + $0x70] sm:$0xff]
    %v272 = vld [vmem:[#allocation2 + $0x78] sm:$0xff]
    %v273 = vld [vmem:[#allocation2 + $0x80] sm:$0xff]
    %v274 = vld [vmem:[#allocation2 + $0x88] sm:$0xff]
    %v275 = vld [vmem:[#allocation2 + $0x90] sm:$0xff]
    %v276 = vld [vmem:[#allocation2 + $0x98] sm:$0xff]
    %v277 = vld [vmem:[#allocation2 + $0xa0] sm:$0xff]
    %v278 = vld [vmem:[#allocation2 + $0xa8] sm:$0xff]
    %v279 = vld [vmem:[#allocation2 + $0xb0] sm:$0xff]
    %v280 = vld [vmem:[#allocation2 + $0xb8] sm:$0xff]
    %v281 = vld [vmem:[#allocation2 + $0xc0] sm:$0xff]
    %v282 = vld [vmem:[#allocation2 + $0xc8] sm:$0xff]
    %v283 = vld [vmem:[#allocation2 + $0xd0] sm:$0xff]
    %v284 = vld [vmem:[#allocation2 + $0xd8] sm:$0xff]
    %v285 = vld [vmem:[#allocation2 + $0xe0] sm:$0xff]
    %v286 = vld [vmem:[#allocation2 + $0xe8] sm:$0xff]
    %v287 = vld [vmem:[#allocation2 + $0xf0] sm:$0xff]
    %v288 = vld [vmem:[#allocation2 + $0xf8] sm:$0xff]
    %v289 = vld [vmem:[%s0] sm:$0xff]
    %v290 = vld [vmem:[%s0 + $0x8] sm:$0xff]
    %v291 = vld [vmem:[%s0 + $0x10] sm:$0xff]
    %v292 = vld [vmem:[%s0 + $0x18] sm:$0xff]
    %v293 = vld [vmem:[%s0 + $0x20] sm:$0xff]
    %v294 = vld [vmem:[%s0 + $0x28] sm:$0xff]
    %v295 = vld [vmem:[%s0 + $0x30] sm:$0xff]
    %v296 = vld [vmem:[%s0 + $0x38] sm:$0xff]
    %v297 = vld [vmem:[%s0 + $0x40] sm:$0xff]
    %v298 = vld [vmem:[%s0 + $0x48] sm:$0xff]
    %v299 = vld [vmem:[%s0 + $0x50] sm:$0xff]
    %v300 = vld [vmem:[%s0 + $0x58] sm:$0xff]
    %v301 = vld [vmem:[%s0 + $0x60] sm:$0xff]
    %v302 = vld [vmem:[%s0 + $0x68] sm:$0xff]
    %v303 = vld [vmem:[%s0 + $0x70] sm:$0xff]
    %v304 = vld [vmem:[%s0 + $0x78] sm:$0xff]
    %v305 = vld [vmem:[%s0 + $0x80] sm:$0xff]
    %v306 = vld [vmem:[%s0 + $0x88] sm:$0xff]
    %v307 = vld [vmem:[%s0 + $0x90] sm:$0xff]
    %v308 = vld [vmem:[%s0 + $0x98] sm:$0xff]
    %v309 = vld [vmem:[%s0 + $0xa0] sm:$0xff]
    %v310 = vld [vmem:[%s0 + $0xa8] sm:$0xff]
    %v311 = vld [vmem:[%s0 + $0xb0] sm:$0xff]
    %v312 = vld [vmem:[%s0 + $0xb8] sm:$0xff]
    %v313 = vld [vmem:[%s0 + $0xc0] sm:$0xff]
    %v314 = vld [vmem:[%s0 + $0xc8] sm:$0xff]
    %v315 = vld [vmem:[%s0 + $0xd0] sm:$0xff]
    %v316 = vld [vmem:[%s0 + $0xd8] sm:$0xff]
    %v317 = vld [vmem:[%s0 + $0xe0] sm:$0xff]
    %v318 = vld [vmem:[%s0 + $0xe8] sm:$0xff]
    %v319 = vld [vmem:[%s0 + $0xf0] sm:$0xff]
    %v320 = vld [vmem:[%s0 + $0xf8] sm:$0xff]
    %v353 = vunpack.c.l.b16 %v289
    %v354 = vunpack.c.h.b16 %v289
    %v355 = vunpack.c.l.b16 %v290
    %v356 = vunpack.c.h.b16 %v290
    %v357 = vunpack.c.l.b16 %v291
    %v358 = vunpack.c.h.b16 %v291
    %v359 = vunpack.c.l.b16 %v292
    %v360 = vunpack.c.h.b16 %v292
    %v361 = vunpack.c.l.b16 %v293
    %v362 = vunpack.c.h.b16 %v293
    %v363 = vunpack.c.l.b16 %v294
    %v364 = vunpack.c.h.b16 %v294
    %v365 = vunpack.c.l.b16 %v295
    %v366 = vunpack.c.h.b16 %v295
    %v367 = vunpack.c.l.b16 %v296
    %v368 = vunpack.c.h.b16 %v296
    %v369 = vunpack.c.l.b16 %v297
    %v370 = vunpack.c.h.b16 %v297
    %v371 = vunpack.c.l.b16 %v298
    %v372 = vunpack.c.h.b16 %v298
    %v373 = vunpack.c.l.b16 %v299
    %v374 = vunpack.c.h.b16 %v299
    %v375 = vunpack.c.l.b16 %v300
    %v376 = vunpack.c.h.b16 %v300
    %v377 = vunpack.c.l.b16 %v301
    %v378 = vunpack.c.h.b16 %v301
    %v379 = vunpack.c.l.b16 %v302
    %v380 = vunpack.c.h.b16 %v302
    %v381 = vunpack.c.l.b16 %v303
    %v382 = vunpack.c.h.b16 %v303
    %v383 = vunpack.c.l.b16 %v304
    %v384 = vunpack.c.h.b16 %v304
    %v385 = vunpack.c.l.b16 %v305
    %v386 = vunpack.c.h.b16 %v305
    %v387 = vunpack.c.l.b16 %v306
    %v388 = vunpack.c.h.b16 %v306
    %v389 = vunpack.c.l.b16 %v307
    %v390 = vunpack.c.h.b16 %v307
    %v391 = vunpack.c.l.b16 %v308
    %v392 = vunpack.c.h.b16 %v308
    %v393 = vunpack.c.l.b16 %v309
    %v394 = vunpack.c.h.b16 %v309
    %v395 = vunpack.c.l.b16 %v310
    %v396 = vunpack.c.h.b16 %v310
    %v397 = vunpack.c.l.b16 %v311
    %v398 = vunpack.c.h.b16 %v311
    %v399 = vunpack.c.l.b16 %v312
    %v400 = vunpack.c.h.b16 %v312
    %v401 = vunpack.c.l.b16 %v313
    %v402 = vunpack.c.h.b16 %v313
    %v403 = vunpack.c.l.b16 %v314
    %v404 = vunpack.c.h.b16 %v314
    %v405 = vunpack.c.l.b16 %v315
    %v406 = vunpack.c.h.b16 %v315
    %v407 = vunpack.c.l.b16 %v316
    %v408 = vunpack.c.h.b16 %v316
    %v409 = vunpack.c.l.b16 %v317
    %v410 = vunpack.c.h.b16 %v317
    %v411 = vunpack.c.l.b16 %v318
    %v412 = vunpack.c.h.b16 %v318
    %v413 = vunpack.c.l.b16 %v319
    %v414 = vunpack.c.h.b16 %v319
    %v415 = vunpack.c.l.b16 %v320
    %v416 = vunpack.c.h.b16 %v320
    %v417 = vpack.c.b16 %v355, %v353
    %v418 = vpack.c.b16 %v356, %v354
    %v419 = vpack.c.b16 %v359, %v357
    %v420 = vpack.c.b16 %v360, %v358
    %v421 = vpack.c.b16 %v363, %v361
    %v422 = vpack.c.b16 %v364, %v362
    %v423 = vpack.c.b16 %v367, %v365
    %v424 = vpack.c.b16 %v368, %v366
    %v425 = vpack.c.b16 %v371, %v369
    %v426 = vpack.c.b16 %v372, %v370
    %v427 = vpack.c.b16 %v375, %v373
    %v428 = vpack.c.b16 %v376, %v374
    %v429 = vpack.c.b16 %v379, %v377
    %v430 = vpack.c.b16 %v380, %v378
    %v431 = vpack.c.b16 %v383, %v381
    %v432 = vpack.c.b16 %v384, %v382
    %v433 = vpack.c.b16 %v387, %v385
    %v434 = vpack.c.b16 %v388, %v386
    %v435 = vpack.c.b16 %v391, %v389
    %v436 = vpack.c.b16 %v392, %v390
    %v437 = vpack.c.b16 %v395, %v393
    %v438 = vpack.c.b16 %v396, %v394
    %v439 = vpack.c.b16 %v399, %v397
    %v440 = vpack.c.b16 %v400, %v398
    %v441 = vpack.c.b16 %v403, %v401
    %v442 = vpack.c.b16 %v404, %v402
    %v443 = vpack.c.b16 %v407, %v405
    %v444 = vpack.c.b16 %v408, %v406
    %v445 = vpack.c.b16 %v411, %v409
    %v446 = vpack.c.b16 %v412, %v410
    %v447 = vpack.c.b16 %v415, %v413
    %v448 = vpack.c.b16 %v416, %v414
    %v513 = vunpack.c.l.b16 %v225
    %v514 = vunpack.c.l.b16 %v226
    %v515 = vunpack.c.l.b16 %v227
    %v516 = vunpack.c.l.b16 %v228
    %v517 = vunpack.c.l.b16 %v229
    %v518 = vunpack.c.l.b16 %v230
    %v519 = vunpack.c.l.b16 %v231
    %v520 = vunpack.c.l.b16 %v232
    %v521 = vunpack.c.l.b16 %v233
    %v522 = vunpack.c.l.b16 %v234
    %v523 = vunpack.c.l.b16 %v235
    %v524 = vunpack.c.l.b16 %v236
    %v525 = vunpack.c.l.b16 %v237
    %v526 = vunpack.c.l.b16 %v238
    %v527 = vunpack.c.l.b16 %v239
    %v528 = vunpack.c.l.b16 %v240
    %v529 = vunpack.c.l.b16 %v241
    %v530 = vunpack.c.l.b16 %v242
    %v531 = vunpack.c.l.b16 %v243
    %v532 = vunpack.c.l.b16 %v244
    %v533 = vunpack.c.l.b16 %v245
    %v534 = vunpack.c.l.b16 %v246
    %v535 = vunpack.c.l.b16 %v247
    %v536 = vunpack.c.l.b16 %v248
    %v537 = vunpack.c.l.b16 %v249
    %v538 = vunpack.c.l.b16 %v250
    %v539 = vunpack.c.l.b16 %v251
    %v540 = vunpack.c.l.b16 %v252
    %v541 = vunpack.c.l.b16 %v253
    %v542 = vunpack.c.l.b16 %v254
    %v543 = vunpack.c.l.b16 %v255
    %v544 = vunpack.c.l.b16 %v256
    %v545 = vpack.c.b16 %v514, %v513
    %v546 = vpack.c.b16 %v516, %v515
    %v547 = vpack.c.b16 %v518, %v517
    %v548 = vpack.c.b16 %v520, %v519
    %v549 = vpack.c.b16 %v522, %v521
    %v550 = vpack.c.b16 %v524, %v523
    %v551 = vpack.c.b16 %v526, %v525
    %v552 = vpack.c.b16 %v528, %v527
    %v553 = vpack.c.b16 %v530, %v529
    %v554 = vpack.c.b16 %v532, %v531
    %v555 = vpack.c.b16 %v534, %v533
    %v556 = vpack.c.b16 %v536, %v535
    %v557 = vpack.c.b16 %v538, %v537
    %v558 = vpack.c.b16 %v540, %v539
    %v559 = vpack.c.b16 %v542, %v541
    %v560 = vpack.c.b16 %v544, %v543
    %577 = vmatpush.bf16.msra.mxu0 %v552
    %578 = vmatpush.bf16.msra.mxu0 %v551
    %579 = vmatpush.bf16.msra.mxu0 %v550
    %580 = vmatpush.bf16.msra.mxu0 %v549
    %581 = vmatpush.bf16.msra.mxu0 %v548
    %582 = vmatpush.bf16.msra.mxu0 %v547
    %583 = vmatpush.bf16.msra.mxu0 %v546
    %584 = vmatpush.bf16.msra.mxu0 %v545
    %585 = vmatmul.bf16.gmra.mxu0 %v417
    %v586 = vpop.f32.mrf.mxu0
    %v587 = vadd.f32 0.0, %v586
    %v588 = vpop.f32.mrf.mxu0
    %v589 = vadd.f32 0.0, %v588
    %590 = vmatmul.bf16.gmra.mxu0 %v419
    %v591 = vpop.f32.mrf.mxu0
    %v592 = vadd.f32 0.0, %v591
    %v593 = vpop.f32.mrf.mxu0
    %v594 = vadd.f32 0.0, %v593
    %595 = vmatmul.bf16.gmra.mxu0 %v421
    %v596 = vpop.f32.mrf.mxu0
    %v597 = vadd.f32 0.0, %v596
    %v598 = vpop.f32.mrf.mxu0
    %v599 = vadd.f32 0.0, %v598
    %600 = vmatmul.bf16.gmra.mxu0 %v423
    %v601 = vpop.f32.mrf.mxu0
    %v602 = vadd.f32 0.0, %v601
    %v603 = vpop.f32.mrf.mxu0
    %v604 = vadd.f32 0.0, %v603
    %605 = vmatmul.bf16.gmra.mxu0 %v425
    %v606 = vpop.f32.mrf.mxu0
    %v607 = vadd.f32 0.0, %v606
    %v608 = vpop.f32.mrf.mxu0
    %v609 = vadd.f32 0.0, %v608
    %610 = vmatmul.bf16.gmra.mxu0 %v427
    %v611 = vpop.f32.mrf.mxu0
    %v612 = vadd.f32 0.0, %v611
    %v613 = vpop.f32.mrf.mxu0
    %v614 = vadd.f32 0.0, %v613
    %615 = vmatmul.bf16.gmra.mxu0 %v429
    %v616 = vpop.f32.mrf.mxu0
    %v617 = vadd.f32 0.0, %v616
    %v618 = vpop.f32.mrf.mxu0
    %v619 = vadd.f32 0.0, %v618
    %620 = vmatmul.bf16.gmra.mxu0 %v431
    %v621 = vpop.f32.mrf.mxu0
    %v622 = vadd.f32 0.0, %v621
    %v623 = vpop.f32.mrf.mxu0
    %v624 = vadd.f32 0.0, %v623
    %625 = vmatmul.bf16.gmra.mxu0 %v433
    %v626 = vpop.f32.mrf.mxu0
    %v627 = vadd.f32 0.0, %v626
    %v628 = vpop.f32.mrf.mxu0
    %v629 = vadd.f32 0.0, %v628
    %630 = vmatmul.bf16.gmra.mxu0 %v435
    %v631 = vpop.f32.mrf.mxu0
    %v632 = vadd.f32 0.0, %v631
    %v633 = vpop.f32.mrf.mxu0
    %v634 = vadd.f32 0.0, %v633
    %635 = vmatmul.bf16.gmra.mxu0 %v437
    %v636 = vpop.f32.mrf.mxu0
    %v637 = vadd.f32 0.0, %v636
    %v638 = vpop.f32.mrf.mxu0
    %v639 = vadd.f32 0.0, %v638
    %640 = vmatmul.bf16.gmra.mxu0 %v439
    %v641 = vpop.f32.mrf.mxu0
    %v642 = vadd.f32 0.0, %v641
    %v643 = vpop.f32.mrf.mxu0
    %v644 = vadd.f32 0.0, %v643
    %645 = vmatmul.bf16.gmra.mxu0 %v441
    %v646 = vpop.f32.mrf.mxu0
    %v647 = vadd.f32 0.0, %v646
    %v648 = vpop.f32.mrf.mxu0
    %v649 = vadd.f32 0.0, %v648
    %650 = vmatmul.bf16.gmra.mxu0 %v443
    %v651 = vpop.f32.mrf.mxu0
    %v652 = vadd.f32 0.0, %v651
    %v653 = vpop.f32.mrf.mxu0
    %v654 = vadd.f32 0.0, %v653
    %655 = vmatmul.bf16.gmra.mxu0 %v445
    %v656 = vpop.f32.mrf.mxu0
    %v657 = vadd.f32 0.0, %v656
    %v658 = vpop.f32.mrf.mxu0
    %v659 = vadd.f32 0.0, %v658
    %660 = vmatmul.bf16.gmra.mxu0 %v447
    %v661 = vpop.f32.mrf.mxu0
    %v662 = vadd.f32 0.0, %v661
    %v663 = vpop.f32.mrf.mxu0
    %v664 = vadd.f32 0.0, %v663
    %665 = vdwg.mxu0
    %666 = vmatpush.bf16.msra.mxu0 %v560
    %667 = vmatpush.bf16.msra.mxu0 %v559
    %668 = vmatpush.bf16.msra.mxu0 %v558
    %669 = vmatpush.bf16.msra.mxu0 %v557
    %670 = vmatpush.bf16.msra.mxu0 %v556
    %671 = vmatpush.bf16.msra.mxu0 %v555
    %672 = vmatpush.bf16.msra.mxu0 %v554
    %673 = vmatpush.bf16.msra.mxu0 %v553
    %674 = vmatmul.bf16.gmra.mxu0 %v418
    %v675 = vpop.f32.mrf.mxu0
    %v676 = vadd.f32 %v587, %v675
    %v677 = vpop.f32.mrf.mxu0
    %v678 = vadd.f32 %v589, %v677
    %679 = vmatmul.bf16.gmra.mxu0 %v420
    %v680 = vpop.f32.mrf.mxu0
    %v681 = vadd.f32 %v592, %v680
    %v682 = vpop.f32.mrf.mxu0
    %v683 = vadd.f32 %v594, %v682
    %684 = vmatmul.bf16.gmra.mxu0 %v422
    %v685 = vpop.f32.mrf.mxu0
    %v686 = vadd.f32 %v597, %v685
    %v687 = vpop.f32.mrf.mxu0
    %v688 = vadd.f32 %v599, %v687
    %689 = vmatmul.bf16.gmra.mxu0 %v424
    %v690 = vpop.f32.mrf.mxu0
    %v691 = vadd.f32 %v602, %v690
    %v692 = vpop.f32.mrf.mxu0
    %v693 = vadd.f32 %v604, %v692
    %694 = vmatmul.bf16.gmra.mxu0 %v426
    %v695 = vpop.f32.mrf.mxu0
    %v696 = vadd.f32 %v607, %v695
    %v697 = vpop.f32.mrf.mxu0
    %v698 = vadd.f32 %v609, %v697
    %699 = vmatmul.bf16.gmra.mxu0 %v428
    %v700 = vpop.f32.mrf.mxu0
    %v701 = vadd.f32 %v612, %v700
    %v702 = vpop.f32.mrf.mxu0
    %v703 = vadd.f32 %v614, %v702
    %704 = vmatmul.bf16.gmra.mxu0 %v430
    %v705 = vpop.f32.mrf.mxu0
    %v706 = vadd.f32 %v617, %v705
    %v707 = vpop.f32.mrf.mxu0
    %v708 = vadd.f32 %v619, %v707
    %709 = vmatmul.bf16.gmra.mxu0 %v432
    %v710 = vpop.f32.mrf.mxu0
    %v711 = vadd.f32 %v622, %v710
    %v712 = vpop.f32.mrf.mxu0
    %v713 = vadd.f32 %v624, %v712
    %714 = vmatmul.bf16.gmra.mxu0 %v434
    %v715 = vpop.f32.mrf.mxu0
    %v716 = vadd.f32 %v627, %v715
    %v717 = vpop.f32.mrf.mxu0
    %v718 = vadd.f32 %v629, %v717
    %719 = vmatmul.bf16.gmra.mxu0 %v436
    %v720 = vpop.f32.mrf.mxu0
    %v721 = vadd.f32 %v632, %v720
    %v722 = vpop.f32.mrf.mxu0
    %v723 = vadd.f32 %v634, %v722
    %724 = vmatmul.bf16.gmra.mxu0 %v438
    %v725 = vpop.f32.mrf.mxu0
    %v726 = vadd.f32 %v637, %v725
    %v727 = vpop.f32.mrf.mxu0
    %v728 = vadd.f32 %v639, %v727
    %729 = vmatmul.bf16.gmra.mxu0 %v440
    %v730 = vpop.f32.mrf.mxu0
    %v731 = vadd.f32 %v642, %v730
    %v732 = vpop.f32.mrf.mxu0
    %v733 = vadd.f32 %v644, %v732
    %734 = vmatmul.bf16.gmra.mxu0 %v442
    %v735 = vpop.f32.mrf.mxu0
    %v736 = vadd.f32 %v647, %v735
    %v737 = vpop.f32.mrf.mxu0
    %v738 = vadd.f32 %v649, %v737
    %739 = vmatmul.bf16.gmra.mxu0 %v444
    %v740 = vpop.f32.mrf.mxu0
    %v741 = vadd.f32 %v652, %v740
    %v742 = vpop.f32.mrf.mxu0
    %v743 = vadd.f32 %v654, %v742
    %744 = vmatmul.bf16.gmra.mxu0 %v446
    %v745 = vpop.f32.mrf.mxu0
    %v746 = vadd.f32 %v657, %v745
    %v747 = vpop.f32.mrf.mxu0
    %v748 = vadd.f32 %v659, %v747
    %749 = vmatmul.bf16.gmra.mxu0 %v448
    %v750 = vpop.f32.mrf.mxu0
    %v751 = vadd.f32 %v662, %v750
    %v752 = vpop.f32.mrf.mxu0
    %v753 = vadd.f32 %v664, %v752
    %754 = vdwg.mxu0
    %v755 = vadd.f32 %v257, %v676
    %v756 = vadd.f32 %v258, %v678
    %v757 = vadd.f32 %v259, %v681
    %v758 = vadd.f32 %v260, %v683
    %v759 = vadd.f32 %v261, %v686
    %v760 = vadd.f32 %v262, %v688
    %v761 = vadd.f32 %v263, %v691
    %v762 = vadd.f32 %v264, %v693
    %v763 = vadd.f32 %v265, %v696
    %v764 = vadd.f32 %v266, %v698
    %v765 = vadd.f32 %v267, %v701
    %v766 = vadd.f32 %v268, %v703
    %v767 = vadd.f32 %v269, %v706
    %v768 = vadd.f32 %v270, %v708
    %v769 = vadd.f32 %v271, %v711
    %v770 = vadd.f32 %v272, %v713
    %v771 = vadd.f32 %v273, %v716
    %v772 = vadd.f32 %v274, %v718
    %v773 = vadd.f32 %v275, %v721
    %v774 = vadd.f32 %v276, %v723
    %v775 = vadd.f32 %v277, %v726
    %v776 = vadd.f32 %v278, %v728
    %v777 = vadd.f32 %v279, %v731
    %v778 = vadd.f32 %v280, %v733
    %v779 = vadd.f32 %v281, %v736
    %v780 = vadd.f32 %v282, %v738
    %v781 = vadd.f32 %v283, %v741
    %v782 = vadd.f32 %v284, %v743
    %v783 = vadd.f32 %v285, %v746
    %v784 = vadd.f32 %v286, %v748
    %v785 = vadd.f32 %v287, %v751
    %v786 = vadd.f32 %v288, %v753
    %787 = vst [vmem:[#allocation2] sm:$0xff] %v755
    %788 = vst [vmem:[#allocation2 + $0x8] sm:$0xff] %v756
    %789 = vst [vmem:[#allocation2 + $0x10] sm:$0xff] %v757
    %790 = vst [vmem:[#allocation2 + $0x18] sm:$0xff] %v758
    %791 = vst [vmem:[#allocation2 + $0x20] sm:$0xff] %v759
    %792 = vst [vmem:[#allocation2 + $0x28] sm:$0xff] %v760
    %793 = vst [vmem:[#allocation2 + $0x30] sm:$0xff] %v761
    %794 = vst [vmem:[#allocation2 + $0x38] sm:$0xff] %v762
    %795 = vst [vmem:[#allocation2 + $0x40] sm:$0xff] %v763
    %796 = vst [vmem:[#allocation2 + $0x48] sm:$0xff] %v764
    %797 = vst [vmem:[#allocation2 + $0x50] sm:$0xff] %v765
    %798 = vst [vmem:[#allocation2 + $0x58] sm:$0xff] %v766
    %799 = vst [vmem:[#allocation2 + $0x60] sm:$0xff] %v767
    %800 = vst [vmem:[#allocation2 + $0x68] sm:$0xff] %v768
    %801 = vst [vmem:[#allocation2 + $0x70] sm:$0xff] %v769
    %802 = vst [vmem:[#allocation2 + $0x78] sm:$0xff] %v770
    %803 = vst [vmem:[#allocation2 + $0x80] sm:$0xff] %v771
    %804 = vst [vmem:[#allocation2 + $0x88] sm:$0xff] %v772
    %805 = vst [vmem:[#allocation2 + $0x90] sm:$0xff] %v773
    %806 = vst [vmem:[#allocation2 + $0x98] sm:$0xff] %v774
    %807 = vst [vmem:[#allocation2 + $0xa0] sm:$0xff] %v775
    %808 = vst [vmem:[#allocation2 + $0xa8] sm:$0xff] %v776
    %809 = vst [vmem:[#allocation2 + $0xb0] sm:$0xff] %v777
    %810 = vst [vmem:[#allocation2 + $0xb8] sm:$0xff] %v778
    %811 = vst [vmem:[#allocation2 + $0xc0] sm:$0xff] %v779
    %812 = vst [vmem:[#allocation2 + $0xc8] sm:$0xff] %v780
    %813 = vst [vmem:[#allocation2 + $0xd0] sm:$0xff] %v781
    %814 = vst [vmem:[#allocation2 + $0xd8] sm:$0xff] %v782
    %815 = vst [vmem:[#allocation2 + $0xe0] sm:$0xff] %v783
    %816 = vst [vmem:[#allocation2 + $0xe8] sm:$0xff] %v784
    %817 = vst [vmem:[#allocation2 + $0xf0] sm:$0xff] %v785
    %818 = vst [vmem:[#allocation2 + $0xf8] sm:$0xff] %v786
    // Predicated region
    $region59: #{_lambda_.10} parent=1 // pred_check
      %p819 = pneg %p184
    $region60: #{_lambda_.10} parent=1 // pred_check_branch
      %821 = sbr.rel (%p819) target = $region62
    $region61: #{_lambda_.10} parent=1 // pred_region
      %v822 = vld [vmem:[#allocation2] sm:$0xff]
      %v823 = vld [vmem:[#allocation2 + $0x8] sm:$0xff]
      %v824 = vld [vmem:[#allocation2 + $0x10] sm:$0xff]
      %v825 = vld [vmem:[#allocation2 + $0x18] sm:$0xff]
      %v826 = vld [vmem:[#allocation2 + $0x20] sm:$0xff]
      %v827 = vld [vmem:[#allocation2 + $0x28] sm:$0xff]
      %v828 = vld [vmem:[#allocation2 + $0x30] sm:$0xff]
      %v829 = vld [vmem:[#allocation2 + $0x38] sm:$0xff]
      %v830 = vld [vmem:[#allocation2 + $0x40] sm:$0xff]
      %v831 = vld [vmem:[#allocation2 + $0x48] sm:$0xff]
      %v832 = vld [vmem:[#allocation2 + $0x50] sm:$0xff]
      %v833 = vld [vmem:[#allocation2 + $0x58] sm:$0xff]
      %v834 = vld [vmem:[#allocation2 + $0x60] sm:$0xff]
      %v835 = vld [vmem:[#allocation2 + $0x68] sm:$0xff]
      %v836 = vld [vmem:[#allocation2 + $0x70] sm:$0xff]
      %v837 = vld [vmem:[#allocation2 + $0x78] sm:$0xff]
      %v838 = vld [vmem:[#allocation2 + $0x80] sm:$0xff]
      %v839 = vld [vmem:[#allocation2 + $0x88] sm:$0xff]
      %v840 = vld [vmem:[#allocation2 + $0x90] sm:$0xff]
      %v841 = vld [vmem:[#allocation2 + $0x98] sm:$0xff]
      %v842 = vld [vmem:[#allocation2 + $0xa0] sm:$0xff]
      %v843 = vld [vmem:[#allocation2 + $0xa8] sm:$0xff]
      %v844 = vld [vmem:[#allocation2 + $0xb0] sm:$0xff]
      %v845 = vld [vmem:[#allocation2 + $0xb8] sm:$0xff]
      %v846 = vld [vmem:[#allocation2 + $0xc0] sm:$0xff]
      %v847 = vld [vmem:[#allocation2 + $0xc8] sm:$0xff]
      %v848 = vld [vmem:[#allocation2 + $0xd0] sm:$0xff]
      %v849 = vld [vmem:[#allocation2 + $0xd8] sm:$0xff]
      %v850 = vld [vmem:[#allocation2 + $0xe0] sm:$0xff]
      %v851 = vld [vmem:[#allocation2 + $0xe8] sm:$0xff]
      %v852 = vld [vmem:[#allocation2 + $0xf0] sm:$0xff]
      %v853 = vld [vmem:[#allocation2 + $0xf8] sm:$0xff]
      %v854 = vld [vmem:[#allocation3] sm:$0xf]
      %v855 = vld [vmem:[#allocation3 + $0x4] sm:$0xf]
      %v856 = vld [vmem:[#allocation3 + $0x8] sm:$0xf]
      %v857 = vld [vmem:[#allocation3 + $0xc] sm:$0xf]
      %v858 = vld [vmem:[#allocation3 + $0x10] sm:$0xf]
      %v859 = vld [vmem:[#allocation3 + $0x14] sm:$0xf]
      %v860 = vld [vmem:[#allocation3 + $0x18] sm:$0xf]
      %v861 = vld [vmem:[#allocation3 + $0x1c] sm:$0xf]
      %v862 = vld [vmem:[#allocation3 + $0x20] sm:$0xf]
      %v863 = vld [vmem:[#allocation3 + $0x24] sm:$0xf]
      %v864 = vld [vmem:[#allocation3 + $0x28] sm:$0xf]
      %v865 = vld [vmem:[#allocation3 + $0x2c] sm:$0xf]
      %v866 = vld [vmem:[#allocation3 + $0x30] sm:$0xf]
      %v867 = vld [vmem:[#allocation3 + $0x34] sm:$0xf]
      %v868 = vld [vmem:[#allocation3 + $0x38] sm:$0xf]
      %v869 = vld [vmem:[#allocation3 + $0x3c] sm:$0xf]
      %v870 = vld [vmem:[#allocation3 + $0x40] sm:$0xf]
      %v871 = vld [vmem:[#allocation3 + $0x44] sm:$0xf]
      %v872 = vld [vmem:[#allocation3 + $0x48] sm:$0xf]
      %v873 = vld [vmem:[#allocation3 + $0x4c] sm:$0xf]
      %v874 = vld [vmem:[#allocation3 + $0x50] sm:$0xf]
      %v875 = vld [vmem:[#allocation3 + $0x54] sm:$0xf]
      %v876 = vld [vmem:[#allocation3 + $0x58] sm:$0xf]
      %v877 = vld [vmem:[#allocation3 + $0x5c] sm:$0xf]
      %v878 = vld [vmem:[#allocation3 + $0x60] sm:$0xf]
      %v879 = vld [vmem:[#allocation3 + $0x64] sm:$0xf]
      %v880 = vld [vmem:[#allocation3 + $0x68] sm:$0xf]
      %v881 = vld [vmem:[#allocation3 + $0x6c] sm:$0xf]
      %v882 = vld [vmem:[#allocation3 + $0x70] sm:$0xf]
      %v883 = vld [vmem:[#allocation3 + $0x74] sm:$0xf]
      %v884 = vld [vmem:[#allocation3 + $0x78] sm:$0xf]
      %v885 = vld [vmem:[#allocation3 + $0x7c] sm:$0xf]
      %v886 = vunpack.c.l.bf16 %v854
      %v887 = vunpack.c.l.bf16 %v855
      %v888 = vunpack.c.l.bf16 %v856
      %v889 = vunpack.c.l.bf16 %v857
      %v890 = vunpack.c.l.bf16 %v858
      %v891 = vunpack.c.l.bf16 %v859
      %v892 = vunpack.c.l.bf16 %v860
      %v893 = vunpack.c.l.bf16 %v861
      %v894 = vunpack.c.l.bf16 %v862
      %v895 = vunpack.c.l.bf16 %v863
      %v896 = vunpack.c.l.bf16 %v864
      %v897 = vunpack.c.l.bf16 %v865
      %v898 = vunpack.c.l.bf16 %v866
      %v899 = vunpack.c.l.bf16 %v867
      %v900 = vunpack.c.l.bf16 %v868
      %v901 = vunpack.c.l.bf16 %v869
      %v902 = vunpack.c.l.bf16 %v870
      %v903 = vunpack.c.l.bf16 %v871
      %v904 = vunpack.c.l.bf16 %v872
      %v905 = vunpack.c.l.bf16 %v873
      %v906 = vunpack.c.l.bf16 %v874
      %v907 = vunpack.c.l.bf16 %v875
      %v908 = vunpack.c.l.bf16 %v876
      %v909 = vunpack.c.l.bf16 %v877
      %v910 = vunpack.c.l.bf16 %v878
      %v911 = vunpack.c.l.bf16 %v879
      %v912 = vunpack.c.l.bf16 %v880
      %v913 = vunpack.c.l.bf16 %v881
      %v914 = vunpack.c.l.bf16 %v882
      %v915 = vunpack.c.l.bf16 %v883
      %v916 = vunpack.c.l.bf16 %v884
      %v917 = vunpack.c.l.bf16 %v885
      %v918 = vadd.f32 %v822, %v886
      %v919 = vadd.f32 %v823, %v887
      %v920 = vadd.f32 %v824, %v888
      %v921 = vadd.f32 %v825, %v889
      %v922 = vadd.f32 %v826, %v890
      %v923 = vadd.f32 %v827, %v891
      %v924 = vadd.f32 %v828, %v892
      %v925 = vadd.f32 %v829, %v893
      %v926 = vadd.f32 %v830, %v894
      %v927 = vadd.f32 %v831, %v895
      %v928 = vadd.f32 %v832, %v896
      %v929 = vadd.f32 %v833, %v897
      %v930 = vadd.f32 %v834, %v898
      %v931 = vadd.f32 %v835, %v899
      %v932 = vadd.f32 %v836, %v900
      %v933 = vadd.f32 %v837, %v901
      %v934 = vadd.f32 %v838, %v902
      %v935 = vadd.f32 %v839, %v903
      %v936 = vadd.f32 %v840, %v904
      %v937 = vadd.f32 %v841, %v905
      %v938 = vadd.f32 %v842, %v906
      %v939 = vadd.f32 %v843, %v907
      %v940 = vadd.f32 %v844, %v908
      %v941 = vadd.f32 %v845, %v909
      %v942 = vadd.f32 %v846, %v910
      %v943 = vadd.f32 %v847, %v911
      %v944 = vadd.f32 %v848, %v912
      %v945 = vadd.f32 %v849, %v913
      %v946 = vadd.f32 %v850, %v914
      %v947 = vadd.f32 %v851, %v915
      %v948 = vadd.f32 %v852, %v916
      %v949 = vadd.f32 %v853, %v917
      %v950 = vpack.c.bf16 %v918, %v918
      %v951 = vpack.c.bf16 %v919, %v919
      %v952 = vpack.c.bf16 %v920, %v920
      %v953 = vpack.c.bf16 %v921, %v921
      %v954 = vpack.c.bf16 %v922, %v922
      %v955 = vpack.c.bf16 %v923, %v923
      %v956 = vpack.c.bf16 %v924, %v924
      %v957 = vpack.c.bf16 %v925, %v925
      %v958 = vpack.c.bf16 %v926, %v926
      %v959 = vpack.c.bf16 %v927, %v927
      %v960 = vpack.c.bf16 %v928, %v928
      %v961 = vpack.c.bf16 %v929, %v929
      %v962 = vpack.c.bf16 %v930, %v930
      %v963 = vpack.c.bf16 %v931, %v931
      %v964 = vpack.c.bf16 %v932, %v932
      %v965 = vpack.c.bf16 %v933, %v933
      %v966 = vpack.c.bf16 %v934, %v934
      %v967 = vpack.c.bf16 %v935, %v935
      %v968 = vpack.c.bf16 %v936, %v936
      %v969 = vpack.c.bf16 %v937, %v937
      %v970 = vpack.c.bf16 %v938, %v938
      %v971 = vpack.c.bf16 %v939, %v939
      %v972 = vpack.c.bf16 %v940, %v940
      %v973 = vpack.c.bf16 %v941, %v941
      %v974 = vpack.c.bf16 %v942, %v942
      %v975 = vpack.c.bf16 %v943, %v943
      %v976 = vpack.c.bf16 %v944, %v944
      %v977 = vpack.c.bf16 %v945, %v945
      %v978 = vpack.c.bf16 %v946, %v946
      %v979 = vpack.c.bf16 %v947, %v947
      %v980 = vpack.c.bf16 %v948, %v948
      %v981 = vpack.c.bf16 %v949, %v949
      %982 = vst [vmem:[%s3] sm:$0xf] %v950
      %983 = vst [vmem:[%s3 + $0x4] sm:$0xf] %v951
      %984 = vst [vmem:[%s3 + $0x8] sm:$0xf] %v952
      %985 = vst [vmem:[%s3 + $0xc] sm:$0xf] %v953
      %986 = vst [vmem:[%s3 + $0x10] sm:$0xf] %v954
      %987 = vst [vmem:[%s3 + $0x14] sm:$0xf] %v955
      %988 = vst [vmem:[%s3 + $0x18] sm:$0xf] %v956
      %989 = vst [vmem:[%s3 + $0x1c] sm:$0xf] %v957
      %990 = vst [vmem:[%s3 + $0x20] sm:$0xf] %v958
      %991 = vst [vmem:[%s3 + $0x24] sm:$0xf] %v959
      %992 = vst [vmem:[%s3 + $0x28] sm:$0xf] %v960
      %993 = vst [vmem:[%s3 + $0x2c] sm:$0xf] %v961
      %994 = vst [vmem:[%s3 + $0x30] sm:$0xf] %v962
      %995 = vst [vmem:[%s3 + $0x34] sm:$0xf] %v963
      %996 = vst [vmem:[%s3 + $0x38] sm:$0xf] %v964
      %997 = vst [vmem:[%s3 + $0x3c] sm:$0xf] %v965
      %998 = vst [vmem:[%s3 + $0x40] sm:$0xf] %v966
      %999 = vst [vmem:[%s3 + $0x44] sm:$0xf] %v967
      %1000 = vst [vmem:[%s3 + $0x48] sm:$0xf] %v968
      %1001 = vst [vmem:[%s3 + $0x4c] sm:$0xf] %v969
      %1002 = vst [vmem:[%s3 + $0x50] sm:$0xf] %v970
      %1003 = vst [vmem:[%s3 + $0x54] sm:$0xf] %v971
      %1004 = vst [vmem:[%s3 + $0x58] sm:$0xf] %v972
      %1005 = vst [vmem:[%s3 + $0x5c] sm:$0xf] %v973
      %1006 = vst [vmem:[%s3 + $0x60] sm:$0xf] %v974
      %1007 = vst [vmem:[%s3 + $0x64] sm:$0xf] %v975
      %1008 = vst [vmem:[%s3 + $0x68] sm:$0xf] %v976
      %1009 = vst [vmem:[%s3 + $0x6c] sm:$0xf] %v977
      %1010 = vst [vmem:[%s3 + $0x70] sm:$0xf] %v978
      %1011 = vst [vmem:[%s3 + $0x74] sm:$0xf] %v979
      %1012 = vst [vmem:[%s3 + $0x78] sm:$0xf] %v980
      %1013 = vst [vmem:[%s3 + $0x7c] sm:$0xf] %v981
      %v1014 = vadd.f32 %v918, %v919
      %v1015 = vadd.f32 %v1014, %v920
      %v1016 = vadd.f32 %v1015, %v921
      %v1017 = vadd.f32 %v1016, %v922
      %v1018 = vadd.f32 %v1017, %v923
      %v1019 = vadd.f32 %v1018, %v924
      %v1020 = vadd.f32 %v1019, %v925
      %v1021 = vadd.f32 %v1020, %v926
      %v1022 = vadd.f32 %v1021, %v927
      %v1023 = vadd.f32 %v1022, %v928
      %v1024 = vadd.f32 %v1023, %v929
      %v1025 = vadd.f32 %v1024, %v930
      %v1026 = vadd.f32 %v1025, %v931
      %v1027 = vadd.f32 %v1026, %v932
      %v1028 = vadd.f32 %v1027, %v933
      %v1029 = vadd.f32 %v1028, %v934
      %v1030 = vadd.f32 %v1029, %v935
      %v1031 = vadd.f32 %v1030, %v936
      %v1032 = vadd.f32 %v1031, %v937
      %v1033 = vadd.f32 %v1032, %v938
      %v1034 = vadd.f32 %v1033, %v939
      %v1035 = vadd.f32 %v1034, %v940
      %v1036 = vadd.f32 %v1035, %v941
      %v1037 = vadd.f32 %v1036, %v942
      %v1038 = vadd.f32 %v1037, %v943
      %v1039 = vadd.f32 %v1038, %v944
      %v1040 = vadd.f32 %v1039, %v945
      %v1041 = vadd.f32 %v1040, %v946
      %v1042 = vadd.f32 %v1041, %v947
      %v1043 = vadd.f32 %v1042, %v948
      %v1044 = vadd.f32 %v1043, %v949
      %v1045 = vrot.slane %v1044, 4
      %v1046 = vadd.f32 %v1044, %v1045
      %v1047 = vrot.slane %v1046, 2
      %v1048 = vadd.f32 %v1046, %v1047
      %v1049 = vrot.slane %v1048, 1
      %v1050 = vadd.f32 %v1048, %v1049
      %v1051 = vmul.f32 %v918, %v918
      %v1052 = vmul.f32 %v919, %v919
      %v1053 = vmul.f32 %v920, %v920
      %v1054 = vmul.f32 %v921, %v921
      %v1055 = vmul.f32 %v922, %v922
      %v1056 = vmul.f32 %v923, %v923
      %v1057 = vmul.f32 %v924, %v924
      %v1058 = vmul.f32 %v925, %v925
      %v1059 = vmul.f32 %v926, %v926
      %v1060 = vmul.f32 %v927, %v927
      %v1061 = vmul.f32 %v928, %v928
      %v1062 = vmul.f32 %v929, %v929
      %v1063 = vmul.f32 %v930, %v930
      %v1064 = vmul.f32 %v931, %v931
      %v1065 = vmul.f32 %v932, %v932
      %v1066 = vmul.f32 %v933, %v933
      %v1067 = vmul.f32 %v934, %v934
      %v1068 = vmul.f32 %v935, %v935
      %v1069 = vmul.f32 %v936, %v936
      %v1070 = vmul.f32 %v937, %v937
      %v1071 = vmul.f32 %v938, %v938
      %v1072 = vmul.f32 %v939, %v939
      %v1073 = vmul.f32 %v940, %v940
      %v1074 = vmul.f32 %v941, %v941
      %v1075 = vmul.f32 %v942, %v942
      %v1076 = vmul.f32 %v943, %v943
      %v1077 = vmul.f32 %v944, %v944
      %v1078 = vmul.f32 %v945, %v945
      %v1079 = vmul.f32 %v946, %v946
      %v1080 = vmul.f32 %v947, %v947
      %v1081 = vmul.f32 %v948, %v948
      %v1082 = vmul.f32 %v949, %v949
      %v1083 = vadd.f32 %v1051, %v1052
      %v1084 = vadd.f32 %v1083, %v1053
      %v1085 = vadd.f32 %v1084, %v1054
      %v1086 = vadd.f32 %v1085, %v1055
      %v1087 = vadd.f32 %v1086, %v1056
      %v1088 = vadd.f32 %v1087, %v1057
      %v1089 = vadd.f32 %v1088, %v1058
      %v1090 = vadd.f32 %v1089, %v1059
      %v1091 = vadd.f32 %v1090, %v1060
      %v1092 = vadd.f32 %v1091, %v1061
      %v1093 = vadd.f32 %v1092, %v1062
      %v1094 = vadd.f32 %v1093, %v1063
      %v1095 = vadd.f32 %v1094, %v1064
      %v1096 = vadd.f32 %v1095, %v1065
      %v1097 = vadd.f32 %v1096, %v1066
      %v1098 = vadd.f32 %v1097, %v1067
      %v1099 = vadd.f32 %v1098, %v1068
      %v1100 = vadd.f32 %v1099, %v1069
      %v1101 = vadd.f32 %v1100, %v1070
      %v1102 = vadd.f32 %v1101, %v1071
      %v1103 = vadd.f32 %v1102, %v1072
      %v1104 = vadd.f32 %v1103, %v1073
      %v1105 = vadd.f32 %v1104, %v1074
      %v1106 = vadd.f32 %v1105, %v1075
      %v1107 = vadd.f32 %v1106, %v1076
      %v1108 = vadd.f32 %v1107, %v1077
      %v1109 = vadd.f32 %v1108, %v1078
      %v1110 = vadd.f32 %v1109, %v1079
      %v1111 = vadd.f32 %v1110, %v1080
      %v1112 = vadd.f32 %v1111, %v1081
      %v1113 = vadd.f32 %v1112, %v1082
      %v1114 = vrot.slane %v1113, 4
      %v1115 = vadd.f32 %v1113, %v1114
      %v1116 = vrot.slane %v1115, 2
      %v1117 = vadd.f32 %v1115, %v1116
      %v1118 = vrot.slane %v1117, 1
      %v1119 = vadd.f32 %v1117, %v1118
      %vm1120 = vcmask 1040384
      %v1121 = vsel %vm1120, %v1050, %v1119
      %1122 = vst [vmem:[%s4] sm:$0x3] %v1121
    $region62: #{_lambda_.10} parent=1 // pred_fallthru
      _
    // Predicated region
    $region63: #{_lambda_.10} parent=1 // pred_check
      _
    $region64: #{_lambda_.10} parent=1 // pred_check_branch
      %1124 = sbr.rel (0) target = $region66
    $region65: #{_lambda_.10} parent=1 // pred_region
      _
    $region66: #{_lambda_.10} parent=1 // pred_fallthru
      _
    // Predicated region
    $region67: #{_lambda_.10} parent=1 // pred_check
      _
    $region68: #{_lambda_.10} parent=1 // pred_check_branch
      %1126 = sbr.rel (0) target = $region70
    $region69: #{_lambda_.10} parent=1 // pred_region
      _
    $region70: #{_lambda_.10} parent=1 // pred_fallthru
      _
    // Predicated region
    $region71: #{_lambda_.10} parent=1 // pred_check
      _
    $region72: #{_lambda_.10} parent=1 // pred_check_branch
      %1128 = sbr.rel (0) target = $region74
    $region73: #{_lambda_.10} parent=1 // pred_region
      _
    $region74: #{_lambda_.10} parent=1 // pred_fallthru
      _
    // Predicated region
    $region75: #{_lambda_.10} parent=1 // pred_check
      _
    $region76: #{_lambda_.10} parent=1 // pred_check_branch
      %1130 = sbr.rel (0) target = $region78
    $region77: #{_lambda_.10} parent=1 // pred_region
      _
    $region78: #{_lambda_.10} parent=1 // pred_fallthru
      _

// kernel: _lambda_.14
$region0: #{_lambda_.14}
  #allocation0 [shape = 'u32[]', space=smem, size = 0x4, offset = 0x4, fixed_abs, tag = 'smem constant byte address 0x4 - core index']
  #allocation1 [shape = 'u32[72,128]{1,0:T(1,128)}', space=vmem, size = 0x9000, scoped, tag = 'internal scratch']
  %s0 = inlined_call_operand.vmem [shape: bf16[16,256], index: 0, kind: input, shape index: {}]
  %s1 = inlined_call_operand.vmem [shape: bf16[256,128], index: 1, kind: input, shape index: {}]
  %s2 = inlined_call_operand.vmem [shape: f32[1,128], index: 2, kind: input, shape index: {}]
  %s3 = inlined_call_operand.vmem [shape: f32[1,128], index: 3, kind: input, shape index: {}]
  %s4 = inlined_call_operand.vmem [shape: f32[1,16,128], index: 4, kind: output, shape index: {}]
  %s5 = sld [smem:[#allocation0]]
  $region26: #{_lambda_.14} parent=0
    _
  %s7 = ssub.s32 1, %s5
  %s8 = scalar_select 0, %s7, %s5
  // Predicated region
  $region2: #{_lambda_.14} parent=0 // pred_check
    _
  $region3: #{_lambda_.14} parent=0 // pred_check_branch
    %10 = sbr.rel (0) target = $region5
  $region4: #{_lambda_.14} parent=0 // pred_region
    _
  $region5: #{_lambda_.14} parent=0 // pred_fallthru
    _
  // Predicated region
  $region6: #{_lambda_.14} parent=0 // pred_check
    _
  $region7: #{_lambda_.14} parent=0 // pred_check_branch
    %12 = sbr.rel (0) target = $region9
  $region8: #{_lambda_.14} parent=0 // pred_region
    _
  $region9: #{_lambda_.14} parent=0 // pred_fallthru
    _
  // Predicated region
  $region10: #{_lambda_.14} parent=0 // pred_check
    _
  $region11: #{_lambda_.14} parent=0 // pred_check_branch
    %14 = sbr.rel (0) target = $region13
  $region12: #{_lambda_.14} parent=0 // pred_region
    _
  $region13: #{_lambda_.14} parent=0 // pred_fallthru
    _
  // Predicated region
  $region14: #{_lambda_.14} parent=0 // pred_check
    _
  $region15: #{_lambda_.14} parent=0 // pred_check_branch
    %16 = sbr.rel (0) target = $region17
  $region16: #{_lambda_.14} parent=0 // pred_region
    _
  $region17: #{_lambda_.14} parent=0 // pred_fallthru
    _
  %v17 = vld [vmem:[%s1] sm:$0xf]
  %v18 = vld [vmem:[%s1 + $0x4] sm:$0xf]
  %v19 = vld [vmem:[%s1 + $0x8] sm:$0xf]
  %v20 = vld [vmem:[%s1 + $0xc] sm:$0xf]
  %v21 = vld [vmem:[%s1 + $0x10] sm:$0xf]
  %v22 = vld [vmem:[%s1 + $0x14] sm:$0xf]
  %v23 = vld [vmem:[%s1 + $0x18] sm:$0xf]
  %v24 = vld [vmem:[%s1 + $0x1c] sm:$0xf]
  %v25 = vld [vmem:[%s1 + $0x20] sm:$0xf]
  %v26 = vld [vmem:[%s1 + $0x24] sm:$0xf]
  %v27 = vld [vmem:[%s1 + $0x28] sm:$0xf]
  %v28 = vld [vmem:[%s1 + $0x2c] sm:$0xf]
  %v29 = vld [vmem:[%s1 + $0x30] sm:$0xf]
  %v30 = vld [vmem:[%s1 + $0x34] sm:$0xf]
  %v31 = vld [vmem:[%s1 + $0x38] sm:$0xf]
  %v32 = vld [vmem:[%s1 + $0x3c] sm:$0xf]
  %v33 = vld [vmem:[%s1 + $0x40] sm:$0xf]
  %v34 = vld [vmem:[%s1 + $0x44] sm:$0xf]
  %v35 = vld [vmem:[%s1 + $0x48] sm:$0xf]
  %v36 = vld [vmem:[%s1 + $0x4c] sm:$0xf]
  %v37 = vld [vmem:[%s1 + $0x50] sm:$0xf]
  %v38 = vld [vmem:[%s1 + $0x54] sm:$0xf]
  %v39 = vld [vmem:[%s1 + $0x58] sm:$0xf]
  %v40 = vld [vmem:[%s1 + $0x5c] sm:$0xf]
  %v41 = vld [vmem:[%s1 + $0x60] sm:$0xf]
  %v42 = vld [vmem:[%s1 + $0x64] sm:$0xf]
  %v43 = vld [vmem:[%s1 + $0x68] sm:$0xf]
  %v44 = vld [vmem:[%s1 + $0x6c] sm:$0xf]
  %v45 = vld [vmem:[%s1 + $0x70] sm:$0xf]
  %v46 = vld [vmem:[%s1 + $0x74] sm:$0xf]
  %v47 = vld [vmem:[%s1 + $0x78] sm:$0xf]
  %v48 = vld [vmem:[%s1 + $0x7c] sm:$0xf]
  %v49 = vunpack.c.l.bf16 %v17
  %v50 = vunpack.c.l.bf16 %v18
  %v51 = vunpack.c.l.bf16 %v19
  %v52 = vunpack.c.l.bf16 %v20
  %v53 = vunpack.c.l.bf16 %v21
  %v54 = vunpack.c.l.bf16 %v22
  %v55 = vunpack.c.l.bf16 %v23
  %v56 = vunpack.c.l.bf16 %v24
  %v57 = vunpack.c.l.bf16 %v25
  %v58 = vunpack.c.l.bf16 %v26
  %v59 = vunpack.c.l.bf16 %v27
  %v60 = vunpack.c.l.bf16 %v28
  %v61 = vunpack.c.l.bf16 %v29
  %v62 = vunpack.c.l.bf16 %v30
  %v63 = vunpack.c.l.bf16 %v31
  %v64 = vunpack.c.l.bf16 %v32
  %v65 = vunpack.c.l.bf16 %v33
  %v66 = vunpack.c.l.bf16 %v34
  %v67 = vunpack.c.l.bf16 %v35
  %v68 = vunpack.c.l.bf16 %v36
  %v69 = vunpack.c.l.bf16 %v37
  %v70 = vunpack.c.l.bf16 %v38
  %v71 = vunpack.c.l.bf16 %v39
  %v72 = vunpack.c.l.bf16 %v40
  %v73 = vunpack.c.l.bf16 %v41
  %v74 = vunpack.c.l.bf16 %v42
  %v75 = vunpack.c.l.bf16 %v43
  %v76 = vunpack.c.l.bf16 %v44
  %v77 = vunpack.c.l.bf16 %v45
  %v78 = vunpack.c.l.bf16 %v46
  %v79 = vunpack.c.l.bf16 %v47
  %v80 = vunpack.c.l.bf16 %v48
  %v81 = vld [vmem:[%s2] sm:$0x1]
  %v83 = vperm.slane %v81, 0
  %v85 = vmul.f32 %v49, %v83
  %v86 = vmul.f32 %v50, %v83
  %v87 = vmul.f32 %v51, %v83
  %v88 = vmul.f32 %v52, %v83
  %v89 = vmul.f32 %v53, %v83
  %v90 = vmul.f32 %v54, %v83
  %v91 = vmul.f32 %v55, %v83
  %v92 = vmul.f32 %v56, %v83
  %v93 = vmul.f32 %v57, %v83
  %v94 = vmul.f32 %v58, %v83
  %v95 = vmul.f32 %v59, %v83
  %v96 = vmul.f32 %v60, %v83
  %v97 = vmul.f32 %v61, %v83
  %v98 = vmul.f32 %v62, %v83
  %v99 = vmul.f32 %v63, %v83
  %v100 = vmul.f32 %v64, %v83
  %v101 = vmul.f32 %v65, %v83
  %v102 = vmul.f32 %v66, %v83
  %v103 = vmul.f32 %v67, %v83
  %v104 = vmul.f32 %v68, %v83
  %v105 = vmul.f32 %v69, %v83
  %v106 = vmul.f32 %v70, %v83
  %v107 = vmul.f32 %v71, %v83
  %v108 = vmul.f32 %v72, %v83
  %v109 = vmul.f32 %v73, %v83
  %v110 = vmul.f32 %v74, %v83
  %v111 = vmul.f32 %v75, %v83
  %v112 = vmul.f32 %v76, %v83
  %v113 = vmul.f32 %v77, %v83
  %v114 = vmul.f32 %v78, %v83
  %v115 = vmul.f32 %v79, %v83
  %v116 = vmul.f32 %v80, %v83
  %v117 = vld [vmem:[%s3] sm:$0x1]
  %v119 = vperm.slane %v117, 0
  %v121 = vadd.f32 %v85, %v119
  %v122 = vadd.f32 %v86, %v119
  %v123 = vadd.f32 %v87, %v119
  %v124 = vadd.f32 %v88, %v119
  %v125 = vadd.f32 %v89, %v119
  %v126 = vadd.f32 %v90, %v119
  %v127 = vadd.f32 %v91, %v119
  %v128 = vadd.f32 %v92, %v119
  %v129 = vadd.f32 %v93, %v119
  %v130 = vadd.f32 %v94, %v119
  %v131 = vadd.f32 %v95, %v119
  %v132 = vadd.f32 %v96, %v119
  %v133 = vadd.f32 %v97, %v119
  %v134 = vadd.f32 %v98, %v119
  %v135 = vadd.f32 %v99, %v119
  %v136 = vadd.f32 %v100, %v119
  %v137 = vadd.f32 %v101, %v119
  %v138 = vadd.f32 %v102, %v119
  %v139 = vadd.f32 %v103, %v119
  %v140 = vadd.f32 %v104, %v119
  %v141 = vadd.f32 %v105, %v119
  %v142 = vadd.f32 %v106, %v119
  %v143 = vadd.f32 %v107, %v119
  %v144 = vadd.f32 %v108, %v119
  %v145 = vadd.f32 %v109, %v119
  %v146 = vadd.f32 %v110, %v119
  %v147 = vadd.f32 %v111, %v119
  %v148 = vadd.f32 %v112, %v119
  %v149 = vadd.f32 %v113, %v119
  %v150 = vadd.f32 %v114, %v119
  %v151 = vadd.f32 %v115, %v119
  %v152 = vadd.f32 %v116, %v119
  %v153 = vmax.f32 %v121, 0.0
  %v154 = vmax.f32 %v122, 0.0
  %v155 = vmax.f32 %v123, 0.0
  %v156 = vmax.f32 %v124, 0.0
  %v157 = vmax.f32 %v125, 0.0
  %v158 = vmax.f32 %v126, 0.0
  %v159 = vmax.f32 %v127, 0.0
  %v160 = vmax.f32 %v128, 0.0
  %v161 = vmax.f32 %v129, 0.0
  %v162 = vmax.f32 %v130, 0.0
  %v163 = vmax.f32 %v131, 0.0
  %v164 = vmax.f32 %v132, 0.0
  %v165 = vmax.f32 %v133, 0.0
  %v166 = vmax.f32 %v134, 0.0
  %v167 = vmax.f32 %v135, 0.0
  %v168 = vmax.f32 %v136, 0.0
  %v169 = vmax.f32 %v137, 0.0
  %v170 = vmax.f32 %v138, 0.0
  %v171 = vmax.f32 %v139, 0.0
  %v172 = vmax.f32 %v140, 0.0
  %v173 = vmax.f32 %v141, 0.0
  %v174 = vmax.f32 %v142, 0.0
  %v175 = vmax.f32 %v143, 0.0
  %v176 = vmax.f32 %v144, 0.0
  %v177 = vmax.f32 %v145, 0.0
  %v178 = vmax.f32 %v146, 0.0
  %v179 = vmax.f32 %v147, 0.0
  %v180 = vmax.f32 %v148, 0.0
  %v181 = vmax.f32 %v149, 0.0
  %v182 = vmax.f32 %v150, 0.0
  %v183 = vmax.f32 %v151, 0.0
  %v184 = vmax.f32 %v152, 0.0
  %v185 = vld [vmem:[%s0] sm:$0xff]
  %v186 = vld [vmem:[%s0 + $0x8] sm:$0xff]
  %v187 = vpack.c.bf16 %v154, %v153
  %v188 = vpack.c.bf16 %v156, %v155
  %v189 = vpack.c.bf16 %v158, %v157
  %v190 = vpack.c.bf16 %v160, %v159
  %v191 = vpack.c.bf16 %v162, %v161
  %v192 = vpack.c.bf16 %v164, %v163
  %v193 = vpack.c.bf16 %v166, %v165
  %v194 = vpack.c.bf16 %v168, %v167
  %v195 = vpack.c.bf16 %v170, %v169
  %v196 = vpack.c.bf16 %v172, %v171
  %v197 = vpack.c.bf16 %v174, %v173
  %v198 = vpack.c.bf16 %v176, %v175
  %v199 = vpack.c.bf16 %v178, %v177
  %v200 = vpack.c.bf16 %v180, %v179
  %v201 = vpack.c.bf16 %v182, %v181
  %v202 = vpack.c.bf16 %v184, %v183
  %v205 = vunpack.c.l.b16 %v185
  %v206 = vunpack.c.h.b16 %v185
  %v207 = vunpack.c.l.b16 %v186
  %v208 = vunpack.c.h.b16 %v186
  %v209 = vpack.c.b16 %v207, %v205
  %v210 = vpack.c.b16 %v208, %v206
  %213 = vmatpush.bf16.msra.mxu0 %v194
  %214 = vmatpush.bf16.msra.mxu0 %v193
  %215 = vmatpush.bf16.msra.mxu0 %v192
  %216 = vmatpush.bf16.msra.mxu0 %v191
  %217 = vmatpush.bf16.msra.mxu0 %v190
  %218 = vmatpush.bf16.msra.mxu0 %v189
  %219 = vmatpush.bf16.msra.mxu0 %v188
  %220 = vmatpush.bf16.msra.mxu0 %v187
  %221 = vmatmul.bf16.gmra.mxu0 %v209
  %v222 = vpop.f32.mrf.mxu0
  %v223 = vadd.f32 0.0, %v222
  %v224 = vpop.f32.mrf.mxu0
  %v225 = vadd.f32 0.0, %v224
  %226 = vdwg.mxu0
  %227 = vmatpush.bf16.msra.mxu0 %v202
  %228 = vmatpush.bf16.msra.mxu0 %v201
  %229 = vmatpush.bf16.msra.mxu0 %v200
  %230 = vmatpush.bf16.msra.mxu0 %v199
  %231 = vmatpush.bf16.msra.mxu0 %v198
  %232 = vmatpush.bf16.msra.mxu0 %v197
  %233 = vmatpush.bf16.msra.mxu0 %v196
  %234 = vmatpush.bf16.msra.mxu0 %v195
  %235 = vmatmul.bf16.gmra.mxu0 %v210
  %v236 = vpop.f32.mrf.mxu0
  %v237 = vadd.f32 %v223, %v236
  %v238 = vpop.f32.mrf.mxu0
  %v239 = vadd.f32 %v225, %v238
  %240 = vdwg.mxu0
  %241 = vst [vmem:[%s4] sm:$0xff] %v237
  %242 = vst [vmem:[%s4 + $0x8] sm:$0xff] %v239
  // Predicated region
  $region18: #{_lambda_.14} parent=0 // pred_check
    _
  $region19: #{_lambda_.14} parent=0 // pred_check_branch
    %244 = sbr.rel (0) target = $region21
  $region20: #{_lambda_.14} parent=0 // pred_region
    _
  $region21: #{_lambda_.14} parent=0 // pred_fallthru
    _
  // Predicated region
  $region22: #{_lambda_.14} parent=0 // pred_check
    _
  $region23: #{_lambda_.14} parent=0 // pred_check_branch
    %246 = sbr.rel (0) target = $region25
  $region24: #{_lambda_.14} parent=0 // pred_region
    _
  $region25: #{_lambda_.14} parent=0 // pred_fallthru
    _

// kernel: _lambda_.15
$region0: #{_lambda_.15}
  #allocation0 [shape = 'u32[]', space=smem, size = 0x4, offset = 0x4, fixed_abs, tag = 'smem constant byte address 0x4 - core index']
  #allocation1 [shape = 'u32[72,128]{1,0:T(1,128)}', space=vmem, size = 0x9000, scoped, tag = 'internal scratch']
  %s0 = inlined_call_operand.vmem [shape: f32[1,16,128], index: 0, kind: input, shape index: {}]
  %s1 = inlined_call_operand.vmem [shape: bf16[128,128], index: 1, kind: input, shape index: {}]
  %s2 = inlined_call_operand.vmem [shape: f32[1,128], index: 2, kind: input, shape index: {}]
  %s3 = inlined_call_operand.vmem [shape: f32[1,128], index: 3, kind: input, shape index: {}]
  %s4 = inlined_call_operand.vmem [shape: bf16[128,128], index: 4, kind: input, shape index: {}]
  %s5 = inlined_call_operand.vmem [shape: f32[1,128], index: 5, kind: input, shape index: {}]
  %s6 = inlined_call_operand.vmem [shape: f32[16,128], index: 6, kind: output, shape index: {}]
  %s7 = sld [smem:[#allocation0]]
  $region34: #{_lambda_.15} parent=0
    _
  %s9 = ssub.s32 1, %s7
  %s10 = scalar_select 0, %s9, %s7
  // Predicated region
  $region2: #{_lambda_.15} parent=0 // pred_check
    _
  $region3: #{_lambda_.15} parent=0 // pred_check_branch
    %12 = sbr.rel (0) target = $region5
  $region4: #{_lambda_.15} parent=0 // pred_region
    _
  $region5: #{_lambda_.15} parent=0 // pred_fallthru
    _
  // Predicated region
  $region6: #{_lambda_.15} parent=0 // pred_check
    _
  $region7: #{_lambda_.15} parent=0 // pred_check_branch
    %14 = sbr.rel (0) target = $region9
  $region8: #{_lambda_.15} parent=0 // pred_region
    _
  $region9: #{_lambda_.15} parent=0 // pred_fallthru
    _
  // Predicated region
  $region10: #{_lambda_.15} parent=0 // pred_check
    _
  $region11: #{_lambda_.15} parent=0 // pred_check_branch
    %16 = sbr.rel (0) target = $region13
  $region12: #{_lambda_.15} parent=0 // pred_region
    _
  $region13: #{_lambda_.15} parent=0 // pred_fallthru
    _
  // Predicated region
  $region14: #{_lambda_.15} parent=0 // pred_check
    _
  $region15: #{_lambda_.15} parent=0 // pred_check_branch
    %18 = sbr.rel (0) target = $region17
  $region16: #{_lambda_.15} parent=0 // pred_region
    _
  $region17: #{_lambda_.15} parent=0 // pred_fallthru
    _
  // Predicated region
  $region18: #{_lambda_.15} parent=0 // pred_check
    _
  $region19: #{_lambda_.15} parent=0 // pred_check_branch
    %20 = sbr.rel (0) target = $region21
  $region20: #{_lambda_.15} parent=0 // pred_region
    _
  $region21: #{_lambda_.15} parent=0 // pred_fallthru
    _
  // Predicated region
  $region22: #{_lambda_.15} parent=0 // pred_check
    _
  $region23: #{_lambda_.15} parent=0 // pred_check_branch
    %22 = sbr.rel (0) target = $region25
  $region24: #{_lambda_.15} parent=0 // pred_region
    _
  $region25: #{_lambda_.15} parent=0 // pred_fallthru
    _
  %v23 = vld [vmem:[%s0] sm:$0xff]
  %v24 = vld [vmem:[%s0 + $0x8] sm:$0xff]
  %v25 = vadd.f32 %v23, 0.0
  %v26 = vadd.f32 %v24, 0.0
  %v27 = vpack.c.bf16 %v26, %v25
  %v28 = vld [vmem:[%s1] sm:$0xf]
  %v29 = vld [vmem:[%s1 + $0x4] sm:$0xf]
  %v30 = vld [vmem:[%s1 + $0x8] sm:$0xf]
  %v31 = vld [vmem:[%s1 + $0xc] sm:$0xf]
  %v32 = vld [vmem:[%s1 + $0x10] sm:$0xf]
  %v33 = vld [vmem:[%s1 + $0x14] sm:$0xf]
  %v34 = vld [vmem:[%s1 + $0x18] sm:$0xf]
  %v35 = vld [vmem:[%s1 + $0x1c] sm:$0xf]
  %v36 = vld [vmem:[%s1 + $0x20] sm:$0xf]
  %v37 = vld [vmem:[%s1 + $0x24] sm:$0xf]
  %v38 = vld [vmem:[%s1 + $0x28] sm:$0xf]
  %v39 = vld [vmem:[%s1 + $0x2c] sm:$0xf]
  %v40 = vld [vmem:[%s1 + $0x30] sm:$0xf]
  %v41 = vld [vmem:[%s1 + $0x34] sm:$0xf]
  %v42 = vld [vmem:[%s1 + $0x38] sm:$0xf]
  %v43 = vld [vmem:[%s1 + $0x3c] sm:$0xf]
  %v60 = vunpack.c.l.b16 %v28
  %v61 = vunpack.c.l.b16 %v29
  %v62 = vunpack.c.l.b16 %v30
  %v63 = vunpack.c.l.b16 %v31
  %v64 = vunpack.c.l.b16 %v32
  %v65 = vunpack.c.l.b16 %v33
  %v66 = vunpack.c.l.b16 %v34
  %v67 = vunpack.c.l.b16 %v35
  %v68 = vunpack.c.l.b16 %v36
  %v69 = vunpack.c.l.b16 %v37
  %v70 = vunpack.c.l.b16 %v38
  %v71 = vunpack.c.l.b16 %v39
  %v72 = vunpack.c.l.b16 %v40
  %v73 = vunpack.c.l.b16 %v41
  %v74 = vunpack.c.l.b16 %v42
  %v75 = vunpack.c.l.b16 %v43
  %v76 = vpack.c.b16 %v61, %v60
  %v77 = vpack.c.b16 %v63, %v62
  %v78 = vpack.c.b16 %v65, %v64
  %v79 = vpack.c.b16 %v67, %v66
  %v80 = vpack.c.b16 %v69, %v68
  %v81 = vpack.c.b16 %v71, %v70
  %v82 = vpack.c.b16 %v73, %v72
  %v83 = vpack.c.b16 %v75, %v74
  %92 = vmatpush.bf16.msra.mxu0 %v83
  %93 = vmatpush.bf16.msra.mxu0 %v82
  %94 = vmatpush.bf16.msra.mxu0 %v81
  %95 = vmatpush.bf16.msra.mxu0 %v80
  %96 = vmatpush.bf16.msra.mxu0 %v79
  %97 = vmatpush.bf16.msra.mxu0 %v78
  %98 = vmatpush.bf16.msra.mxu0 %v77
  %99 = vmatpush.bf16.msra.mxu0 %v76
  %100 = vmatmul.bf16.gmra.mxu0 %v27
  %v101 = vpop.f32.mrf.mxu0
  %v102 = vadd.f32 0.0, %v101
  %v103 = vpop.f32.mrf.mxu0
  %v104 = vadd.f32 0.0, %v103
  %105 = vdwg.mxu0
  %v106 = vadd.f32 %v102, %v104
  %v107 = vrot.slane %v106, 4
  %v108 = vadd.f32 %v106, %v107
  %v109 = vrot.slane %v108, 2
  %v110 = vadd.f32 %v108, %v109
  %v111 = vrot.slane %v110, 1
  %v112 = vadd.f32 %v110, %v111
  %v113 = vmul.f32 %v112, 0.5
  %v114 = vmul.f32 %v102, %v102
  %v115 = vmul.f32 %v104, %v104
  %v116 = vadd.f32 %v114, %v115
  %v117 = vrot.slane %v116, 4
  %v118 = vadd.f32 %v116, %v117
  %v119 = vrot.slane %v118, 2
  %v120 = vadd.f32 %v118, %v119
  %v121 = vrot.slane %v120, 1
  %v122 = vadd.f32 %v120, %v121
  %v123 = vmul.f32 %v122, 0.5
  %v124 = vmul.f32 %v113, %v113
  %v125 = vsub.f32 %v123, %v124
  %v126 = vmax.f32 %v125, 0.0
  %v127 = vld [vmem:[%s2] sm:$0x1]
  %v128 = vadd.f32 %v126, 1e-05
  %v129 = vrsqrt.pop %v128
  %v130 = vmul.f32 %v129, %v128
  %v131 = vmul.f32 %v130, %v129
  %v132 = vmul.f32 0.5, %v131
  %v133 = vsub.f32 1.5, %v132
  %v134 = vmul.f32 %v129, %v133
  %vm135 = vweird.f32 %v128
  %vm136 = vweird.f32 %v129
  %vm137 = vmor %vm135, %vm136
  %v138 = vsel %vm137, %v129, %v134
  %v139 = vmul.f32 %v127, %v138
  %v140 = vld [vmem:[%s3] sm:$0x1]
  %v141 = vmul.f32 %v113, %v139
  %v142 = vsub.f32 %v140, %v141
  %v144 = vperm.slane %v139, 0
  %v146 = vmul.f32 %v102, %v144
  %v147 = vmul.f32 %v104, %v144
  %v149 = vperm.slane %v142, 0
  %v151 = vadd.f32 %v146, %v149
  %v152 = vadd.f32 %v147, %v149
  %v153 = vmax.f32 %v151, 0.0
  %v154 = vmax.f32 %v152, 0.0
  %v155 = vpack.c.bf16 %v154, %v153
  %v156 = vld [vmem:[%s4] sm:$0xf]
  %v157 = vld [vmem:[%s4 + $0x4] sm:$0xf]
  %v158 = vld [vmem:[%s4 + $0x8] sm:$0xf]
  %v159 = vld [vmem:[%s4 + $0xc] sm:$0xf]
  %v160 = vld [vmem:[%s4 + $0x10] sm:$0xf]
  %v161 = vld [vmem:[%s4 + $0x14] sm:$0xf]
  %v162 = vld [vmem:[%s4 + $0x18] sm:$0xf]
  %v163 = vld [vmem:[%s4 + $0x1c] sm:$0xf]
  %v164 = vld [vmem:[%s4 + $0x20] sm:$0xf]
  %v165 = vld [vmem:[%s4 + $0x24] sm:$0xf]
  %v166 = vld [vmem:[%s4 + $0x28] sm:$0xf]
  %v167 = vld [vmem:[%s4 + $0x2c] sm:$0xf]
  %v168 = vld [vmem:[%s4 + $0x30] sm:$0xf]
  %v169 = vld [vmem:[%s4 + $0x34] sm:$0xf]
  %v170 = vld [vmem:[%s4 + $0x38] sm:$0xf]
  %v171 = vld [vmem:[%s4 + $0x3c] sm:$0xf]
  %v172 = vld [vmem:[%s5] sm:$0x1]
  %v174 = vperm.slane %v172, 0
  %v192 = vunpack.c.l.b16 %v156
  %v193 = vunpack.c.l.b16 %v157
  %v194 = vunpack.c.l.b16 %v158
  %v195 = vunpack.c.l.b16 %v159
  %v196 = vunpack.c.l.b16 %v160
  %v197 = vunpack.c.l.b16 %v161
  %v198 = vunpack.c.l.b16 %v162
  %v199 = vunpack.c.l.b16 %v163
  %v200 = vunpack.c.l.b16 %v164
  %v201 = vunpack.c.l.b16 %v165
  %v202 = vunpack.c.l.b16 %v166
  %v203 = vunpack.c.l.b16 %v167
  %v204 = vunpack.c.l.b16 %v168
  %v205 = vunpack.c.l.b16 %v169
  %v206 = vunpack.c.l.b16 %v170
  %v207 = vunpack.c.l.b16 %v171
  %v208 = vpack.c.b16 %v193, %v192
  %v209 = vpack.c.b16 %v195, %v194
  %v210 = vpack.c.b16 %v197, %v196
  %v211 = vpack.c.b16 %v199, %v198
  %v212 = vpack.c.b16 %v201, %v200
  %v213 = vpack.c.b16 %v203, %v202
  %v214 = vpack.c.b16 %v205, %v204
  %v215 = vpack.c.b16 %v207, %v206
  %224 = vmatpush.bf16.msra.mxu0 %v215
  %225 = vmatpush.bf16.msra.mxu0 %v214
  %226 = vmatpush.bf16.msra.mxu0 %v213
  %227 = vmatpush.bf16.msra.mxu0 %v212
  %228 = vmatpush.bf16.msra.mxu0 %v211
  %229 = vmatpush.bf16.msra.mxu0 %v210
  %230 = vmatpush.bf16.msra.mxu0 %v209
  %231 = vmatpush.bf16.msra.mxu0 %v208
  %232 = vmatmul.bf16.gmra.mxu0 %v155
  %v233 = vpop.f32.mrf.mxu0
  %v234 = vadd.f32 %v174, %v233
  %v235 = vpop.f32.mrf.mxu0
  %v236 = vadd.f32 %v174, %v235
  %237 = vdwg.mxu0
  %238 = vst [vmem:[%s6] sm:$0xff] %v234
  %239 = vst [vmem:[%s6 + $0x8] sm:$0xff] %v236
  // Predicated region
  $region26: #{_lambda_.15} parent=0 // pred_check
    _
  $region27: #{_lambda_.15} parent=0 // pred_check_branch
    %241 = sbr.rel (0) target = $region29
  $region28: #{_lambda_.15} parent=0 // pred_region
    _
  $region29: #{_lambda_.15} parent=0 // pred_fallthru
    _
  // Predicated region
  $region30: #{_lambda_.15} parent=0 // pred_check
    _
  $region31: #{_lambda_.15} parent=0 // pred_check_branch
    %243 = sbr.rel (0) target = $region33
  $region32: #{_lambda_.15} parent=0 // pred_region
    _
  $region33: #{_lambda_.15} parent=0 // pred_fallthru
    _

// kernel: _lambda_.11
$region0: #{_lambda_.11}
  #allocation0 [shape = 'u32[]', space=smem, size = 0x4, offset = 0x4, fixed_abs, tag = 'smem constant byte address 0x4 - core index']
  #allocation1 [shape = 'u32[72,128]{1,0:T(1,128)}', space=vmem, size = 0x9000, scoped, tag = 'internal scratch']
  %s0 = inlined_call_operand.vmem [shape: bf16[256,128], index: 0, kind: input, shape index: {}]
  %s1 = inlined_call_operand.vmem [shape: f32[1,128], index: 1, kind: input, shape index: {}]
  %s2 = inlined_call_operand.vmem [shape: f32[1,128], index: 2, kind: input, shape index: {}]
  %s3 = inlined_call_operand.vmem [shape: bf16[128,256], index: 3, kind: input, shape index: {}]
  %s4 = inlined_call_operand.vmem [shape: bf16[256,256], index: 4, kind: output, shape index: {0}]
  %s5 = inlined_call_operand.vmem [shape: f32[1,2,128], index: 5, kind: output, shape index: {1}]
  %6 = xla_tuple %s4, %s5
  %s7 = sld [smem:[#allocation0]]
  $region34: #{_lambda_.11} parent=0
    _
  %s9 = ssub.s32 1, %s7
  %s10 = scalar_select 0, %s9, %s7
  // Predicated region
  $region2: #{_lambda_.11} parent=0 // pred_check
    _
  $region3: #{_lambda_.11} parent=0 // pred_check_branch
    %12 = sbr.rel (0) target = $region5
  $region4: #{_lambda_.11} parent=0 // pred_region
    _
  $region5: #{_lambda_.11} parent=0 // pred_fallthru
    _
  // Predicated region
  $region6: #{_lambda_.11} parent=0 // pred_check
    _
  $region7: #{_lambda_.11} parent=0 // pred_check_branch
    %14 = sbr.rel (0) target = $region9
  $region8: #{_lambda_.11} parent=0 // pred_region
    _
  $region9: #{_lambda_.11} parent=0 // pred_fallthru
    _
  // Predicated region
  $region10: #{_lambda_.11} parent=0 // pred_check
    _
  $region11: #{_lambda_.11} parent=0 // pred_check_branch
    %16 = sbr.rel (0) target = $region13
  $region12: #{_lambda_.11} parent=0 // pred_region
    _
  $region13: #{_lambda_.11} parent=0 // pred_fallthru
    _
  // Predicated region
  $region14: #{_lambda_.11} parent=0 // pred_check
    _
  $region15: #{_lambda_.11} parent=0 // pred_check_branch
    %18 = sbr.rel (0) target = $region17
  $region16: #{_lambda_.11} parent=0 // pred_region
    _
  $region17: #{_lambda_.11} parent=0 // pred_fallthru
    _
  %v19 = vld [vmem:[%s0] sm:$0xf]
  %v20 = vld [vmem:[%s0 + $0x4] sm:$0xf]
  %v21 = vld [vmem:[%s0 + $0x8] sm:$0xf]
  %v22 = vld [vmem:[%s0 + $0xc] sm:$0xf]
  %v23 = vld [vmem:[%s0 + $0x10] sm:$0xf]
  %v24 = vld [vmem:[%s0 + $0x14] sm:$0xf]
  %v25 = vld [vmem:[%s0 + $0x18] sm:$0xf]
  %v26 = vld [vmem:[%s0 + $0x1c] sm:$0xf]
  %v27 = vld [vmem:[%s0 + $0x20] sm:$0xf]
  %v28 = vld [vmem:[%s0 + $0x24] sm:$0xf]
  %v29 = vld [vmem:[%s0 + $0x28] sm:$0xf]
  %v30 = vld [vmem:[%s0 + $0x2c] sm:$0xf]
  %v31 = vld [vmem:[%s0 + $0x30] sm:$0xf]
  %v32 = vld [vmem:[%s0 + $0x34] sm:$0xf]
  %v33 = vld [vmem:[%s0 + $0x38] sm:$0xf]
  %v34 = vld [vmem:[%s0 + $0x3c] sm:$0xf]
  %v35 = vld [vmem:[%s0 + $0x40] sm:$0xf]
  %v36 = vld [vmem:[%s0 + $0x44] sm:$0xf]
  %v37 = vld [vmem:[%s0 + $0x48] sm:$0xf]
  %v38 = vld [vmem:[%s0 + $0x4c] sm:$0xf]
  %v39 = vld [vmem:[%s0 + $0x50] sm:$0xf]
  %v40 = vld [vmem:[%s0 + $0x54] sm:$0xf]
  %v41 = vld [vmem:[%s0 + $0x58] sm:$0xf]
  %v42 = vld [vmem:[%s0 + $0x5c] sm:$0xf]
  %v43 = vld [vmem:[%s0 + $0x60] sm:$0xf]
  %v44 = vld [vmem:[%s0 + $0x64] sm:$0xf]
  %v45 = vld [vmem:[%s0 + $0x68] sm:$0xf]
  %v46 = vld [vmem:[%s0 + $0x6c] sm:$0xf]
  %v47 = vld [vmem:[%s0 + $0x70] sm:$0xf]
  %v48 = vld [vmem:[%s0 + $0x74] sm:$0xf]
  %v49 = vld [vmem:[%s0 + $0x78] sm:$0xf]
  %v50 = vld [vmem:[%s0 + $0x7c] sm:$0xf]
  %v51 = vunpack.c.l.bf16 %v19
  %v52 = vunpack.c.l.bf16 %v20
  %v53 = vunpack.c.l.bf16 %v21
  %v54 = vunpack.c.l.bf16 %v22
  %v55 = vunpack.c.l.bf16 %v23
  %v56 = vunpack.c.l.bf16 %v24
  %v57 = vunpack.c.l.bf16 %v25
  %v58 = vunpack.c.l.bf16 %v26
  %v59 = vunpack.c.l.bf16 %v27
  %v60 = vunpack.c.l.bf16 %v28
  %v61 = vunpack.c.l.bf16 %v29
  %v62 = vunpack.c.l.bf16 %v30
  %v63 = vunpack.c.l.bf16 %v31
  %v64 = vunpack.c.l.bf16 %v32
  %v65 = vunpack.c.l.bf16 %v33
  %v66 = vunpack.c.l.bf16 %v34
  %v67 = vunpack.c.l.bf16 %v35
  %v68 = vunpack.c.l.bf16 %v36
  %v69 = vunpack.c.l.bf16 %v37
  %v70 = vunpack.c.l.bf16 %v38
  %v71 = vunpack.c.l.bf16 %v39
  %v72 = vunpack.c.l.bf16 %v40
  %v73 = vunpack.c.l.bf16 %v41
  %v74 = vunpack.c.l.bf16 %v42
  %v75 = vunpack.c.l.bf16 %v43
  %v76 = vunpack.c.l.bf16 %v44
  %v77 = vunpack.c.l.bf16 %v45
  %v78 = vunpack.c.l.bf16 %v46
  %v79 = vunpack.c.l.bf16 %v47
  %v80 = vunpack.c.l.bf16 %v48
  %v81 = vunpack.c.l.bf16 %v49
  %v82 = vunpack.c.l.bf16 %v50
  %v83 = vld [vmem:[%s1] sm:$0x1]
  %v85 = vperm.slane %v83, 0
  %v87 = vmul.f32 %v51, %v85
  %v88 = vmul.f32 %v52, %v85
  %v89 = vmul.f32 %v53, %v85
  %v90 = vmul.f32 %v54, %v85
  %v91 = vmul.f32 %v55, %v85
  %v92 = vmul.f32 %v56, %v85
  %v93 = vmul.f32 %v57, %v85
  %v94 = vmul.f32 %v58, %v85
  %v95 = vmul.f32 %v59, %v85
  %v96 = vmul.f32 %v60, %v85
  %v97 = vmul.f32 %v61, %v85
  %v98 = vmul.f32 %v62, %v85
  %v99 = vmul.f32 %v63, %v85
  %v100 = vmul.f32 %v64, %v85
  %v101 = vmul.f32 %v65, %v85
  %v102 = vmul.f32 %v66, %v85
  %v103 = vmul.f32 %v67, %v85
  %v104 = vmul.f32 %v68, %v85
  %v105 = vmul.f32 %v69, %v85
  %v106 = vmul.f32 %v70, %v85
  %v107 = vmul.f32 %v71, %v85
  %v108 = vmul.f32 %v72, %v85
  %v109 = vmul.f32 %v73, %v85
  %v110 = vmul.f32 %v74, %v85
  %v111 = vmul.f32 %v75, %v85
  %v112 = vmul.f32 %v76, %v85
  %v113 = vmul.f32 %v77, %v85
  %v114 = vmul.f32 %v78, %v85
  %v115 = vmul.f32 %v79, %v85
  %v116 = vmul.f32 %v80, %v85
  %v117 = vmul.f32 %v81, %v85
  %v118 = vmul.f32 %v82, %v85
  %v119 = vld [vmem:[%s2] sm:$0x1]
  %v121 = vperm.slane %v119, 0
  %v123 = vadd.f32 %v87, %v121
  %v124 = vadd.f32 %v88, %v121
  %v125 = vadd.f32 %v89, %v121
  %v126 = vadd.f32 %v90, %v121
  %v127 = vadd.f32 %v91, %v121
  %v128 = vadd.f32 %v92, %v121
  %v129 = vadd.f32 %v93, %v121
  %v130 = vadd.f32 %v94, %v121
  %v131 = vadd.f32 %v95, %v121
  %v132 = vadd.f32 %v96, %v121
  %v133 = vadd.f32 %v97, %v121
  %v134 = vadd.f32 %v98, %v121
  %v135 = vadd.f32 %v99, %v121
  %v136 = vadd.f32 %v100, %v121
  %v137 = vadd.f32 %v101, %v121
  %v138 = vadd.f32 %v102, %v121
  %v139 = vadd.f32 %v103, %v121
  %v140 = vadd.f32 %v104, %v121
  %v141 = vadd.f32 %v105, %v121
  %v142 = vadd.f32 %v106, %v121
  %v143 = vadd.f32 %v107, %v121
  %v144 = vadd.f32 %v108, %v121
  %v145 = vadd.f32 %v109, %v121
  %v146 = vadd.f32 %v110, %v121
  %v147 = vadd.f32 %v111, %v121
  %v148 = vadd.f32 %v112, %v121
  %v149 = vadd.f32 %v113, %v121
  %v150 = vadd.f32 %v114, %v121
  %v151 = vadd.f32 %v115, %v121
  %v152 = vadd.f32 %v116, %v121
  %v153 = vadd.f32 %v117, %v121
  %v154 = vadd.f32 %v118, %v121
  %v155 = vmax.f32 %v123, 0.0
  %v156 = vmax.f32 %v124, 0.0
  %v157 = vmax.f32 %v125, 0.0
  %v158 = vmax.f32 %v126, 0.0
  %v159 = vmax.f32 %v127, 0.0
  %v160 = vmax.f32 %v128, 0.0
  %v161 = vmax.f32 %v129, 0.0
  %v162 = vmax.f32 %v130, 0.0
  %v163 = vmax.f32 %v131, 0.0
  %v164 = vmax.f32 %v132, 0.0
  %v165 = vmax.f32 %v133, 0.0
  %v166 = vmax.f32 %v134, 0.0
  %v167 = vmax.f32 %v135, 0.0
  %v168 = vmax.f32 %v136, 0.0
  %v169 = vmax.f32 %v137, 0.0
  %v170 = vmax.f32 %v138, 0.0
  %v171 = vmax.f32 %v139, 0.0
  %v172 = vmax.f32 %v140, 0.0
  %v173 = vmax.f32 %v141, 0.0
  %v174 = vmax.f32 %v142, 0.0
  %v175 = vmax.f32 %v143, 0.0
  %v176 = vmax.f32 %v144, 0.0
  %v177 = vmax.f32 %v145, 0.0
  %v178 = vmax.f32 %v146, 0.0
  %v179 = vmax.f32 %v147, 0.0
  %v180 = vmax.f32 %v148, 0.0
  %v181 = vmax.f32 %v149, 0.0
  %v182 = vmax.f32 %v150, 0.0
  %v183 = vmax.f32 %v151, 0.0
  %v184 = vmax.f32 %v152, 0.0
  %v185 = vmax.f32 %v153, 0.0
  %v186 = vmax.f32 %v154, 0.0
  %s187 = smul.u32 0, 256
  %v188 = vlaneseq
  %v189 = vshrl.u32 %v188, 7
  %v190 = vadd.s32 %v189, 8
  %v191 = vadd.s32 %v189, 16
  %v192 = vadd.s32 %v189, 24
  %v193 = vadd.s32 %v189, 32
  %v194 = vadd.s32 %v189, 40
  %v195 = vadd.s32 %v189, 48
  %v196 = vadd.s32 %v189, 56
  %v197 = vadd.s32 %v189, 64
  %v198 = vadd.s32 %v189, 72
  %v199 = vadd.s32 %v189, 80
  %v200 = vadd.s32 %v189, 88
  %v201 = vadd.s32 %v189, 96
  %v202 = vadd.s32 %v189, 104
  %v203 = vadd.s32 %v189, 112
  %v204 = vadd.s32 %v189, 120
  %v205 = vadd.s32 %v189, 128
  %v206 = vadd.s32 %v189, 136
  %v207 = vadd.s32 %v189, 144
  %v208 = vadd.s32 %v189, 152
  %v209 = vadd.s32 %v189, 160
  %v210 = vadd.s32 %v189, 168
  %v211 = vadd.s32 %v189, 176
  %v212 = vadd.s32 %v189, 184
  %v213 = vadd.s32 %v189, 192
  %v214 = vadd.s32 %v189, 200
  %v215 = vadd.s32 %v189, 208
  %v216 = vadd.s32 %v189, 216
  %v217 = vadd.s32 %v189, 224
  %v218 = vadd.s32 %v189, 232
  %v219 = vadd.s32 %v189, 240
  %v220 = vadd.s32 %v189, 248
  %v221 = vstv %s187
  %v222 = vadd.s32 %v221, %v189
  %v223 = vadd.s32 %v221, %v190
  %v224 = vadd.s32 %v221, %v191
  %v225 = vadd.s32 %v221, %v192
  %v226 = vadd.s32 %v221, %v193
  %v227 = vadd.s32 %v221, %v194
  %v228 = vadd.s32 %v221, %v195
  %v229 = vadd.s32 %v221, %v196
  %v230 = vadd.s32 %v221, %v197
  %v231 = vadd.s32 %v221, %v198
  %v232 = vadd.s32 %v221, %v199
  %v233 = vadd.s32 %v221, %v200
  %v234 = vadd.s32 %v221, %v201
  %v235 = vadd.s32 %v221, %v202
  %v236 = vadd.s32 %v221, %v203
  %v237 = vadd.s32 %v221, %v204
  %v238 = vadd.s32 %v221, %v205
  %v239 = vadd.s32 %v221, %v206
  %v240 = vadd.s32 %v221, %v207
  %v241 = vadd.s32 %v221, %v208
  %v242 = vadd.s32 %v221, %v209
  %v243 = vadd.s32 %v221, %v210
  %v244 = vadd.s32 %v221, %v211
  %v245 = vadd.s32 %v221, %v212
  %v246 = vadd.s32 %v221, %v213
  %v247 = vadd.s32 %v221, %v214
  %v248 = vadd.s32 %v221, %v215
  %v249 = vadd.s32 %v221, %v216
  %v250 = vadd.s32 %v221, %v217
  %v251 = vadd.s32 %v221, %v218
  %v252 = vadd.s32 %v221, %v219
  %v253 = vadd.s32 %v221, %v220
  %vm254 = vcmp.lt.s32.totalorder %v222, 16
  %vm255 = vcmp.lt.s32.totalorder %v223, 16
  %vm256 = vcmp.lt.s32.totalorder %v224, 16
  %vm257 = vcmp.lt.s32.totalorder %v225, 16
  %vm258 = vcmp.lt.s32.totalorder %v226, 16
  %vm259 = vcmp.lt.s32.totalorder %v227, 16
  %vm260 = vcmp.lt.s32.totalorder %v228, 16
  %vm261 = vcmp.lt.s32.totalorder %v229, 16
  %vm262 = vcmp.lt.s32.totalorder %v230, 16
  %vm263 = vcmp.lt.s32.totalorder %v231, 16
  %vm264 = vcmp.lt.s32.totalorder %v232, 16
  %vm265 = vcmp.lt.s32.totalorder %v233, 16
  %vm266 = vcmp.lt.s32.totalorder %v234, 16
  %vm267 = vcmp.lt.s32.totalorder %v235, 16
  %vm268 = vcmp.lt.s32.totalorder %v236, 16
  %vm269 = vcmp.lt.s32.totalorder %v237, 16
  %vm270 = vcmp.lt.s32.totalorder %v238, 16
  %vm271 = vcmp.lt.s32.totalorder %v239, 16
  %vm272 = vcmp.lt.s32.totalorder %v240, 16
  %vm273 = vcmp.lt.s32.totalorder %v241, 16
  %vm274 = vcmp.lt.s32.totalorder %v242, 16
  %vm275 = vcmp.lt.s32.totalorder %v243, 16
  %vm276 = vcmp.lt.s32.totalorder %v244, 16
  %vm277 = vcmp.lt.s32.totalorder %v245, 16
  %vm278 = vcmp.lt.s32.totalorder %v246, 16
  %vm279 = vcmp.lt.s32.totalorder %v247, 16
  %vm280 = vcmp.lt.s32.totalorder %v248, 16
  %vm281 = vcmp.lt.s32.totalorder %v249, 16
  %vm282 = vcmp.lt.s32.totalorder %v250, 16
  %vm283 = vcmp.lt.s32.totalorder %v251, 16
  %vm284 = vcmp.lt.s32.totalorder %v252, 16
  %vm285 = vcmp.lt.s32.totalorder %v253, 16
  %v286 = vsel %vm254, 1, 0
  %v287 = vsel %vm255, 1, 0
  %v288 = vsel %vm256, 1, 0
  %v289 = vsel %vm257, 1, 0
  %v290 = vsel %vm258, 1, 0
  %v291 = vsel %vm259, 1, 0
  %v292 = vsel %vm260, 1, 0
  %v293 = vsel %vm261, 1, 0
  %v294 = vsel %vm262, 1, 0
  %v295 = vsel %vm263, 1, 0
  %v296 = vsel %vm264, 1, 0
  %v297 = vsel %vm265, 1, 0
  %v298 = vsel %vm266, 1, 0
  %v299 = vsel %vm267, 1, 0
  %v300 = vsel %vm268, 1, 0
  %v301 = vsel %vm269, 1, 0
  %v302 = vsel %vm270, 1, 0
  %v303 = vsel %vm271, 1, 0
  %v304 = vsel %vm272, 1, 0
  %v305 = vsel %vm273, 1, 0
  %v306 = vsel %vm274, 1, 0
  %v307 = vsel %vm275, 1, 0
  %v308 = vsel %vm276, 1, 0
  %v309 = vsel %vm277, 1, 0
  %v310 = vsel %vm278, 1, 0
  %v311 = vsel %vm279, 1, 0
  %v312 = vsel %vm280, 1, 0
  %v313 = vsel %vm281, 1, 0
  %v314 = vsel %vm282, 1, 0
  %v315 = vsel %vm283, 1, 0
  %v316 = vsel %vm284, 1, 0
  %v317 = vsel %vm285, 1, 0
  %vm318 = vcmp.eq.s32.totalorder %v286, 1
  %vm319 = vcmp.eq.s32.totalorder %v287, 1
  %vm320 = vcmp.eq.s32.totalorder %v288, 1
  %vm321 = vcmp.eq.s32.totalorder %v289, 1
  %vm322 = vcmp.eq.s32.totalorder %v290, 1
  %vm323 = vcmp.eq.s32.totalorder %v291, 1
  %vm324 = vcmp.eq.s32.totalorder %v292, 1
  %vm325 = vcmp.eq.s32.totalorder %v293, 1
  %vm326 = vcmp.eq.s32.totalorder %v294, 1
  %vm327 = vcmp.eq.s32.totalorder %v295, 1
  %vm328 = vcmp.eq.s32.totalorder %v296, 1
  %vm329 = vcmp.eq.s32.totalorder %v297, 1
  %vm330 = vcmp.eq.s32.totalorder %v298, 1
  %vm331 = vcmp.eq.s32.totalorder %v299, 1
  %vm332 = vcmp.eq.s32.totalorder %v300, 1
  %vm333 = vcmp.eq.s32.totalorder %v301, 1
  %vm334 = vcmp.eq.s32.totalorder %v302, 1
  %vm335 = vcmp.eq.s32.totalorder %v303, 1
  %vm336 = vcmp.eq.s32.totalorder %v304, 1
  %vm337 = vcmp.eq.s32.totalorder %v305, 1
  %vm338 = vcmp.eq.s32.totalorder %v306, 1
  %vm339 = vcmp.eq.s32.totalorder %v307, 1
  %vm340 = vcmp.eq.s32.totalorder %v308, 1
  %vm341 = vcmp.eq.s32.totalorder %v309, 1
  %vm342 = vcmp.eq.s32.totalorder %v310, 1
  %vm343 = vcmp.eq.s32.totalorder %v311, 1
  %vm344 = vcmp.eq.s32.totalorder %v312, 1
  %vm345 = vcmp.eq.s32.totalorder %v313, 1
  %vm346 = vcmp.eq.s32.totalorder %v314, 1
  %vm347 = vcmp.eq.s32.totalorder %v315, 1
  %vm348 = vcmp.eq.s32.totalorder %v316, 1
  %vm349 = vcmp.eq.s32.totalorder %v317, 1
  %v350 = vsel %vm318, %v155, 0.0
  %v351 = vsel %vm319, %v156, 0.0
  %v352 = vsel %vm320, %v157, 0.0
  %v353 = vsel %vm321, %v158, 0.0
  %v354 = vsel %vm322, %v159, 0.0
  %v355 = vsel %vm323, %v160, 0.0
  %v356 = vsel %vm324, %v161, 0.0
  %v357 = vsel %vm325, %v162, 0.0
  %v358 = vsel %vm326, %v163, 0.0
  %v359 = vsel %vm327, %v164, 0.0
  %v360 = vsel %vm328, %v165, 0.0
  %v361 = vsel %vm329, %v166, 0.0
  %v362 = vsel %vm330, %v167, 0.0
  %v363 = vsel %vm331, %v168, 0.0
  %v364 = vsel %vm332, %v169, 0.0
  %v365 = vsel %vm333, %v170, 0.0
  %v366 = vsel %vm334, %v171, 0.0
  %v367 = vsel %vm335, %v172, 0.0
  %v368 = vsel %vm336, %v173, 0.0
  %v369 = vsel %vm337, %v174, 0.0
  %v370 = vsel %vm338, %v175, 0.0
  %v371 = vsel %vm339, %v176, 0.0
  %v372 = vsel %vm340, %v177, 0.0
  %v373 = vsel %vm341, %v178, 0.0
  %v374 = vsel %vm342, %v179, 0.0
  %v375 = vsel %vm343, %v180, 0.0
  %v376 = vsel %vm344, %v181, 0.0
  %v377 = vsel %vm345, %v182, 0.0
  %v378 = vsel %vm346, %v183, 0.0
  %v379 = vsel %vm347, %v184, 0.0
  %v380 = vsel %vm348, %v185, 0.0
  %v381 = vsel %vm349, %v186, 0.0
  %v382 = vpack.c.bf16 %v351, %v350
  %v383 = vpack.c.bf16 %v353, %v352
  %v384 = vpack.c.bf16 %v355, %v354
  %v385 = vpack.c.bf16 %v357, %v356
  %v386 = vpack.c.bf16 %v359, %v358
  %v387 = vpack.c.bf16 %v361, %v360
  %v388 = vpack.c.bf16 %v363, %v362
  %v389 = vpack.c.bf16 %v365, %v364
  %v390 = vpack.c.bf16 %v367, %v366
  %v391 = vpack.c.bf16 %v369, %v368
  %v392 = vpack.c.bf16 %v371, %v370
  %v393 = vpack.c.bf16 %v373, %v372
  %v394 = vpack.c.bf16 %v375, %v374
  %v395 = vpack.c.bf16 %v377, %v376
  %v396 = vpack.c.bf16 %v379, %v378
  %v397 = vpack.c.bf16 %v381, %v380
  %v398 = vld [vmem:[%s3] sm:$0xff]
  %v399 = vld [vmem:[%s3 + $0x8] sm:$0xff]
  %v400 = vld [vmem:[%s3 + $0x10] sm:$0xff]
  %v401 = vld [vmem:[%s3 + $0x18] sm:$0xff]
  %v402 = vld [vmem:[%s3 + $0x20] sm:$0xff]
  %v403 = vld [vmem:[%s3 + $0x28] sm:$0xff]
  %v404 = vld [vmem:[%s3 + $0x30] sm:$0xff]
  %v405 = vld [vmem:[%s3 + $0x38] sm:$0xff]
  %v406 = vld [vmem:[%s3 + $0x40] sm:$0xff]
  %v407 = vld [vmem:[%s3 + $0x48] sm:$0xff]
  %v408 = vld [vmem:[%s3 + $0x50] sm:$0xff]
  %v409 = vld [vmem:[%s3 + $0x58] sm:$0xff]
  %v410 = vld [vmem:[%s3 + $0x60] sm:$0xff]
  %v411 = vld [vmem:[%s3 + $0x68] sm:$0xff]
  %v412 = vld [vmem:[%s3 + $0x70] sm:$0xff]
  %v413 = vld [vmem:[%s3 + $0x78] sm:$0xff]
  %v430 = vunpack.c.l.b16 %v398
  %v431 = vunpack.c.h.b16 %v398
  %v432 = vunpack.c.l.b16 %v399
  %v433 = vunpack.c.h.b16 %v399
  %v434 = vunpack.c.l.b16 %v400
  %v435 = vunpack.c.h.b16 %v400
  %v436 = vunpack.c.l.b16 %v401
  %v437 = vunpack.c.h.b16 %v401
  %v438 = vunpack.c.l.b16 %v402
  %v439 = vunpack.c.h.b16 %v402
  %v440 = vunpack.c.l.b16 %v403
  %v441 = vunpack.c.h.b16 %v403
  %v442 = vunpack.c.l.b16 %v404
  %v443 = vunpack.c.h.b16 %v404
  %v444 = vunpack.c.l.b16 %v405
  %v445 = vunpack.c.h.b16 %v405
  %v446 = vunpack.c.l.b16 %v406
  %v447 = vunpack.c.h.b16 %v406
  %v448 = vunpack.c.l.b16 %v407
  %v449 = vunpack.c.h.b16 %v407
  %v450 = vunpack.c.l.b16 %v408
  %v451 = vunpack.c.h.b16 %v408
  %v452 = vunpack.c.l.b16 %v409
  %v453 = vunpack.c.h.b16 %v409
  %v454 = vunpack.c.l.b16 %v410
  %v455 = vunpack.c.h.b16 %v410
  %v456 = vunpack.c.l.b16 %v411
  %v457 = vunpack.c.h.b16 %v411
  %v458 = vunpack.c.l.b16 %v412
  %v459 = vunpack.c.h.b16 %v412
  %v460 = vunpack.c.l.b16 %v413
  %v461 = vunpack.c.h.b16 %v413
  %v462 = vpack.c.b16 %v432, %v430
  %v463 = vpack.c.b16 %v433, %v431
  %v464 = vpack.c.b16 %v436, %v434
  %v465 = vpack.c.b16 %v437, %v435
  %v466 = vpack.c.b16 %v440, %v438
  %v467 = vpack.c.b16 %v441, %v439
  %v468 = vpack.c.b16 %v444, %v442
  %v469 = vpack.c.b16 %v445, %v443
  %v470 = vpack.c.b16 %v448, %v446
  %v471 = vpack.c.b16 %v449, %v447
  %v472 = vpack.c.b16 %v452, %v450
  %v473 = vpack.c.b16 %v453, %v451
  %v474 = vpack.c.b16 %v456, %v454
  %v475 = vpack.c.b16 %v457, %v455
  %v476 = vpack.c.b16 %v460, %v458
  %v477 = vpack.c.b16 %v461, %v459
  %494 = vmatpush.bf16.msra.mxu0 %v476
  %495 = vmatpush.bf16.msra.mxu0 %v474
  %496 = vmatpush.bf16.msra.mxu0 %v472
  %497 = vmatpush.bf16.msra.mxu0 %v470
  %498 = vmatpush.bf16.msra.mxu0 %v468
  %499 = vmatpush.bf16.msra.mxu0 %v466
  %500 = vmatpush.bf16.msra.mxu0 %v464
  %501 = vmatpush.bf16.msra.mxu0 %v462
  %502 = vmatmul.bf16.gmra.mxu0 %v382
  %v503 = vpop.f32.mrf.mxu0
  %v504 = vadd.f32 0.0, %v503
  %v505 = vpop.f32.mrf.mxu0
  %v506 = vadd.f32 0.0, %v505
  %507 = vmatmul.bf16.gmra.mxu0 %v383
  %v508 = vpop.f32.mrf.mxu0
  %v509 = vadd.f32 0.0, %v508
  %v510 = vpop.f32.mrf.mxu0
  %v511 = vadd.f32 0.0, %v510
  %512 = vmatmul.bf16.gmra.mxu0 %v384
  %v513 = vpop.f32.mrf.mxu0
  %v514 = vadd.f32 0.0, %v513
  %v515 = vpop.f32.mrf.mxu0
  %v516 = vadd.f32 0.0, %v515
  %517 = vmatmul.bf16.gmra.mxu0 %v385
  %v518 = vpop.f32.mrf.mxu0
  %v519 = vadd.f32 0.0, %v518
  %v520 = vpop.f32.mrf.mxu0
  %v521 = vadd.f32 0.0, %v520
  %522 = vmatmul.bf16.gmra.mxu0 %v386
  %v523 = vpop.f32.mrf.mxu0
  %v524 = vadd.f32 0.0, %v523
  %v525 = vpop.f32.mrf.mxu0
  %v526 = vadd.f32 0.0, %v525
  %527 = vmatmul.bf16.gmra.mxu0 %v387
  %v528 = vpop.f32.mrf.mxu0
  %v529 = vadd.f32 0.0, %v528
  %v530 = vpop.f32.mrf.mxu0
  %v531 = vadd.f32 0.0, %v530
  %532 = vmatmul.bf16.gmra.mxu0 %v388
  %v533 = vpop.f32.mrf.mxu0
  %v534 = vadd.f32 0.0, %v533
  %v535 = vpop.f32.mrf.mxu0
  %v536 = vadd.f32 0.0, %v535
  %537 = vmatmul.bf16.gmra.mxu0 %v389
  %v538 = vpop.f32.mrf.mxu0
  %v539 = vadd.f32 0.0, %v538
  %v540 = vpop.f32.mrf.mxu0
  %v541 = vadd.f32 0.0, %v540
  %542 = vmatmul.bf16.gmra.mxu0 %v390
  %v543 = vpop.f32.mrf.mxu0
  %v544 = vadd.f32 0.0, %v543
  %v545 = vpop.f32.mrf.mxu0
  %v546 = vadd.f32 0.0, %v545
  %547 = vmatmul.bf16.gmra.mxu0 %v391
  %v548 = vpop.f32.mrf.mxu0
  %v549 = vadd.f32 0.0, %v548
  %v550 = vpop.f32.mrf.mxu0
  %v551 = vadd.f32 0.0, %v550
  %552 = vmatmul.bf16.gmra.mxu0 %v392
  %v553 = vpop.f32.mrf.mxu0
  %v554 = vadd.f32 0.0, %v553
  %v555 = vpop.f32.mrf.mxu0
  %v556 = vadd.f32 0.0, %v555
  %557 = vmatmul.bf16.gmra.mxu0 %v393
  %v558 = vpop.f32.mrf.mxu0
  %v559 = vadd.f32 0.0, %v558
  %v560 = vpop.f32.mrf.mxu0
  %v561 = vadd.f32 0.0, %v560
  %562 = vmatmul.bf16.gmra.mxu0 %v394
  %v563 = vpop.f32.mrf.mxu0
  %v564 = vadd.f32 0.0, %v563
  %v565 = vpop.f32.mrf.mxu0
  %v566 = vadd.f32 0.0, %v565
  %567 = vmatmul.bf16.gmra.mxu0 %v395
  %v568 = vpop.f32.mrf.mxu0
  %v569 = vadd.f32 0.0, %v568
  %v570 = vpop.f32.mrf.mxu0
  %v571 = vadd.f32 0.0, %v570
  %572 = vmatmul.bf16.gmra.mxu0 %v396
  %v573 = vpop.f32.mrf.mxu0
  %v574 = vadd.f32 0.0, %v573
  %v575 = vpop.f32.mrf.mxu0
  %v576 = vadd.f32 0.0, %v575
  %577 = vmatmul.bf16.gmra.mxu0 %v397
  %v578 = vpop.f32.mrf.mxu0
  %v579 = vadd.f32 0.0, %v578
  %v580 = vpop.f32.mrf.mxu0
  %v581 = vadd.f32 0.0, %v580
  %582 = vdwg.mxu0
  %583 = vmatpush.bf16.msra.mxu0 %v477
  %584 = vmatpush.bf16.msra.mxu0 %v475
  %585 = vmatpush.bf16.msra.mxu0 %v473
  %586 = vmatpush.bf16.msra.mxu0 %v471
  %587 = vmatpush.bf16.msra.mxu0 %v469
  %588 = vmatpush.bf16.msra.mxu0 %v467
  %589 = vmatpush.bf16.msra.mxu0 %v465
  %590 = vmatpush.bf16.msra.mxu0 %v463
  %591 = vmatmul.bf16.gmra.mxu0 %v382
  %v592 = vpop.f32.mrf.mxu0
  %v593 = vadd.f32 0.0, %v592
  %v594 = vpop.f32.mrf.mxu0
  %v595 = vadd.f32 0.0, %v594
  %596 = vmatmul.bf16.gmra.mxu0 %v383
  %v597 = vpop.f32.mrf.mxu0
  %v598 = vadd.f32 0.0, %v597
  %v599 = vpop.f32.mrf.mxu0
  %v600 = vadd.f32 0.0, %v599
  %601 = vmatmul.bf16.gmra.mxu0 %v384
  %v602 = vpop.f32.mrf.mxu0
  %v603 = vadd.f32 0.0, %v602
  %v604 = vpop.f32.mrf.mxu0
  %v605 = vadd.f32 0.0, %v604
  %606 = vmatmul.bf16.gmra.mxu0 %v385
  %v607 = vpop.f32.mrf.mxu0
  %v608 = vadd.f32 0.0, %v607
  %v609 = vpop.f32.mrf.mxu0
  %v610 = vadd.f32 0.0, %v609
  %611 = vmatmul.bf16.gmra.mxu0 %v386
  %v612 = vpop.f32.mrf.mxu0
  %v613 = vadd.f32 0.0, %v612
  %v614 = vpop.f32.mrf.mxu0
  %v615 = vadd.f32 0.0, %v614
  %616 = vmatmul.bf16.gmra.mxu0 %v387
  %v617 = vpop.f32.mrf.mxu0
  %v618 = vadd.f32 0.0, %v617
  %v619 = vpop.f32.mrf.mxu0
  %v620 = vadd.f32 0.0, %v619
  %621 = vmatmul.bf16.gmra.mxu0 %v388
  %v622 = vpop.f32.mrf.mxu0
  %v623 = vadd.f32 0.0, %v622
  %v624 = vpop.f32.mrf.mxu0
  %v625 = vadd.f32 0.0, %v624
  %626 = vmatmul.bf16.gmra.mxu0 %v389
  %v627 = vpop.f32.mrf.mxu0
  %v628 = vadd.f32 0.0, %v627
  %v629 = vpop.f32.mrf.mxu0
  %v630 = vadd.f32 0.0, %v629
  %631 = vmatmul.bf16.gmra.mxu0 %v390
  %v632 = vpop.f32.mrf.mxu0
  %v633 = vadd.f32 0.0, %v632
  %v634 = vpop.f32.mrf.mxu0
  %v635 = vadd.f32 0.0, %v634
  %636 = vmatmul.bf16.gmra.mxu0 %v391
  %v637 = vpop.f32.mrf.mxu0
  %v638 = vadd.f32 0.0, %v637
  %v639 = vpop.f32.mrf.mxu0
  %v640 = vadd.f32 0.0, %v639
  %641 = vmatmul.bf16.gmra.mxu0 %v392
  %v642 = vpop.f32.mrf.mxu0
  %v643 = vadd.f32 0.0, %v642
  %v644 = vpop.f32.mrf.mxu0
  %v645 = vadd.f32 0.0, %v644
  %646 = vmatmul.bf16.gmra.mxu0 %v393
  %v647 = vpop.f32.mrf.mxu0
  %v648 = vadd.f32 0.0, %v647
  %v649 = vpop.f32.mrf.mxu0
  %v650 = vadd.f32 0.0, %v649
  %651 = vmatmul.bf16.gmra.mxu0 %v394
  %v652 = vpop.f32.mrf.mxu0
  %v653 = vadd.f32 0.0, %v652
  %v654 = vpop.f32.mrf.mxu0
  %v655 = vadd.f32 0.0, %v654
  %656 = vmatmul.bf16.gmra.mxu0 %v395
  %v657 = vpop.f32.mrf.mxu0
  %v658 = vadd.f32 0.0, %v657
  %v659 = vpop.f32.mrf.mxu0
  %v660 = vadd.f32 0.0, %v659
  %661 = vmatmul.bf16.gmra.mxu0 %v396
  %v662 = vpop.f32.mrf.mxu0
  %v663 = vadd.f32 0.0, %v662
  %v664 = vpop.f32.mrf.mxu0
  %v665 = vadd.f32 0.0, %v664
  %666 = vmatmul.bf16.gmra.mxu0 %v397
  %v667 = vpop.f32.mrf.mxu0
  %v668 = vadd.f32 0.0, %v667
  %v669 = vpop.f32.mrf.mxu0
  %v670 = vadd.f32 0.0, %v669
  %671 = vdwg.mxu0
  %v672 = vpack.c.bf16 %v593, %v504
  %v673 = vpack.c.bf16 %v595, %v506
  %v674 = vpack.c.bf16 %v598, %v509
  %v675 = vpack.c.bf16 %v600, %v511
  %v676 = vpack.c.bf16 %v603, %v514
  %v677 = vpack.c.bf16 %v605, %v516
  %v678 = vpack.c.bf16 %v608, %v519
  %v679 = vpack.c.bf16 %v610, %v521
  %v680 = vpack.c.bf16 %v613, %v524
  %v681 = vpack.c.bf16 %v615, %v526
  %v682 = vpack.c.bf16 %v618, %v529
  %v683 = vpack.c.bf16 %v620, %v531
  %v684 = vpack.c.bf16 %v623, %v534
  %v685 = vpack.c.bf16 %v625, %v536
  %v686 = vpack.c.bf16 %v628, %v539
  %v687 = vpack.c.bf16 %v630, %v541
  %v688 = vpack.c.bf16 %v633, %v544
  %v689 = vpack.c.bf16 %v635, %v546
  %v690 = vpack.c.bf16 %v638, %v549
  %v691 = vpack.c.bf16 %v640, %v551
  %v692 = vpack.c.bf16 %v643, %v554
  %v693 = vpack.c.bf16 %v645, %v556
  %v694 = vpack.c.bf16 %v648, %v559
  %v695 = vpack.c.bf16 %v650, %v561
  %v696 = vpack.c.bf16 %v653, %v564
  %v697 = vpack.c.bf16 %v655, %v566
  %v698 = vpack.c.bf16 %v658, %v569
  %v699 = vpack.c.bf16 %v660, %v571
  %v700 = vpack.c.bf16 %v663, %v574
  %v701 = vpack.c.bf16 %v665, %v576
  %v702 = vpack.c.bf16 %v668, %v579
  %v703 = vpack.c.bf16 %v670, %v581
  %704 = vst [vmem:[%s4] sm:$0xff] %v672
  %705 = vst [vmem:[%s4 + $0x8] sm:$0xff] %v673
  %706 = vst [vmem:[%s4 + $0x10] sm:$0xff] %v674
  %707 = vst [vmem:[%s4 + $0x18] sm:$0xff] %v675
  %708 = vst [vmem:[%s4 + $0x20] sm:$0xff] %v676
  %709 = vst [vmem:[%s4 + $0x28] sm:$0xff] %v677
  %710 = vst [vmem:[%s4 + $0x30] sm:$0xff] %v678
  %711 = vst [vmem:[%s4 + $0x38] sm:$0xff] %v679
  %712 = vst [vmem:[%s4 + $0x40] sm:$0xff] %v680
  %713 = vst [vmem:[%s4 + $0x48] sm:$0xff] %v681
  %714 = vst [vmem:[%s4 + $0x50] sm:$0xff] %v682
  %715 = vst [vmem:[%s4 + $0x58] sm:$0xff] %v683
  %716 = vst [vmem:[%s4 + $0x60] sm:$0xff] %v684
  %717 = vst [vmem:[%s4 + $0x68] sm:$0xff] %v685
  %718 = vst [vmem:[%s4 + $0x70] sm:$0xff] %v686
  %719 = vst [vmem:[%s4 + $0x78] sm:$0xff] %v687
  %720 = vst [vmem:[%s4 + $0x80] sm:$0xff] %v688
  %721 = vst [vmem:[%s4 + $0x88] sm:$0xff] %v689
  %722 = vst [vmem:[%s4 + $0x90] sm:$0xff] %v690
  %723 = vst [vmem:[%s4 + $0x98] sm:$0xff] %v691
  %724 = vst [vmem:[%s4 + $0xa0] sm:$0xff] %v692
  %725 = vst [vmem:[%s4 + $0xa8] sm:$0xff] %v693
  %726 = vst [vmem:[%s4 + $0xb0] sm:$0xff] %v694
  %727 = vst [vmem:[%s4 + $0xb8] sm:$0xff] %v695
  %728 = vst [vmem:[%s4 + $0xc0] sm:$0xff] %v696
  %729 = vst [vmem:[%s4 + $0xc8] sm:$0xff] %v697
  %730 = vst [vmem:[%s4 + $0xd0] sm:$0xff] %v698
  %731 = vst [vmem:[%s4 + $0xd8] sm:$0xff] %v699
  %732 = vst [vmem:[%s4 + $0xe0] sm:$0xff] %v700
  %733 = vst [vmem:[%s4 + $0xe8] sm:$0xff] %v701
  %734 = vst [vmem:[%s4 + $0xf0] sm:$0xff] %v702
  %735 = vst [vmem:[%s4 + $0xf8] sm:$0xff] %v703
  %v736 = vadd.f32 %v504, %v506
  %v737 = vadd.f32 %v736, %v509
  %v738 = vadd.f32 %v737, %v511
  %v739 = vadd.f32 %v738, %v514
  %v740 = vadd.f32 %v739, %v516
  %v741 = vadd.f32 %v740, %v519
  %v742 = vadd.f32 %v741, %v521
  %v743 = vadd.f32 %v742, %v524
  %v744 = vadd.f32 %v743, %v526
  %v745 = vadd.f32 %v744, %v529
  %v746 = vadd.f32 %v745, %v531
  %v747 = vadd.f32 %v746, %v534
  %v748 = vadd.f32 %v747, %v536
  %v749 = vadd.f32 %v748, %v539
  %v750 = vadd.f32 %v749, %v541
  %v751 = vadd.f32 %v750, %v544
  %v752 = vadd.f32 %v751, %v546
  %v753 = vadd.f32 %v752, %v549
  %v754 = vadd.f32 %v753, %v551
  %v755 = vadd.f32 %v754, %v554
  %v756 = vadd.f32 %v755, %v556
  %v757 = vadd.f32 %v756, %v559
  %v758 = vadd.f32 %v757, %v561
  %v759 = vadd.f32 %v758, %v564
  %v760 = vadd.f32 %v759, %v566
  %v761 = vadd.f32 %v760, %v569
  %v762 = vadd.f32 %v761, %v571
  %v763 = vadd.f32 %v762, %v574
  %v764 = vadd.f32 %v763, %v576
  %v765 = vadd.f32 %v764, %v579
  %v766 = vadd.f32 %v765, %v581
  %v767 = vrot.slane %v766, 4
  %v768 = vadd.f32 %v766, %v767
  %v769 = vrot.slane %v768, 2
  %v770 = vadd.f32 %v768, %v769
  %v771 = vrot.slane %v770, 1
  %v772 = vadd.f32 %v770, %v771
  %v773 = vmul.f32 %v504, %v504
  %v774 = vmul.f32 %v506, %v506
  %v775 = vmul.f32 %v509, %v509
  %v776 = vmul.f32 %v511, %v511
  %v777 = vmul.f32 %v514, %v514
  %v778 = vmul.f32 %v516, %v516
  %v779 = vmul.f32 %v519, %v519
  %v780 = vmul.f32 %v521, %v521
  %v781 = vmul.f32 %v524, %v524
  %v782 = vmul.f32 %v526, %v526
  %v783 = vmul.f32 %v529, %v529
  %v784 = vmul.f32 %v531, %v531
  %v785 = vmul.f32 %v534, %v534
  %v786 = vmul.f32 %v536, %v536
  %v787 = vmul.f32 %v539, %v539
  %v788 = vmul.f32 %v541, %v541
  %v789 = vmul.f32 %v544, %v544
  %v790 = vmul.f32 %v546, %v546
  %v791 = vmul.f32 %v549, %v549
  %v792 = vmul.f32 %v551, %v551
  %v793 = vmul.f32 %v554, %v554
  %v794 = vmul.f32 %v556, %v556
  %v795 = vmul.f32 %v559, %v559
  %v796 = vmul.f32 %v561, %v561
  %v797 = vmul.f32 %v564, %v564
  %v798 = vmul.f32 %v566, %v566
  %v799 = vmul.f32 %v569, %v569
  %v800 = vmul.f32 %v571, %v571
  %v801 = vmul.f32 %v574, %v574
  %v802 = vmul.f32 %v576, %v576
  %v803 = vmul.f32 %v579, %v579
  %v804 = vmul.f32 %v581, %v581
  %v805 = vadd.f32 %v773, %v774
  %v806 = vadd.f32 %v805, %v775
  %v807 = vadd.f32 %v806, %v776
  %v808 = vadd.f32 %v807, %v777
  %v809 = vadd.f32 %v808, %v778
  %v810 = vadd.f32 %v809, %v779
  %v811 = vadd.f32 %v810, %v780
  %v812 = vadd.f32 %v811, %v781
  %v813 = vadd.f32 %v812, %v782
  %v814 = vadd.f32 %v813, %v783
  %v815 = vadd.f32 %v814, %v784
  %v816 = vadd.f32 %v815, %v785
  %v817 = vadd.f32 %v816, %v786
  %v818 = vadd.f32 %v817, %v787
  %v819 = vadd.f32 %v818, %v788
  %v820 = vadd.f32 %v819, %v789
  %v821 = vadd.f32 %v820, %v790
  %v822 = vadd.f32 %v821, %v791
  %v823 = vadd.f32 %v822, %v792
  %v824 = vadd.f32 %v823, %v793
  %v825 = vadd.f32 %v824, %v794
  %v826 = vadd.f32 %v825, %v795
  %v827 = vadd.f32 %v826, %v796
  %v828 = vadd.f32 %v827, %v797
  %v829 = vadd.f32 %v828, %v798
  %v830 = vadd.f32 %v829, %v799
  %v831 = vadd.f32 %v830, %v800
  %v832 = vadd.f32 %v831, %v801
  %v833 = vadd.f32 %v832, %v802
  %v834 = vadd.f32 %v833, %v803
  %v835 = vadd.f32 %v834, %v804
  %v836 = vrot.slane %v835, 4
  %v837 = vadd.f32 %v835, %v836
  %v838 = vrot.slane %v837, 2
  %v839 = vadd.f32 %v837, %v838
  %v840 = vrot.slane %v839, 1
  %v841 = vadd.f32 %v839, %v840
  %vm842 = vcmask 1040384
  %v843 = vsel %vm842, %v772, %v841
  %844 = vst [vmem:[%s5] sm:$0x3] %v843
  // Predicated region
  $region18: #{_lambda_.11} parent=0 // pred_check
    _
  $region19: #{_lambda_.11} parent=0 // pred_check_branch
    %846 = sbr.rel (0) target = $region21
  $region20: #{_lambda_.11} parent=0 // pred_region
    _
  $region21: #{_lambda_.11} parent=0 // pred_fallthru
    _
  // Predicated region
  $region22: #{_lambda_.11} parent=0 // pred_check
    _
  $region23: #{_lambda_.11} parent=0 // pred_check_branch
    %848 = sbr.rel (0) target = $region25
  $region24: #{_lambda_.11} parent=0 // pred_region
    _
  $region25: #{_lambda_.11} parent=0 // pred_fallthru
    _
  // Predicated region
  $region26: #{_lambda_.11} parent=0 // pred_check
    _
  $region27: #{_lambda_.11} parent=0 // pred_check_branch
    %850 = sbr.rel (0) target = $region29
  $region28: #{_lambda_.11} parent=0 // pred_region
    _
  $region29: #{_lambda_.11} parent=0 // pred_fallthru
    _
  // Predicated region
  $region30: #{_lambda_.11} parent=0 // pred_check
    _
  $region31: #{_lambda_.11} parent=0 // pred_check_branch
    %852 = sbr.rel (0) target = $region33
  $region32: #{_lambda_.11} parent=0 // pred_region
    _
  $region33: #{_lambda_.11} parent=0 // pred_fallthru
    _

</llo_original>
